<compile_context>
chip_gen: v5e
topology: v5e:2x2
jax: 0.10.0
libtpu: 0.0.40
codegen_flags: <defaults>
</compile_context>

<pallas_src>
import functools

import jax
import jax.numpy as jnp
from jax.experimental import pallas as pl
from jax.experimental.pallas import tpu as pltpu


# ----------------------------------------------------------------------------
# Pallas kernel: both directions, all GNN layers, fused in one body.
# ----------------------------------------------------------------------------
def _node_emb_kernel(h0_ref,    # [N_p, hd_p]              f32  initial node states
                     adj_ref,   # [2, N_p, N_p]            bf16 A (fwd) / A^T (bwd)
                     deg_ref,   # [2, N_p, 1]              f32  matching degree vectors
                     wmj_ref,   # [2L, hd_p, ndim_p]       bf16 message weight for h_j
                     wh_ref,    # [2L, hd_p, ndim_p+3hd_p] bf16 [Wi | Whh_r | Whh_z | Whh_n]
                     bh_ref,    # [2L, 1,  ndim_p+3hd_p]   f32  [bm | bhh_r | bhh_z | bhh_n]
                     win_ref,   # [2L, ndim_p, 3hd_p]      bf16 [Wih_r | Wih_z | Wih_n]
                     bin_ref,   # [2L, 1,  3hd_p]          f32  [bih_r | bih_z | bih_n]
                     out_ref,   # [N_p, 2*hd_p]            f32  [h_fwd | h_bwd]
                     *, num_layers, hd_p, ndim_p):
    h0 = h0_ref[...]                                   # f32 [N_p, hd_p]
    for d in range(2):                                 # 0 = forward, 1 = backward
        adj = adj_ref[d]                               # bf16 [N_p, N_p]
        deg = deg_ref[d]                               # f32  [N_p, 1]
        h = h0
        for l in range(num_layers):
            idx = d * num_layers + l
            hb = h.astype(jnp.bfloat16)

            # 1) sum over incoming edges of h[src]:  A @ h
            hs = jnp.dot(adj, hb, preferred_element_type=jnp.float32)        # [N_p, hd_p]

            # 2) fused shared-LHS (h) matmul:  h @ [Wi | Whh_r | Whh_z | Whh_n]
            hw = jnp.dot(hb, wh_ref[idx],
                         preferred_element_type=jnp.float32) + bh_ref[idx]   # [N_p, ndim_p+3hd_p]
            mi = hw[:, :ndim_p]                                  # h @ Wi + b_msg
            gh_r = hw[:, ndim_p:ndim_p + hd_p]                   # lane-aligned slices
            gh_z = hw[:, ndim_p + hd_p:ndim_p + 2 * hd_p]
            gh_n = hw[:, ndim_p + 2 * hd_p:]

            # 3) message aggregation:  A @ (h @ Wj) + deg * (h @ Wi + b_msg)
            aggr = (jnp.dot(hs.astype(jnp.bfloat16), wmj_ref[idx],
                            preferred_element_type=jnp.float32)
                    + deg * mi)                                               # [N_p, ndim_p]

            # 4) fused GRU input matmul:  aggr @ [Wih_r | Wih_z | Wih_n]
            gi = (jnp.dot(aggr.astype(jnp.bfloat16), win_ref[idx],
                          preferred_element_type=jnp.float32) + bin_ref[idx]) # [N_p, 3hd_p]

            # GRUCell (PyTorch gate order r, z, n)
            r = jax.nn.sigmoid(gi[:, :hd_p] + gh_r)
            z = jax.nn.sigmoid(gi[:, hd_p:2 * hd_p] + gh_z)
            n = jnp.tanh(gi[:, 2 * hd_p:] + r * gh_n)
            h = (1.0 - z) * n + z * h

        # lane-aligned column-block store: [h_fwd | h_bwd]
        out_ref[:, d * hd_p:(d + 1) * hd_p] = h


# ----------------------------------------------------------------------------
# Parameter construction (deterministic, synthetic — mirrors nn.Module shapes)
# ----------------------------------------------------------------------------
def init_params(key, ndim, num_layers, num_node_atts):
    hd = ndim // 2

    def layer_params(k):
        ks = jax.random.split(k, 6)
        return {
            "w_msg": jax.random.normal(ks[0], (ndim, ndim), jnp.float32) * 0.1,   # nn.Linear(ndim, ndim)
            "b_msg": jax.random.normal(ks[1], (ndim,), jnp.float32) * 0.1,
            "w_ih": jax.random.normal(ks[2], (3 * hd, ndim), jnp.float32) * 0.1,  # GRUCell.weight_ih
            "w_hh": jax.random.normal(ks[3], (3 * hd, hd), jnp.float32) * 0.1,    # GRUCell.weight_hh
            "b_ih": jax.random.normal(ks[4], (3 * hd,), jnp.float32) * 0.1,
            "b_hh": jax.random.normal(ks[5], (3 * hd,), jnp.float32) * 0.1,
        }

    keys = jax.random.split(key, 2 * num_layers + 1)
    embed = jax.random.normal(keys[0], (num_node_atts, hd), jnp.float32)          # nn.Embedding
    fwd = [layer_params(keys[1 + i]) for i in range(num_layers)]
    bwd = [layer_params(keys[1 + num_layers + i]) for i in range(num_layers)]
    return {"embed": embed, "forward": fwd, "backward": bwd}


# ----------------------------------------------------------------------------
# One-time packing (per model) and per-graph precompute — hoisted out of the
# hot path.
# ----------------------------------------------------------------------------
def _round_up(x, m):
    return ((x + m - 1) // m) * m


def _pad1(x, n):
    return jnp.zeros((n,), x.dtype).at[:x.shape[0]].set(x)


def _pad2(x, r, c):
    return jnp.zeros((r, c), x.dtype).at[:x.shape[0], :x.shape[1]].set(x)


def pack_params(params, lane=128):
    """Repack PyTorch-shaped params into lane-padded, gate-fused kernel layouts."""
    embed = params["embed"]
    hd = embed.shape[1]
    ndim = 2 * hd
    L = len(params["forward"])
    hd_p = _round_up(hd, lane)
    ndim_p = 2 * hd_p

    def pack_layer(lp):
        w_t = lp["w_msg"].T                                   # [ndim(in), ndim(out)]
        wj = _pad2(w_t[:hd], hd_p, ndim_p)                    # rows acting on h_j
        wi = _pad2(w_t[hd:], hd_p, ndim_p)                    # rows acting on h_i
        bm = _pad1(lp["b_msg"], ndim_p)

        def gw_ih(g):  # gate g of weight_ih, transposed -> [ndim_p, hd_p]
            return _pad2(lp["w_ih"][g * hd:(g + 1) * hd, :].T, ndim_p, hd_p)

        def gw_hh(g):  # gate g of weight_hh, transposed -> [hd_p, hd_p]
            return _pad2(lp["w_hh"][g * hd:(g + 1) * hd, :].T, hd_p, hd_p)

        def gb(b, g):
            return _pad1(b[g * hd:(g + 1) * hd], hd_p)

        wh = jnp.concatenate([wi] + [gw_hh(g) for g in range(3)], axis=1)   # [hd_p, ndim_p+3hd_p]
        bh = jnp.concatenate([bm] + [gb(lp["b_hh"], g) for g in range(3)])[None, :]
        win = jnp.concatenate([gw_ih(g) for g in range(3)], axis=1)         # [ndim_p, 3hd_p]
        bin_ = jnp.concatenate([gb(lp["b_ih"], g) for g in range(3)])[None, :]
        return wj, wh, bh, win, bin_

    layers = list(params["forward"]) + list(params["backward"])             # idx = d*L + l
    pieces = [pack_layer(lp) for lp in layers]
    return {
        "embed": _pad2(embed, embed.shape[0], hd_p).astype(jnp.float32),    # [A, hd_p]
        "wmj": jnp.stack([p[0] for p in pieces]).astype(jnp.bfloat16),
        "wh": jnp.stack([p[1] for p in pieces]).astype(jnp.bfloat16),
        "bh": jnp.stack([p[2] for p in pieces]).astype(jnp.float32),
        "win": jnp.stack([p[3] for p in pieces]).astype(jnp.bfloat16),
        "bin": jnp.stack([p[4] for p in pieces]).astype(jnp.float32),
    }


def precompute_graph(edge_index, num_nodes, sublane=8):
    """Dense adjacency-count operator + degree vectors, built once per graph."""
    n_p = _round_up(num_nodes, sublane)
    src, dst = edge_index[0], edge_index[1]
    A = jnp.zeros((n_p, n_p), jnp.float32).at[dst, src].add(1.0)   # A[n, m] = #edges m->n
    adj = jnp.stack([A, A.T]).astype(jnp.bfloat16)                 # [2, n_p, n_p]
    deg = jnp.stack([A.sum(axis=1), A.sum(axis=0)])[:, :, None]    # [2, n_p, 1] in/out degree
    return adj, deg.astype(jnp.float32)


# ----------------------------------------------------------------------------
# NodeEmb forward (Pallas) and pure-JAX reference
# ----------------------------------------------------------------------------
def node_emb_forward_pallas(packed, adj, deg, node_atts, *, num_nodes, hd, num_layers):
    embed_p = packed["embed"]
    hd_p = embed_p.shape[1]
    ndim_p = 2 * hd_p
    n_p = adj.shape[1]

    # Embedding gather + row padding (glue, XLA side).
    h0 = jnp.zeros((n_p, hd_p), jnp.float32).at[:num_nodes].set(embed_p[node_atts])

    out = pl.pallas_call(
        functools.partial(_node_emb_kernel,
                          num_layers=num_layers, hd_p=hd_p, ndim_p=ndim_p),
        out_shape=jax.ShapeDtypeStruct((n_p, 2 * hd_p), jnp.float32),
    )(h0, adj, deg, packed["wmj"], packed["wh"], packed["bh"],
      packed["win"], packed["bin"])

    # Strip padding: torch.cat([h_forward, h_backward], dim=1).
    return jnp.concatenate([out[:num_nodes, :hd],
                            out[:num_nodes, hd_p:hd_p + hd]], axis=1)      # [N, ndim]


def _gnn_layer_ref(h, src, dst, lp, num_nodes):
    hd = h.shape[1]
    w_t = lp["w_msg"].T
    h_j, h_i = h[src], h[dst]
    a = h_j @ w_t[:hd] + h_i @ w_t[hd:] + lp["b_msg"]
    aggr = jnp.zeros((num_nodes, a.shape[1]), jnp.float32).at[dst].add(a)
    gi = aggr @ lp["w_ih"].T + lp["b_ih"]
    gh = h @ lp["w_hh"].T + lp["b_hh"]
    r = jax.nn.sigmoid(gi[:, :hd] + gh[:, :hd])
    z = jax.nn.sigmoid(gi[:, hd:2 * hd] + gh[:, hd:2 * hd])
    n = jnp.tanh(gi[:, 2 * hd:] + r * gh[:, 2 * hd:])
    return (1.0 - z) * n + z * h


def node_emb_forward_ref(params, edge_index, node_atts, num_nodes):
    h0 = params["embed"][node_atts]
    src, dst = edge_index[0], edge_index[1]
    h_forward = h0
    for lp in params["forward"]:
        h_forward = _gnn_layer_ref(h_forward, src, dst, lp, num_nodes)
    h_backward = h0
    for lp in params["backward"]:
        h_backward = _gnn_layer_ref(h_backward, dst, src, lp, num_nodes)
    return jnp.concatenate([h_forward, h_backward], axis=1)


# ----------------------------------------------------------------------------
if __name__ == "__main__":
    ndim = 32          # node embedding dim (hidden state is ndim // 2 = 16)
    num_layers = 2
    num_node_atts = 5
    num_nodes = 8
    num_edges = 10
    hd = ndim // 2

    key = jax.random.PRNGKey(0)
    k_par, k_atts, k_src, k_dst = jax.random.split(key, 4)

    params = init_params(k_par, ndim, num_layers, num_node_atts)
    node_atts = jax.random.randint(k_atts, (num_nodes,), 0, num_node_atts)
    src = jax.random.randint(k_src, (num_edges,), 0, num_nodes)
    dst = jax.random.randint(k_dst, (num_edges,), 0, num_nodes)
    edge_index = jnp.stack([src, dst], axis=0)                           # [2, E]

    # Once per model / once per graph (hoisted out of the hot path).
    packed = jax.tree_util.tree_map(jax.block_until_ready, pack_params(params))
    adj, deg = precompute_graph(edge_index, num_nodes)

    forward_fn = jax.jit(functools.partial(
        node_emb_forward_pallas, num_nodes=num_nodes, hd=hd, num_layers=num_layers))

    out = forward_fn(packed, adj, deg, node_atts)
    out = jax.block_until_ready(out)

    ref = node_emb_forward_ref(params, edge_index, node_atts, num_nodes)
    assert out.shape == (num_nodes, ndim)
    # bf16 matmul inputs (f32 accumulation) vs. full-f32 reference -> loosened tolerance.
    assert jnp.allclose(out, ref, atol=3e-2, rtol=3e-2), "mismatch vs reference"

    print("KERNEL_OK")
</pallas_src>

<mosaic_0001>
module attributes {stable_mosaic.version = 11 : i64} {
  func.func @_node_emb_kernel(%arg0: memref<8x128xf32, #tpu.memory_space<vmem>>, %arg1: memref<2x8x8xbf16, #tpu.memory_space<vmem>>, %arg2: memref<2x8x1xf32, #tpu.memory_space<vmem>>, %arg3: memref<4x128x256xbf16, #tpu.memory_space<vmem>>, %arg4: memref<4x128x640xbf16, #tpu.memory_space<vmem>>, %arg5: memref<4x1x640xf32, #tpu.memory_space<vmem>>, %arg6: memref<4x256x384xbf16, #tpu.memory_space<vmem>>, %arg7: memref<4x1x384xf32, #tpu.memory_space<vmem>>, %arg8: memref<8x256xf32, #tpu.memory_space<vmem>>) attributes {dimension_semantics = [], scalar_prefetch = 0 : i64, scratch_operands = 0 : i64, tpu.core_type = #tpu.core_type<tc>} {
    %c0 = arith.constant 0 : index
    %c0_0 = arith.constant 0 : index
    %0 = vector.load %arg0[%c0, %c0_0] : memref<8x128xf32, #tpu.memory_space<vmem>>, vector<8x128xf32>
    %c0_1 = arith.constant 0 : index
    %c0_2 = arith.constant 0 : index
    %c0_3 = arith.constant 0 : index
    %1 = vector.load %arg1[%c0_1, %c0_2, %c0_3] : memref<2x8x8xbf16, #tpu.memory_space<vmem>>, vector<1x8x8xbf16>
    %2 = vector.shape_cast %1 : vector<1x8x8xbf16> to vector<8x8xbf16>
    %c0_4 = arith.constant 0 : index
    %c0_5 = arith.constant 0 : index
    %c0_6 = arith.constant 0 : index
    %3 = vector.load %arg2[%c0_4, %c0_5, %c0_6] : memref<2x8x1xf32, #tpu.memory_space<vmem>>, vector<1x8x1xf32>
    %4 = vector.shape_cast %3 : vector<1x8x1xf32> to vector<8x1xf32>
    %5 = arith.truncf %0 : vector<8x128xf32> to vector<8x128xbf16>
    %cst = arith.constant dense<0.000000e+00> : vector<8x128xf32>
    %6 = tpu.matmul %2, %5, %cst {dimension_numbers = #tpu.dot_dimension_numbers<[1], [0], [0], [1], [0, 0, 1, 1], [], []>} : vector<8x8xbf16>, vector<8x128xbf16>, vector<8x128xf32> -> vector<8x128xf32>
    %c0_7 = arith.constant 0 : index
    %c0_8 = arith.constant 0 : index
    %c0_9 = arith.constant 0 : index
    %7 = vector.load %arg4[%c0_7, %c0_8, %c0_9] : memref<4x128x640xbf16, #tpu.memory_space<vmem>>, vector<1x128x640xbf16>
    %8 = vector.shape_cast %7 : vector<1x128x640xbf16> to vector<128x640xbf16>
    %cst_10 = arith.constant dense<0.000000e+00> : vector<8x640xf32>
    %9 = tpu.matmul %5, %8, %cst_10 {dimension_numbers = #tpu.dot_dimension_numbers<[1], [0], [0], [1], [0, 0, 1, 1], [], []>} : vector<8x128xbf16>, vector<128x640xbf16>, vector<8x640xf32> -> vector<8x640xf32>
    %c0_11 = arith.constant 0 : index
    %c0_12 = arith.constant 0 : index
    %c0_13 = arith.constant 0 : index
    %10 = vector.load %arg5[%c0_11, %c0_12, %c0_13] : memref<4x1x640xf32, #tpu.memory_space<vmem>>, vector<1x1x640xf32>
    %11 = vector.shape_cast %10 : vector<1x1x640xf32> to vector<1x640xf32>
    %12 = vector.broadcast %11 : vector<1x640xf32> to vector<8x640xf32>
    %13 = arith.addf %9, %12 : vector<8x640xf32>
    %14 = vector.extract_strided_slice %13 {offsets = [0, 0], sizes = [8, 256], strides = [1, 1]} : vector<8x640xf32> to vector<8x256xf32>
    %15 = vector.extract_strided_slice %13 {offsets = [0, 256], sizes = [8, 128], strides = [1, 1]} : vector<8x640xf32> to vector<8x128xf32>
    %16 = vector.extract_strided_slice %13 {offsets = [0, 384], sizes = [8, 128], strides = [1, 1]} : vector<8x640xf32> to vector<8x128xf32>
    %17 = vector.extract_strided_slice %13 {offsets = [0, 512], sizes = [8, 128], strides = [1, 1]} : vector<8x640xf32> to vector<8x128xf32>
    %18 = arith.truncf %6 : vector<8x128xf32> to vector<8x128xbf16>
    %c0_14 = arith.constant 0 : index
    %c0_15 = arith.constant 0 : index
    %c0_16 = arith.constant 0 : index
    %19 = vector.load %arg3[%c0_14, %c0_15, %c0_16] : memref<4x128x256xbf16, #tpu.memory_space<vmem>>, vector<1x128x256xbf16>
    %20 = vector.shape_cast %19 : vector<1x128x256xbf16> to vector<128x256xbf16>
    %cst_17 = arith.constant dense<0.000000e+00> : vector<8x256xf32>
    %21 = tpu.matmul %18, %20, %cst_17 {dimension_numbers = #tpu.dot_dimension_numbers<[1], [0], [0], [1], [0, 0, 1, 1], [], []>} : vector<8x128xbf16>, vector<128x256xbf16>, vector<8x256xf32> -> vector<8x256xf32>
    %22 = vector.broadcast %4 : vector<8x1xf32> to vector<8x256xf32>
    %23 = arith.mulf %22, %14 : vector<8x256xf32>
    %24 = arith.addf %21, %23 : vector<8x256xf32>
    %25 = arith.truncf %24 : vector<8x256xf32> to vector<8x256xbf16>
    %c0_18 = arith.constant 0 : index
    %c0_19 = arith.constant 0 : index
    %c0_20 = arith.constant 0 : index
    %26 = vector.load %arg6[%c0_18, %c0_19, %c0_20] : memref<4x256x384xbf16, #tpu.memory_space<vmem>>, vector<1x256x384xbf16>
    %27 = vector.shape_cast %26 : vector<1x256x384xbf16> to vector<256x384xbf16>
    %cst_21 = arith.constant dense<0.000000e+00> : vector<8x384xf32>
    %28 = tpu.matmul %25, %27, %cst_21 {dimension_numbers = #tpu.dot_dimension_numbers<[1], [0], [0], [1], [0, 0, 1, 1], [], []>} : vector<8x256xbf16>, vector<256x384xbf16>, vector<8x384xf32> -> vector<8x384xf32>
    %c0_22 = arith.constant 0 : index
    %c0_23 = arith.constant 0 : index
    %c0_24 = arith.constant 0 : index
    %29 = vector.load %arg7[%c0_22, %c0_23, %c0_24] : memref<4x1x384xf32, #tpu.memory_space<vmem>>, vector<1x1x384xf32>
    %30 = vector.shape_cast %29 : vector<1x1x384xf32> to vector<1x384xf32>
    %31 = vector.broadcast %30 : vector<1x384xf32> to vector<8x384xf32>
    %32 = arith.addf %28, %31 : vector<8x384xf32>
    %33 = vector.extract_strided_slice %32 {offsets = [0, 0], sizes = [8, 128], strides = [1, 1]} : vector<8x384xf32> to vector<8x128xf32>
    %34 = arith.addf %33, %15 : vector<8x128xf32>
    %35 = arith.negf %34 : vector<8x128xf32>
    %36 = math.exp %35 : vector<8x128xf32>
    %cst_25 = arith.constant 1.000000e+00 : f32
    %37 = vector.broadcast %cst_25 : f32 to vector<8x128xf32>
    %38 = arith.addf %37, %36 : vector<8x128xf32>
    %39 = arith.divf %37, %38 : vector<8x128xf32>
    %40 = vector.extract_strided_slice %32 {offsets = [0, 128], sizes = [8, 128], strides = [1, 1]} : vector<8x384xf32> to vector<8x128xf32>
    %41 = arith.addf %40, %16 : vector<8x128xf32>
    %42 = arith.negf %41 : vector<8x128xf32>
    %43 = math.exp %42 : vector<8x128xf32>
    %cst_26 = arith.constant 1.000000e+00 : f32
    %44 = vector.broadcast %cst_26 : f32 to vector<8x128xf32>
    %45 = arith.addf %44, %43 : vector<8x128xf32>
    %46 = arith.divf %44, %45 : vector<8x128xf32>
    %47 = vector.extract_strided_slice %32 {offsets = [0, 256], sizes = [8, 128], strides = [1, 1]} : vector<8x384xf32> to vector<8x128xf32>
    %48 = arith.mulf %39, %17 : vector<8x128xf32>
    %49 = arith.addf %47, %48 : vector<8x128xf32>
    %50 = math.tanh %49 : vector<8x128xf32>
    %cst_27 = arith.constant 1.000000e+00 : f32
    %51 = vector.broadcast %cst_27 : f32 to vector<8x128xf32>
    %52 = arith.subf %51, %46 : vector<8x128xf32>
    %53 = arith.mulf %52, %50 : vector<8x128xf32>
    %54 = arith.mulf %46, %0 : vector<8x128xf32>
    %55 = arith.addf %53, %54 : vector<8x128xf32>
    %56 = arith.truncf %55 : vector<8x128xf32> to vector<8x128xbf16>
    %cst_28 = arith.constant dense<0.000000e+00> : vector<8x128xf32>
    %57 = tpu.matmul %2, %56, %cst_28 {dimension_numbers = #tpu.dot_dimension_numbers<[1], [0], [0], [1], [0, 0, 1, 1], [], []>} : vector<8x8xbf16>, vector<8x128xbf16>, vector<8x128xf32> -> vector<8x128xf32>
    %c1 = arith.constant 1 : index
    %c0_29 = arith.constant 0 : index
    %c0_30 = arith.constant 0 : index
    %58 = vector.load %arg4[%c1, %c0_29, %c0_30] : memref<4x128x640xbf16, #tpu.memory_space<vmem>>, vector<1x128x640xbf16>
    %59 = vector.shape_cast %58 : vector<1x128x640xbf16> to vector<128x640xbf16>
    %cst_31 = arith.constant dense<0.000000e+00> : vector<8x640xf32>
    %60 = tpu.matmul %56, %59, %cst_31 {dimension_numbers = #tpu.dot_dimension_numbers<[1], [0], [0], [1], [0, 0, 1, 1], [], []>} : vector<8x128xbf16>, vector<128x640xbf16>, vector<8x640xf32> -> vector<8x640xf32>
    %c1_32 = arith.constant 1 : index
    %c0_33 = arith.constant 0 : index
    %c0_34 = arith.constant 0 : index
    %61 = vector.load %arg5[%c1_32, %c0_33, %c0_34] : memref<4x1x640xf32, #tpu.memory_space<vmem>>, vector<1x1x640xf32>
    %62 = vector.shape_cast %61 : vector<1x1x640xf32> to vector<1x640xf32>
    %63 = vector.broadcast %62 : vector<1x640xf32> to vector<8x640xf32>
    %64 = arith.addf %60, %63 : vector<8x640xf32>
    %65 = vector.extract_strided_slice %64 {offsets = [0, 0], sizes = [8, 256], strides = [1, 1]} : vector<8x640xf32> to vector<8x256xf32>
    %66 = vector.extract_strided_slice %64 {offsets = [0, 256], sizes = [8, 128], strides = [1, 1]} : vector<8x640xf32> to vector<8x128xf32>
    %67 = vector.extract_strided_slice %64 {offsets = [0, 384], sizes = [8, 128], strides = [1, 1]} : vector<8x640xf32> to vector<8x128xf32>
    %68 = vector.extract_strided_slice %64 {offsets = [0, 512], sizes = [8, 128], strides = [1, 1]} : vector<8x640xf32> to vector<8x128xf32>
    %69 = arith.truncf %57 : vector<8x128xf32> to vector<8x128xbf16>
    %c1_35 = arith.constant 1 : index
    %c0_36 = arith.constant 0 : index
    %c0_37 = arith.constant 0 : index
    %70 = vector.load %arg3[%c1_35, %c0_36, %c0_37] : memref<4x128x256xbf16, #tpu.memory_space<vmem>>, vector<1x128x256xbf16>
    %71 = vector.shape_cast %70 : vector<1x128x256xbf16> to vector<128x256xbf16>
    %cst_38 = arith.constant dense<0.000000e+00> : vector<8x256xf32>
    %72 = tpu.matmul %69, %71, %cst_38 {dimension_numbers = #tpu.dot_dimension_numbers<[1], [0], [0], [1], [0, 0, 1, 1], [], []>} : vector<8x128xbf16>, vector<128x256xbf16>, vector<8x256xf32> -> vector<8x256xf32>
    %73 = vector.broadcast %4 : vector<8x1xf32> to vector<8x256xf32>
    %74 = arith.mulf %73, %65 : vector<8x256xf32>
    %75 = arith.addf %72, %74 : vector<8x256xf32>
    %76 = arith.truncf %75 : vector<8x256xf32> to vector<8x256xbf16>
    %c1_39 = arith.constant 1 : index
    %c0_40 = arith.constant 0 : index
    %c0_41 = arith.constant 0 : index
    %77 = vector.load %arg6[%c1_39, %c0_40, %c0_41] : memref<4x256x384xbf16, #tpu.memory_space<vmem>>, vector<1x256x384xbf16>
    %78 = vector.shape_cast %77 : vector<1x256x384xbf16> to vector<256x384xbf16>
    %cst_42 = arith.constant dense<0.000000e+00> : vector<8x384xf32>
    %79 = tpu.matmul %76, %78, %cst_42 {dimension_numbers = #tpu.dot_dimension_numbers<[1], [0], [0], [1], [0, 0, 1, 1], [], []>} : vector<8x256xbf16>, vector<256x384xbf16>, vector<8x384xf32> -> vector<8x384xf32>
    %c1_43 = arith.constant 1 : index
    %c0_44 = arith.constant 0 : index
    %c0_45 = arith.constant 0 : index
    %80 = vector.load %arg7[%c1_43, %c0_44, %c0_45] : memref<4x1x384xf32, #tpu.memory_space<vmem>>, vector<1x1x384xf32>
    %81 = vector.shape_cast %80 : vector<1x1x384xf32> to vector<1x384xf32>
    %82 = vector.broadcast %81 : vector<1x384xf32> to vector<8x384xf32>
    %83 = arith.addf %79, %82 : vector<8x384xf32>
    %84 = vector.extract_strided_slice %83 {offsets = [0, 0], sizes = [8, 128], strides = [1, 1]} : vector<8x384xf32> to vector<8x128xf32>
    %85 = arith.addf %84, %66 : vector<8x128xf32>
    %86 = arith.negf %85 : vector<8x128xf32>
    %87 = math.exp %86 : vector<8x128xf32>
    %cst_46 = arith.constant 1.000000e+00 : f32
    %88 = vector.broadcast %cst_46 : f32 to vector<8x128xf32>
    %89 = arith.addf %88, %87 : vector<8x128xf32>
    %90 = arith.divf %88, %89 : vector<8x128xf32>
    %91 = vector.extract_strided_slice %83 {offsets = [0, 128], sizes = [8, 128], strides = [1, 1]} : vector<8x384xf32> to vector<8x128xf32>
    %92 = arith.addf %91, %67 : vector<8x128xf32>
    %93 = arith.negf %92 : vector<8x128xf32>
    %94 = math.exp %93 : vector<8x128xf32>
    %cst_47 = arith.constant 1.000000e+00 : f32
    %95 = vector.broadcast %cst_47 : f32 to vector<8x128xf32>
    %96 = arith.addf %95, %94 : vector<8x128xf32>
    %97 = arith.divf %95, %96 : vector<8x128xf32>
    %98 = vector.extract_strided_slice %83 {offsets = [0, 256], sizes = [8, 128], strides = [1, 1]} : vector<8x384xf32> to vector<8x128xf32>
    %99 = arith.mulf %90, %68 : vector<8x128xf32>
    %100 = arith.addf %98, %99 : vector<8x128xf32>
    %101 = math.tanh %100 : vector<8x128xf32>
    %cst_48 = arith.constant 1.000000e+00 : f32
    %102 = vector.broadcast %cst_48 : f32 to vector<8x128xf32>
    %103 = arith.subf %102, %97 : vector<8x128xf32>
    %104 = arith.mulf %103, %101 : vector<8x128xf32>
    %105 = arith.mulf %97, %55 : vector<8x128xf32>
    %106 = arith.addf %104, %105 : vector<8x128xf32>
    %c0_49 = arith.constant 0 : index
    %c0_50 = arith.constant 0 : index
    %107 = vector.load %arg8[%c0_49, %c0_50] : memref<8x256xf32, #tpu.memory_space<vmem>>, vector<8x128xf32>
    tpu.vector_store %arg8[%c0_49, %c0_50], %106 {strides = array<i32>} : memref<8x256xf32, #tpu.memory_space<vmem>>, vector<8x128xf32>,
    %c1_51 = arith.constant 1 : index
    %c0_52 = arith.constant 0 : index
    %c0_53 = arith.constant 0 : index
    %108 = vector.load %arg1[%c1_51, %c0_52, %c0_53] : memref<2x8x8xbf16, #tpu.memory_space<vmem>>, vector<1x8x8xbf16>
    %109 = vector.shape_cast %108 : vector<1x8x8xbf16> to vector<8x8xbf16>
    %c1_54 = arith.constant 1 : index
    %c0_55 = arith.constant 0 : index
    %c0_56 = arith.constant 0 : index
    %110 = vector.load %arg2[%c1_54, %c0_55, %c0_56] : memref<2x8x1xf32, #tpu.memory_space<vmem>>, vector<1x8x1xf32>
    %111 = vector.shape_cast %110 : vector<1x8x1xf32> to vector<8x1xf32>
    %112 = arith.truncf %0 : vector<8x128xf32> to vector<8x128xbf16>
    %cst_57 = arith.constant dense<0.000000e+00> : vector<8x128xf32>
    %113 = tpu.matmul %109, %112, %cst_57 {dimension_numbers = #tpu.dot_dimension_numbers<[1], [0], [0], [1], [0, 0, 1, 1], [], []>} : vector<8x8xbf16>, vector<8x128xbf16>, vector<8x128xf32> -> vector<8x128xf32>
    %c2 = arith.constant 2 : index
    %c0_58 = arith.constant 0 : index
    %c0_59 = arith.constant 0 : index
    %114 = vector.load %arg4[%c2, %c0_58, %c0_59] : memref<4x128x640xbf16, #tpu.memory_space<vmem>>, vector<1x128x640xbf16>
    %115 = vector.shape_cast %114 : vector<1x128x640xbf16> to vector<128x640xbf16>
    %cst_60 = arith.constant dense<0.000000e+00> : vector<8x640xf32>
    %116 = tpu.matmul %112, %115, %cst_60 {dimension_numbers = #tpu.dot_dimension_numbers<[1], [0], [0], [1], [0, 0, 1, 1], [], []>} : vector<8x128xbf16>, vector<128x640xbf16>, vector<8x640xf32> -> vector<8x640xf32>
    %c2_61 = arith.constant 2 : index
    %c0_62 = arith.constant 0 : index
    %c0_63 = arith.constant 0 : index
    %117 = vector.load %arg5[%c2_61, %c0_62, %c0_63] : memref<4x1x640xf32, #tpu.memory_space<vmem>>, vector<1x1x640xf32>
    %118 = vector.shape_cast %117 : vector<1x1x640xf32> to vector<1x640xf32>
    %119 = vector.broadcast %118 : vector<1x640xf32> to vector<8x640xf32>
    %120 = arith.addf %116, %119 : vector<8x640xf32>
    %121 = vector.extract_strided_slice %120 {offsets = [0, 0], sizes = [8, 256], strides = [1, 1]} : vector<8x640xf32> to vector<8x256xf32>
    %122 = vector.extract_strided_slice %120 {offsets = [0, 256], sizes = [8, 128], strides = [1, 1]} : vector<8x640xf32> to vector<8x128xf32>
    %123 = vector.extract_strided_slice %120 {offsets = [0, 384], sizes = [8, 128], strides = [1, 1]} : vector<8x640xf32> to vector<8x128xf32>
    %124 = vector.extract_strided_slice %120 {offsets = [0, 512], sizes = [8, 128], strides = [1, 1]} : vector<8x640xf32> to vector<8x128xf32>
    %125 = arith.truncf %113 : vector<8x128xf32> to vector<8x128xbf16>
    %c2_64 = arith.constant 2 : index
    %c0_65 = arith.constant 0 : index
    %c0_66 = arith.constant 0 : index
    %126 = vector.load %arg3[%c2_64, %c0_65, %c0_66] : memref<4x128x256xbf16, #tpu.memory_space<vmem>>, vector<1x128x256xbf16>
    %127 = vector.shape_cast %126 : vector<1x128x256xbf16> to vector<128x256xbf16>
    %cst_67 = arith.constant dense<0.000000e+00> : vector<8x256xf32>
    %128 = tpu.matmul %125, %127, %cst_67 {dimension_numbers = #tpu.dot_dimension_numbers<[1], [0], [0], [1], [0, 0, 1, 1], [], []>} : vector<8x128xbf16>, vector<128x256xbf16>, vector<8x256xf32> -> vector<8x256xf32>
    %129 = vector.broadcast %111 : vector<8x1xf32> to vector<8x256xf32>
    %130 = arith.mulf %129, %121 : vector<8x256xf32>
    %131 = arith.addf %128, %130 : vector<8x256xf32>
    %132 = arith.truncf %131 : vector<8x256xf32> to vector<8x256xbf16>
    %c2_68 = arith.constant 2 : index
    %c0_69 = arith.constant 0 : index
    %c0_70 = arith.constant 0 : index
    %133 = vector.load %arg6[%c2_68, %c0_69, %c0_70] : memref<4x256x384xbf16, #tpu.memory_space<vmem>>, vector<1x256x384xbf16>
    %134 = vector.shape_cast %133 : vector<1x256x384xbf16> to vector<256x384xbf16>
    %cst_71 = arith.constant dense<0.000000e+00> : vector<8x384xf32>
    %135 = tpu.matmul %132, %134, %cst_71 {dimension_numbers = #tpu.dot_dimension_numbers<[1], [0], [0], [1], [0, 0, 1, 1], [], []>} : vector<8x256xbf16>, vector<256x384xbf16>, vector<8x384xf32> -> vector<8x384xf32>
    %c2_72 = arith.constant 2 : index
    %c0_73 = arith.constant 0 : index
    %c0_74 = arith.constant 0 : index
    %136 = vector.load %arg7[%c2_72, %c0_73, %c0_74] : memref<4x1x384xf32, #tpu.memory_space<vmem>>, vector<1x1x384xf32>
    %137 = vector.shape_cast %136 : vector<1x1x384xf32> to vector<1x384xf32>
    %138 = vector.broadcast %137 : vector<1x384xf32> to vector<8x384xf32>
    %139 = arith.addf %135, %138 : vector<8x384xf32>
    %140 = vector.extract_strided_slice %139 {offsets = [0, 0], sizes = [8, 128], strides = [1, 1]} : vector<8x384xf32> to vector<8x128xf32>
    %141 = arith.addf %140, %122 : vector<8x128xf32>
    %142 = arith.negf %141 : vector<8x128xf32>
    %143 = math.exp %142 : vector<8x128xf32>
    %cst_75 = arith.constant 1.000000e+00 : f32
    %144 = vector.broadcast %cst_75 : f32 to vector<8x128xf32>
    %145 = arith.addf %144, %143 : vector<8x128xf32>
    %146 = arith.divf %144, %145 : vector<8x128xf32>
    %147 = vector.extract_strided_slice %139 {offsets = [0, 128], sizes = [8, 128], strides = [1, 1]} : vector<8x384xf32> to vector<8x128xf32>
    %148 = arith.addf %147, %123 : vector<8x128xf32>
    %149 = arith.negf %148 : vector<8x128xf32>
    %150 = math.exp %149 : vector<8x128xf32>
    %cst_76 = arith.constant 1.000000e+00 : f32
    %151 = vector.broadcast %cst_76 : f32 to vector<8x128xf32>
    %152 = arith.addf %151, %150 : vector<8x128xf32>
    %153 = arith.divf %151, %152 : vector<8x128xf32>
    %154 = vector.extract_strided_slice %139 {offsets = [0, 256], sizes = [8, 128], strides = [1, 1]} : vector<8x384xf32> to vector<8x128xf32>
    %155 = arith.mulf %146, %124 : vector<8x128xf32>
    %156 = arith.addf %154, %155 : vector<8x128xf32>
    %157 = math.tanh %156 : vector<8x128xf32>
    %cst_77 = arith.constant 1.000000e+00 : f32
    %158 = vector.broadcast %cst_77 : f32 to vector<8x128xf32>
    %159 = arith.subf %158, %153 : vector<8x128xf32>
    %160 = arith.mulf %159, %157 : vector<8x128xf32>
    %161 = arith.mulf %153, %0 : vector<8x128xf32>
    %162 = arith.addf %160, %161 : vector<8x128xf32>
    %163 = arith.truncf %162 : vector<8x128xf32> to vector<8x128xbf16>
    %cst_78 = arith.constant dense<0.000000e+00> : vector<8x128xf32>
    %164 = tpu.matmul %109, %163, %cst_78 {dimension_numbers = #tpu.dot_dimension_numbers<[1], [0], [0], [1], [0, 0, 1, 1], [], []>} : vector<8x8xbf16>, vector<8x128xbf16>, vector<8x128xf32> -> vector<8x128xf32>
    %c3 = arith.constant 3 : index
    %c0_79 = arith.constant 0 : index
    %c0_80 = arith.constant 0 : index
    %165 = vector.load %arg4[%c3, %c0_79, %c0_80] : memref<4x128x640xbf16, #tpu.memory_space<vmem>>, vector<1x128x640xbf16>
    %166 = vector.shape_cast %165 : vector<1x128x640xbf16> to vector<128x640xbf16>
    %cst_81 = arith.constant dense<0.000000e+00> : vector<8x640xf32>
    %167 = tpu.matmul %163, %166, %cst_81 {dimension_numbers = #tpu.dot_dimension_numbers<[1], [0], [0], [1], [0, 0, 1, 1], [], []>} : vector<8x128xbf16>, vector<128x640xbf16>, vector<8x640xf32> -> vector<8x640xf32>
    %c3_82 = arith.constant 3 : index
    %c0_83 = arith.constant 0 : index
    %c0_84 = arith.constant 0 : index
    %168 = vector.load %arg5[%c3_82, %c0_83, %c0_84] : memref<4x1x640xf32, #tpu.memory_space<vmem>>, vector<1x1x640xf32>
    %169 = vector.shape_cast %168 : vector<1x1x640xf32> to vector<1x640xf32>
    %170 = vector.broadcast %169 : vector<1x640xf32> to vector<8x640xf32>
    %171 = arith.addf %167, %170 : vector<8x640xf32>
    %172 = vector.extract_strided_slice %171 {offsets = [0, 0], sizes = [8, 256], strides = [1, 1]} : vector<8x640xf32> to vector<8x256xf32>
    %173 = vector.extract_strided_slice %171 {offsets = [0, 256], sizes = [8, 128], strides = [1, 1]} : vector<8x640xf32> to vector<8x128xf32>
    %174 = vector.extract_strided_slice %171 {offsets = [0, 384], sizes = [8, 128], strides = [1, 1]} : vector<8x640xf32> to vector<8x128xf32>
    %175 = vector.extract_strided_slice %171 {offsets = [0, 512], sizes = [8, 128], strides = [1, 1]} : vector<8x640xf32> to vector<8x128xf32>
    %176 = arith.truncf %164 : vector<8x128xf32> to vector<8x128xbf16>
    %c3_85 = arith.constant 3 : index
    %c0_86 = arith.constant 0 : index
    %c0_87 = arith.constant 0 : index
    %177 = vector.load %arg3[%c3_85, %c0_86, %c0_87] : memref<4x128x256xbf16, #tpu.memory_space<vmem>>, vector<1x128x256xbf16>
    %178 = vector.shape_cast %177 : vector<1x128x256xbf16> to vector<128x256xbf16>
    %cst_88 = arith.constant dense<0.000000e+00> : vector<8x256xf32>
    %179 = tpu.matmul %176, %178, %cst_88 {dimension_numbers = #tpu.dot_dimension_numbers<[1], [0], [0], [1], [0, 0, 1, 1], [], []>} : vector<8x128xbf16>, vector<128x256xbf16>, vector<8x256xf32> -> vector<8x256xf32>
    %180 = vector.broadcast %111 : vector<8x1xf32> to vector<8x256xf32>
    %181 = arith.mulf %180, %172 : vector<8x256xf32>
    %182 = arith.addf %179, %181 : vector<8x256xf32>
    %183 = arith.truncf %182 : vector<8x256xf32> to vector<8x256xbf16>
    %c3_89 = arith.constant 3 : index
    %c0_90 = arith.constant 0 : index
    %c0_91 = arith.constant 0 : index
    %184 = vector.load %arg6[%c3_89, %c0_90, %c0_91] : memref<4x256x384xbf16, #tpu.memory_space<vmem>>, vector<1x256x384xbf16>
    %185 = vector.shape_cast %184 : vector<1x256x384xbf16> to vector<256x384xbf16>
    %cst_92 = arith.constant dense<0.000000e+00> : vector<8x384xf32>
    %186 = tpu.matmul %183, %185, %cst_92 {dimension_numbers = #tpu.dot_dimension_numbers<[1], [0], [0], [1], [0, 0, 1, 1], [], []>} : vector<8x256xbf16>, vector<256x384xbf16>, vector<8x384xf32> -> vector<8x384xf32>
    %c3_93 = arith.constant 3 : index
    %c0_94 = arith.constant 0 : index
    %c0_95 = arith.constant 0 : index
    %187 = vector.load %arg7[%c3_93, %c0_94, %c0_95] : memref<4x1x384xf32, #tpu.memory_space<vmem>>, vector<1x1x384xf32>
    %188 = vector.shape_cast %187 : vector<1x1x384xf32> to vector<1x384xf32>
    %189 = vector.broadcast %188 : vector<1x384xf32> to vector<8x384xf32>
    %190 = arith.addf %186, %189 : vector<8x384xf32>
    %191 = vector.extract_strided_slice %190 {offsets = [0, 0], sizes = [8, 128], strides = [1, 1]} : vector<8x384xf32> to vector<8x128xf32>
    %192 = arith.addf %191, %173 : vector<8x128xf32>
    %193 = arith.negf %192 : vector<8x128xf32>
    %194 = math.exp %193 : vector<8x128xf32>
    %cst_96 = arith.constant 1.000000e+00 : f32
    %195 = vector.broadcast %cst_96 : f32 to vector<8x128xf32>
    %196 = arith.addf %195, %194 : vector<8x128xf32>
    %197 = arith.divf %195, %196 : vector<8x128xf32>
    %198 = vector.extract_strided_slice %190 {offsets = [0, 128], sizes = [8, 128], strides = [1, 1]} : vector<8x384xf32> to vector<8x128xf32>
    %199 = arith.addf %198, %174 : vector<8x128xf32>
    %200 = arith.negf %199 : vector<8x128xf32>
    %201 = math.exp %200 : vector<8x128xf32>
    %cst_97 = arith.constant 1.000000e+00 : f32
    %202 = vector.broadcast %cst_97 : f32 to vector<8x128xf32>
    %203 = arith.addf %202, %201 : vector<8x128xf32>
    %204 = arith.divf %202, %203 : vector<8x128xf32>
    %205 = vector.extract_strided_slice %190 {offsets = [0, 256], sizes = [8, 128], strides = [1, 1]} : vector<8x384xf32> to vector<8x128xf32>
    %206 = arith.mulf %197, %175 : vector<8x128xf32>
    %207 = arith.addf %205, %206 : vector<8x128xf32>
    %208 = math.tanh %207 : vector<8x128xf32>
    %cst_98 = arith.constant 1.000000e+00 : f32
    %209 = vector.broadcast %cst_98 : f32 to vector<8x128xf32>
    %210 = arith.subf %209, %204 : vector<8x128xf32>
    %211 = arith.mulf %210, %208 : vector<8x128xf32>
    %212 = arith.mulf %204, %162 : vector<8x128xf32>
    %213 = arith.addf %211, %212 : vector<8x128xf32>
    %c0_99 = arith.constant 0 : index
    %c128 = arith.constant 128 : index
    %214 = vector.load %arg8[%c0_99, %c128] : memref<8x256xf32, #tpu.memory_space<vmem>>, vector<8x128xf32>
    tpu.vector_store %arg8[%c0_99, %c128], %213 {strides = array<i32>} : memref<8x256xf32, #tpu.memory_space<vmem>>, vector<8x128xf32>,
    return
  }
}

</mosaic_0001>

<llo_original>
// kernel: node_emb_forward_pallas.1
$region0: #{node_emb_forward_pallas.1}
  #allocation0 [shape = 'u32[]', space=smem, size = 0x4, offset = 0x4, fixed_abs, tag = 'smem constant byte address 0x4 - core index']
  #allocation1 [shape = 'u32[72,128]{1,0:T(1,128)}', space=vmem, size = 0x9000, scoped, tag = 'internal scratch']
  %s0 = inlined_call_operand.vmem [shape: f32[8,128], index: 0, kind: input, shape index: {}]
  %s1 = inlined_call_operand.vmem [shape: bf16[2,8,8], index: 1, kind: input, shape index: {}]
  %s2 = inlined_call_operand.vmem [shape: f32[2,8,1], index: 2, kind: input, shape index: {}]
  %s3 = inlined_call_operand.hbm [shape: bf16[4,128,256], index: 3, kind: input, shape index: {}]
  %s4 = inlined_call_operand.hbm [shape: bf16[4,128,640], index: 4, kind: input, shape index: {}]
  %s5 = inlined_call_operand.vmem [shape: f32[4,1,640], index: 5, kind: input, shape index: {}]
  %s6 = inlined_call_operand.hbm [shape: bf16[4,256,384], index: 6, kind: input, shape index: {}]
  %s7 = inlined_call_operand.vmem [shape: f32[4,1,384], index: 7, kind: input, shape index: {}]
  %s8 = inlined_call_operand.vmem [shape: f32[8,256], index: 8, kind: output, shape index: {}]
  %s9 = sld [smem:[#allocation0]]
  $region54: #{node_emb_forward_pallas.1} parent=0
    _
  %s11 = ssub.s32 1, %s9
  %s12 = scalar_select 0, %s11, %s9
  $region1: #{node_emb_forward_pallas.1} parent=0
    #allocation2 [shape = 'u8[262144]{0}', space=vmem, size = 0x40000, scoped, tag = 'input window, operand 3, single buffered']
    #allocation3 [shape = 's32[1]{0}', space=sflag, size = 0x4, scoped, tag = 'scoped memory for node_emb_forward_pallas.1']
    #allocation4 [shape = 'u8[655360]{0}', space=vmem, size = 0xa0000, scoped, tag = 'input window, operand 4, single buffered']
    #allocation5 [shape = 's32[1]{0}', space=sflag, size = 0x4, scoped, tag = 'scoped memory for node_emb_forward_pallas.1']
    #allocation6 [shape = 'u8[786432]{0}', space=vmem, size = 0xc0000, scoped, tag = 'input window, operand 6, single buffered']
    %13 = vsyncpa [#allocation3], 0
    %14 = vsyncpa [#allocation5], 0
    // Predicated region
    $region2: #{node_emb_forward_pallas.1} parent=1 // pred_check
      _
    $region3: #{node_emb_forward_pallas.1} parent=1 // pred_check_branch
      %16 = sbr.rel (0) target = $region5
    $region4: #{node_emb_forward_pallas.1} parent=1 // pred_region
      _
    $region5: #{node_emb_forward_pallas.1} parent=1 // pred_fallthru
      _
    // Predicated region
    $region6: #{node_emb_forward_pallas.1} parent=1 // pred_check
      _
    $region7: #{node_emb_forward_pallas.1} parent=1 // pred_check_branch
      %18 = sbr.rel (0) target = $region9
    $region8: #{node_emb_forward_pallas.1} parent=1 // pred_region
      _
    $region9: #{node_emb_forward_pallas.1} parent=1 // pred_fallthru
      _
    // Predicated region
    $region10: #{node_emb_forward_pallas.1} parent=1 // pred_check
      _
    $region11: #{node_emb_forward_pallas.1} parent=1 // pred_check_branch
      %20 = sbr.rel (0) target = $region13
    $region12: #{node_emb_forward_pallas.1} parent=1 // pred_region
      _
    $region13: #{node_emb_forward_pallas.1} parent=1 // pred_fallthru
      _
    // Predicated region
    $region14: #{node_emb_forward_pallas.1} parent=1 // pred_check
      _
    $region15: #{node_emb_forward_pallas.1} parent=1 // pred_check_branch
      %22 = sbr.rel (0) target = $region17
    $region16: #{node_emb_forward_pallas.1} parent=1 // pred_region
      %24 = vsyncadd [#allocation3], 0
      %s25 = sshll.u32 %s3, 4
      %s26 = int_to_ptr.hbm [resolvable:$true] %s25
      %s27 = sshll.u32 [#allocation2], 4
      %s28 = int_to_ptr.vmem [resolvable:$true] %s27
      %33 = dma.hbm_to_vmem [thread:$0]  %s26, 8192, %s28, [#allocation3], 128, 128, 8
    $region17: #{node_emb_forward_pallas.1} parent=1 // pred_fallthru
      _
    // Predicated region
    $region18: #{node_emb_forward_pallas.1} parent=1 // pred_check
      _
    $region19: #{node_emb_forward_pallas.1} parent=1 // pred_check_branch
      %35 = sbr.rel (0) target = $region21
    $region20: #{node_emb_forward_pallas.1} parent=1 // pred_region
      %37 = vsyncadd [#allocation5], 0
      %s38 = sshll.u32 %s4, 4
      %s39 = int_to_ptr.hbm [resolvable:$true] %s38
      %s40 = sshll.u32 [#allocation4], 4
      %s41 = int_to_ptr.vmem [resolvable:$true] %s40
      %46 = dma.hbm_to_vmem [thread:$0]  %s39, 20480, %s41, [#allocation5], 320, 320, 20
    $region21: #{node_emb_forward_pallas.1} parent=1 // pred_fallthru
      _
    // Predicated region
    $region22: #{node_emb_forward_pallas.1} parent=1 // pred_check
      _
    $region23: #{node_emb_forward_pallas.1} parent=1 // pred_check_branch
      %48 = sbr.rel (0) target = $region25
    $region24: #{node_emb_forward_pallas.1} parent=1 // pred_region
      _
    $region25: #{node_emb_forward_pallas.1} parent=1 // pred_fallthru
      _
    // Predicated region
    $region26: #{node_emb_forward_pallas.1} parent=1 // pred_check
      _
    $region27: #{node_emb_forward_pallas.1} parent=1 // pred_check_branch
      %50 = sbr.rel (0) target = $region29
    $region28: #{node_emb_forward_pallas.1} parent=1 // pred_region
      %52 = vsyncadd [#allocation5], 0
      %s53 = sshll.u32 %s6, 4
      %s54 = int_to_ptr.hbm [resolvable:$true] %s53
      %s55 = sshll.u32 [#allocation6], 4
      %s56 = int_to_ptr.vmem [resolvable:$true] %s55
      %61 = dma.hbm_to_vmem [thread:$0]  %s54, 24576, %s56, [#allocation5], 192, 192, 12
    $region29: #{node_emb_forward_pallas.1} parent=1 // pred_fallthru
      _
    // Predicated region
    $region30: #{node_emb_forward_pallas.1} parent=1 // pred_check
      _
    $region31: #{node_emb_forward_pallas.1} parent=1 // pred_check_branch
      %63 = sbr.rel (0) target = $region33
    $region32: #{node_emb_forward_pallas.1} parent=1 // pred_region
      _
    $region33: #{node_emb_forward_pallas.1} parent=1 // pred_fallthru
      _
    // Predicated region
    $region34: #{node_emb_forward_pallas.1} parent=1 // pred_check
      _
    $region35: #{node_emb_forward_pallas.1} parent=1 // pred_check_branch
      %65 = sbr.rel (0) target = $region37
    $region36: #{node_emb_forward_pallas.1} parent=1 // pred_region
      %67 = dma.done [#allocation3], 8192
    $region37: #{node_emb_forward_pallas.1} parent=1 // pred_fallthru
      _
    // Predicated region
    $region38: #{node_emb_forward_pallas.1} parent=1 // pred_check
      _
    $region39: #{node_emb_forward_pallas.1} parent=1 // pred_check_branch
      %69 = sbr.rel (0) target = $region41
    $region40: #{node_emb_forward_pallas.1} parent=1 // pred_region
      %71 = dma.done [#allocation5], 20480
    $region41: #{node_emb_forward_pallas.1} parent=1 // pred_fallthru
      _
    // Predicated region
    $region42: #{node_emb_forward_pallas.1} parent=1 // pred_check
      _
    $region43: #{node_emb_forward_pallas.1} parent=1 // pred_check_branch
      %73 = sbr.rel (0) target = $region45
    $region44: #{node_emb_forward_pallas.1} parent=1 // pred_region
      %75 = dma.done [#allocation5], 24576
    $region45: #{node_emb_forward_pallas.1} parent=1 // pred_fallthru
      _
    %v77 = vld [vmem:[%s0] sm:$0xff]
    %v78 = vld [vmem:[%s1] sm:$0xf]
    %v79 = vld [vmem:[%s2] sm:$0xff]
    %v80 = vpack.c.bf16 %v77, %v77
    %vm81 = vcmask 64512
    %v83 = vsel %vm81, %v78, 0
    %vm85 = vcmask 1043456
    %v87 = vsel %vm85, %v80, 0
    %89 = vmatpush.bf16.msra.mxu0 0
    %90 = vmatpush.bf16.msra.mxu0 0
    %91 = vmatpush.bf16.msra.mxu0 0
    %92 = vmatpush.bf16.msra.mxu0 0
    %93 = vmatpush.bf16.msra.mxu0 0
    %94 = vmatpush.bf16.msra.mxu0 0
    %95 = vmatpush.bf16.msra.mxu0 0
    %96 = vmatpush.bf16.msra.mxu0 %v87
    %97 = vmatmul.bf16.gmra.mxu0 %v83
    %v98 = vpop.f32.mrf.mxu0
    %v99 = vadd.f32 0.0, %v98
    %v100 = vpop.f32.mrf.mxu0
    %101 = vdwg.mxu0
    %v102 = vld [vmem:[#allocation4] sm:$0xff]
    %v103 = vld [vmem:[#allocation4 + $0x8] sm:$0xff]
    %v104 = vld [vmem:[#allocation4 + $0x10] sm:$0xf]
    %v105 = vld [vmem:[#allocation4 + $0x14] sm:$0xff]
    %v106 = vld [vmem:[#allocation4 + $0x1c] sm:$0xff]
    %v107 = vld [vmem:[#allocation4 + $0x24] sm:$0xf]
    %v108 = vld [vmem:[#allocation4 + $0x28] sm:$0xff]
    %v109 = vld [vmem:[#allocation4 + $0x30] sm:$0xff]
    %v110 = vld [vmem:[#allocation4 + $0x38] sm:$0xf]
    %v111 = vld [vmem:[#allocation4 + $0x3c] sm:$0xff]
    %v112 = vld [vmem:[#allocation4 + $0x44] sm:$0xff]
    %v113 = vld [vmem:[#allocation4 + $0x4c] sm:$0xf]
    %v114 = vld [vmem:[#allocation4 + $0x50] sm:$0xff]
    %v115 = vld [vmem:[#allocation4 + $0x58] sm:$0xff]
    %v116 = vld [vmem:[#allocation4 + $0x60] sm:$0xf]
    %v117 = vld [vmem:[#allocation4 + $0x64] sm:$0xff]
    %v118 = vld [vmem:[#allocation4 + $0x6c] sm:$0xff]
    %v119 = vld [vmem:[#allocation4 + $0x74] sm:$0xf]
    %v120 = vld [vmem:[#allocation4 + $0x78] sm:$0xff]
    %v121 = vld [vmem:[#allocation4 + $0x80] sm:$0xff]
    %v122 = vld [vmem:[#allocation4 + $0x88] sm:$0xf]
    %v123 = vld [vmem:[#allocation4 + $0x8c] sm:$0xff]
    %v124 = vld [vmem:[#allocation4 + $0x94] sm:$0xff]
    %v125 = vld [vmem:[#allocation4 + $0x9c] sm:$0xf]
    %v126 = vld [vmem:[#allocation4 + $0xa0] sm:$0xff]
    %v127 = vld [vmem:[#allocation4 + $0xa8] sm:$0xff]
    %v128 = vld [vmem:[#allocation4 + $0xb0] sm:$0xf]
    %v129 = vld [vmem:[#allocation4 + $0xb4] sm:$0xff]
    %v130 = vld [vmem:[#allocation4 + $0xbc] sm:$0xff]
    %v131 = vld [vmem:[#allocation4 + $0xc4] sm:$0xf]
    %v132 = vld [vmem:[#allocation4 + $0xc8] sm:$0xff]
    %v133 = vld [vmem:[#allocation4 + $0xd0] sm:$0xff]
    %v134 = vld [vmem:[#allocation4 + $0xd8] sm:$0xf]
    %v135 = vld [vmem:[#allocation4 + $0xdc] sm:$0xff]
    %v136 = vld [vmem:[#allocation4 + $0xe4] sm:$0xff]
    %v137 = vld [vmem:[#allocation4 + $0xec] sm:$0xf]
    %v138 = vld [vmem:[#allocation4 + $0xf0] sm:$0xff]
    %v139 = vld [vmem:[#allocation4 + $0xf8] sm:$0xff]
    %v140 = vld [vmem:[#allocation4 + $0x100] sm:$0xf]
    %v141 = vld [vmem:[#allocation4 + $0x104] sm:$0xff]
    %v142 = vld [vmem:[#allocation4 + $0x10c] sm:$0xff]
    %v143 = vld [vmem:[#allocation4 + $0x114] sm:$0xf]
    %v144 = vld [vmem:[#allocation4 + $0x118] sm:$0xff]
    %v145 = vld [vmem:[#allocation4 + $0x120] sm:$0xff]
    %v146 = vld [vmem:[#allocation4 + $0x128] sm:$0xf]
    %v147 = vld [vmem:[#allocation4 + $0x12c] sm:$0xff]
    %v148 = vld [vmem:[#allocation4 + $0x134] sm:$0xff]
    %v149 = vld [vmem:[#allocation4 + $0x13c] sm:$0xf]
    %v150 = vld [vmem:[%s5] sm:$0x1f]
    %v152 = vperm.slane %v150, 0
    %v153 = vperm.slane %v150, 1
    %v154 = vperm.slane %v150, 2
    %v155 = vperm.slane %v150, 3
    %v156 = vperm.slane %v150, 4
    %v210 = vunpack.c.l.b16 %v102
    %v211 = vunpack.c.h.b16 %v102
    %v212 = vunpack.c.l.b16 %v103
    %v213 = vunpack.c.h.b16 %v103
    %v214 = vunpack.c.l.b16 %v104
    %v215 = vunpack.c.l.b16 %v105
    %v216 = vunpack.c.h.b16 %v105
    %v217 = vunpack.c.l.b16 %v106
    %v218 = vunpack.c.h.b16 %v106
    %v219 = vunpack.c.l.b16 %v107
    %v220 = vunpack.c.l.b16 %v108
    %v221 = vunpack.c.h.b16 %v108
    %v222 = vunpack.c.l.b16 %v109
    %v223 = vunpack.c.h.b16 %v109
    %v224 = vunpack.c.l.b16 %v110
    %v225 = vunpack.c.l.b16 %v111
    %v226 = vunpack.c.h.b16 %v111
    %v227 = vunpack.c.l.b16 %v112
    %v228 = vunpack.c.h.b16 %v112
    %v229 = vunpack.c.l.b16 %v113
    %v230 = vunpack.c.l.b16 %v114
    %v231 = vunpack.c.h.b16 %v114
    %v232 = vunpack.c.l.b16 %v115
    %v233 = vunpack.c.h.b16 %v115
    %v234 = vunpack.c.l.b16 %v116
    %v235 = vunpack.c.l.b16 %v117
    %v236 = vunpack.c.h.b16 %v117
    %v237 = vunpack.c.l.b16 %v118
    %v238 = vunpack.c.h.b16 %v118
    %v239 = vunpack.c.l.b16 %v119
    %v240 = vunpack.c.l.b16 %v120
    %v241 = vunpack.c.h.b16 %v120
    %v242 = vunpack.c.l.b16 %v121
    %v243 = vunpack.c.h.b16 %v121
    %v244 = vunpack.c.l.b16 %v122
    %v245 = vunpack.c.l.b16 %v123
    %v246 = vunpack.c.h.b16 %v123
    %v247 = vunpack.c.l.b16 %v124
    %v248 = vunpack.c.h.b16 %v124
    %v249 = vunpack.c.l.b16 %v125
    %v250 = vunpack.c.l.b16 %v126
    %v251 = vunpack.c.h.b16 %v126
    %v252 = vunpack.c.l.b16 %v127
    %v253 = vunpack.c.h.b16 %v127
    %v254 = vunpack.c.l.b16 %v128
    %v255 = vunpack.c.l.b16 %v129
    %v256 = vunpack.c.h.b16 %v129
    %v257 = vunpack.c.l.b16 %v130
    %v258 = vunpack.c.h.b16 %v130
    %v259 = vunpack.c.l.b16 %v131
    %v260 = vunpack.c.l.b16 %v132
    %v261 = vunpack.c.h.b16 %v132
    %v262 = vunpack.c.l.b16 %v133
    %v263 = vunpack.c.h.b16 %v133
    %v264 = vunpack.c.l.b16 %v134
    %v265 = vunpack.c.l.b16 %v135
    %v266 = vunpack.c.h.b16 %v135
    %v267 = vunpack.c.l.b16 %v136
    %v268 = vunpack.c.h.b16 %v136
    %v269 = vunpack.c.l.b16 %v137
    %v270 = vunpack.c.l.b16 %v138
    %v271 = vunpack.c.h.b16 %v138
    %v272 = vunpack.c.l.b16 %v139
    %v273 = vunpack.c.h.b16 %v139
    %v274 = vunpack.c.l.b16 %v140
    %v275 = vunpack.c.l.b16 %v141
    %v276 = vunpack.c.h.b16 %v141
    %v277 = vunpack.c.l.b16 %v142
    %v278 = vunpack.c.h.b16 %v142
    %v279 = vunpack.c.l.b16 %v143
    %v280 = vunpack.c.l.b16 %v144
    %v281 = vunpack.c.h.b16 %v144
    %v282 = vunpack.c.l.b16 %v145
    %v283 = vunpack.c.h.b16 %v145
    %v284 = vunpack.c.l.b16 %v146
    %v285 = vunpack.c.l.b16 %v147
    %v286 = vunpack.c.h.b16 %v147
    %v287 = vunpack.c.l.b16 %v148
    %v288 = vunpack.c.h.b16 %v148
    %v289 = vunpack.c.l.b16 %v149
    %v290 = vpack.c.b16 %v215, %v210
    %v291 = vpack.c.b16 %v216, %v211
    %v292 = vpack.c.b16 %v217, %v212
    %v293 = vpack.c.b16 %v218, %v213
    %v294 = vpack.c.b16 %v219, %v214
    %v295 = vpack.c.b16 %v225, %v220
    %v296 = vpack.c.b16 %v226, %v221
    %v297 = vpack.c.b16 %v227, %v222
    %v298 = vpack.c.b16 %v228, %v223
    %v299 = vpack.c.b16 %v229, %v224
    %v300 = vpack.c.b16 %v235, %v230
    %v301 = vpack.c.b16 %v236, %v231
    %v302 = vpack.c.b16 %v237, %v232
    %v303 = vpack.c.b16 %v238, %v233
    %v304 = vpack.c.b16 %v239, %v234
    %v305 = vpack.c.b16 %v245, %v240
    %v306 = vpack.c.b16 %v246, %v241
    %v307 = vpack.c.b16 %v247, %v242
    %v308 = vpack.c.b16 %v248, %v243
    %v309 = vpack.c.b16 %v249, %v244
    %v310 = vpack.c.b16 %v255, %v250
    %v311 = vpack.c.b16 %v256, %v251
    %v312 = vpack.c.b16 %v257, %v252
    %v313 = vpack.c.b16 %v258, %v253
    %v314 = vpack.c.b16 %v259, %v254
    %v315 = vpack.c.b16 %v265, %v260
    %v316 = vpack.c.b16 %v266, %v261
    %v317 = vpack.c.b16 %v267, %v262
    %v318 = vpack.c.b16 %v268, %v263
    %v319 = vpack.c.b16 %v269, %v264
    %v320 = vpack.c.b16 %v275, %v270
    %v321 = vpack.c.b16 %v276, %v271
    %v322 = vpack.c.b16 %v277, %v272
    %v323 = vpack.c.b16 %v278, %v273
    %v324 = vpack.c.b16 %v279, %v274
    %v325 = vpack.c.b16 %v285, %v280
    %v326 = vpack.c.b16 %v286, %v281
    %v327 = vpack.c.b16 %v287, %v282
    %v328 = vpack.c.b16 %v288, %v283
    %v329 = vpack.c.b16 %v289, %v284
    %370 = vmatpush.bf16.msra.mxu0 %v325
    %371 = vmatpush.bf16.msra.mxu0 %v320
    %372 = vmatpush.bf16.msra.mxu0 %v315
    %373 = vmatpush.bf16.msra.mxu0 %v310
    %374 = vmatpush.bf16.msra.mxu0 %v305
    %375 = vmatpush.bf16.msra.mxu0 %v300
    %376 = vmatpush.bf16.msra.mxu0 %v295
    %377 = vmatpush.bf16.msra.mxu0 %v290
    %378 = vmatmul.bf16.gmra.mxu0 %v80
    %v379 = vpop.f32.mrf.mxu0
    %v380 = vadd.f32 %v152, %v379
    %v381 = vpop.f32.mrf.mxu0
    %382 = vdwg.mxu0
    %383 = vmatpush.bf16.msra.mxu0 %v326
    %384 = vmatpush.bf16.msra.mxu0 %v321
    %385 = vmatpush.bf16.msra.mxu0 %v316
    %386 = vmatpush.bf16.msra.mxu0 %v311
    %387 = vmatpush.bf16.msra.mxu0 %v306
    %388 = vmatpush.bf16.msra.mxu0 %v301
    %389 = vmatpush.bf16.msra.mxu0 %v296
    %390 = vmatpush.bf16.msra.mxu0 %v291
    %391 = vmatmul.bf16.gmra.mxu0 %v80
    %v392 = vpop.f32.mrf.mxu0
    %v393 = vadd.f32 %v153, %v392
    %v394 = vpop.f32.mrf.mxu0
    %395 = vdwg.mxu0
    %396 = vmatpush.bf16.msra.mxu0 %v327
    %397 = vmatpush.bf16.msra.mxu0 %v322
    %398 = vmatpush.bf16.msra.mxu0 %v317
    %399 = vmatpush.bf16.msra.mxu0 %v312
    %400 = vmatpush.bf16.msra.mxu0 %v307
    %401 = vmatpush.bf16.msra.mxu0 %v302
    %402 = vmatpush.bf16.msra.mxu0 %v297
    %403 = vmatpush.bf16.msra.mxu0 %v292
    %404 = vmatmul.bf16.gmra.mxu0 %v80
    %v405 = vpop.f32.mrf.mxu0
    %v406 = vadd.f32 %v154, %v405
    %v407 = vpop.f32.mrf.mxu0
    %408 = vdwg.mxu0
    %409 = vmatpush.bf16.msra.mxu0 %v328
    %410 = vmatpush.bf16.msra.mxu0 %v323
    %411 = vmatpush.bf16.msra.mxu0 %v318
    %412 = vmatpush.bf16.msra.mxu0 %v313
    %413 = vmatpush.bf16.msra.mxu0 %v308
    %414 = vmatpush.bf16.msra.mxu0 %v303
    %415 = vmatpush.bf16.msra.mxu0 %v298
    %416 = vmatpush.bf16.msra.mxu0 %v293
    %417 = vmatmul.bf16.gmra.mxu0 %v80
    %v418 = vpop.f32.mrf.mxu0
    %v419 = vadd.f32 %v155, %v418
    %v420 = vpop.f32.mrf.mxu0
    %421 = vdwg.mxu0
    %422 = vmatpush.bf16.msra.mxu0 %v329
    %423 = vmatpush.bf16.msra.mxu0 %v324
    %424 = vmatpush.bf16.msra.mxu0 %v319
    %425 = vmatpush.bf16.msra.mxu0 %v314
    %426 = vmatpush.bf16.msra.mxu0 %v309
    %427 = vmatpush.bf16.msra.mxu0 %v304
    %428 = vmatpush.bf16.msra.mxu0 %v299
    %429 = vmatpush.bf16.msra.mxu0 %v294
    %430 = vmatmul.bf16.gmra.mxu0 %v80
    %v431 = vpop.f32.mrf.mxu0
    %v432 = vadd.f32 %v156, %v431
    %v433 = vpop.f32.mrf.mxu0
    %434 = vdwg.mxu0
    %v435 = vpack.c.bf16 %v99, %v99
    %v436 = vld [vmem:[#allocation2] sm:$0xff]
    %v437 = vld [vmem:[#allocation2 + $0x8] sm:$0xff]
    %v438 = vld [vmem:[#allocation2 + $0x10] sm:$0xff]
    %v439 = vld [vmem:[#allocation2 + $0x18] sm:$0xff]
    %v440 = vld [vmem:[#allocation2 + $0x20] sm:$0xff]
    %v441 = vld [vmem:[#allocation2 + $0x28] sm:$0xff]
    %v442 = vld [vmem:[#allocation2 + $0x30] sm:$0xff]
    %v443 = vld [vmem:[#allocation2 + $0x38] sm:$0xff]
    %v444 = vld [vmem:[#allocation2 + $0x40] sm:$0xff]
    %v445 = vld [vmem:[#allocation2 + $0x48] sm:$0xff]
    %v446 = vld [vmem:[#allocation2 + $0x50] sm:$0xff]
    %v447 = vld [vmem:[#allocation2 + $0x58] sm:$0xff]
    %v448 = vld [vmem:[#allocation2 + $0x60] sm:$0xff]
    %v449 = vld [vmem:[#allocation2 + $0x68] sm:$0xff]
    %v450 = vld [vmem:[#allocation2 + $0x70] sm:$0xff]
    %v451 = vld [vmem:[#allocation2 + $0x78] sm:$0xff]
    %453 = vset.pattern.permute.xlu0 0
    %454 = vperm.xlu0 %453, %v79
    %v455 = vpop.permute.xlu0 %454
    %v457 = vmul.f32 %v455, %v380
    %v458 = vmul.f32 %v455, %v393
    %v475 = vunpack.c.l.b16 %v436
    %v476 = vunpack.c.h.b16 %v436
    %v477 = vunpack.c.l.b16 %v437
    %v478 = vunpack.c.h.b16 %v437
    %v479 = vunpack.c.l.b16 %v438
    %v480 = vunpack.c.h.b16 %v438
    %v481 = vunpack.c.l.b16 %v439
    %v482 = vunpack.c.h.b16 %v439
    %v483 = vunpack.c.l.b16 %v440
    %v484 = vunpack.c.h.b16 %v440
    %v485 = vunpack.c.l.b16 %v441
    %v486 = vunpack.c.h.b16 %v441
    %v487 = vunpack.c.l.b16 %v442
    %v488 = vunpack.c.h.b16 %v442
    %v489 = vunpack.c.l.b16 %v443
    %v490 = vunpack.c.h.b16 %v443
    %v491 = vunpack.c.l.b16 %v444
    %v492 = vunpack.c.h.b16 %v444
    %v493 = vunpack.c.l.b16 %v445
    %v494 = vunpack.c.h.b16 %v445
    %v495 = vunpack.c.l.b16 %v446
    %v496 = vunpack.c.h.b16 %v446
    %v497 = vunpack.c.l.b16 %v447
    %v498 = vunpack.c.h.b16 %v447
    %v499 = vunpack.c.l.b16 %v448
    %v500 = vunpack.c.h.b16 %v448
    %v501 = vunpack.c.l.b16 %v449
    %v502 = vunpack.c.h.b16 %v449
    %v503 = vunpack.c.l.b16 %v450
    %v504 = vunpack.c.h.b16 %v450
    %v505 = vunpack.c.l.b16 %v451
    %v506 = vunpack.c.h.b16 %v451
    %v507 = vpack.c.b16 %v477, %v475
    %v508 = vpack.c.b16 %v478, %v476
    %v509 = vpack.c.b16 %v481, %v479
    %v510 = vpack.c.b16 %v482, %v480
    %v511 = vpack.c.b16 %v485, %v483
    %v512 = vpack.c.b16 %v486, %v484
    %v513 = vpack.c.b16 %v489, %v487
    %v514 = vpack.c.b16 %v490, %v488
    %v515 = vpack.c.b16 %v493, %v491
    %v516 = vpack.c.b16 %v494, %v492
    %v517 = vpack.c.b16 %v497, %v495
    %v518 = vpack.c.b16 %v498, %v496
    %v519 = vpack.c.b16 %v501, %v499
    %v520 = vpack.c.b16 %v502, %v500
    %v521 = vpack.c.b16 %v505, %v503
    %v522 = vpack.c.b16 %v506, %v504
    %539 = vmatpush.bf16.msra.mxu0 %v521
    %540 = vmatpush.bf16.msra.mxu0 %v519
    %541 = vmatpush.bf16.msra.mxu0 %v517
    %542 = vmatpush.bf16.msra.mxu0 %v515
    %543 = vmatpush.bf16.msra.mxu0 %v513
    %544 = vmatpush.bf16.msra.mxu0 %v511
    %545 = vmatpush.bf16.msra.mxu0 %v509
    %546 = vmatpush.bf16.msra.mxu0 %v507
    %547 = vmatmul.bf16.gmra.mxu0 %v435
    %v548 = vpop.f32.mrf.mxu0
    %v549 = vadd.f32 %v457, %v548
    %v550 = vpop.f32.mrf.mxu0
    %551 = vdwg.mxu0
    %552 = vmatpush.bf16.msra.mxu0 %v522
    %553 = vmatpush.bf16.msra.mxu0 %v520
    %554 = vmatpush.bf16.msra.mxu0 %v518
    %555 = vmatpush.bf16.msra.mxu0 %v516
    %556 = vmatpush.bf16.msra.mxu0 %v514
    %557 = vmatpush.bf16.msra.mxu0 %v512
    %558 = vmatpush.bf16.msra.mxu0 %v510
    %559 = vmatpush.bf16.msra.mxu0 %v508
    %560 = vmatmul.bf16.gmra.mxu0 %v435
    %v561 = vpop.f32.mrf.mxu0
    %v562 = vadd.f32 %v458, %v561
    %v563 = vpop.f32.mrf.mxu0
    %564 = vdwg.mxu0
    %v565 = vpack.c.bf16 %v549, %v549
    %v566 = vpack.c.bf16 %v562, %v562
    %v567 = vld [vmem:[#allocation6] sm:$0xff]
    %v568 = vld [vmem:[#allocation6 + $0x8] sm:$0xf]
    %v569 = vld [vmem:[#allocation6 + $0xc] sm:$0xff]
    %v570 = vld [vmem:[#allocation6 + $0x14] sm:$0xf]
    %v571 = vld [vmem:[#allocation6 + $0x18] sm:$0xff]
    %v572 = vld [vmem:[#allocation6 + $0x20] sm:$0xf]
    %v573 = vld [vmem:[#allocation6 + $0x24] sm:$0xff]
    %v574 = vld [vmem:[#allocation6 + $0x2c] sm:$0xf]
    %v575 = vld [vmem:[#allocation6 + $0x30] sm:$0xff]
    %v576 = vld [vmem:[#allocation6 + $0x38] sm:$0xf]
    %v577 = vld [vmem:[#allocation6 + $0x3c] sm:$0xff]
    %v578 = vld [vmem:[#allocation6 + $0x44] sm:$0xf]
    %v579 = vld [vmem:[#allocation6 + $0x48] sm:$0xff]
    %v580 = vld [vmem:[#allocation6 + $0x50] sm:$0xf]
    %v581 = vld [vmem:[#allocation6 + $0x54] sm:$0xff]
    %v582 = vld [vmem:[#allocation6 + $0x5c] sm:$0xf]
    %v583 = vld [vmem:[#allocation6 + $0x60] sm:$0xff]
    %v584 = vld [vmem:[#allocation6 + $0x68] sm:$0xf]
    %v585 = vld [vmem:[#allocation6 + $0x6c] sm:$0xff]
    %v586 = vld [vmem:[#allocation6 + $0x74] sm:$0xf]
    %v587 = vld [vmem:[#allocation6 + $0x78] sm:$0xff]
    %v588 = vld [vmem:[#allocation6 + $0x80] sm:$0xf]
    %v589 = vld [vmem:[#allocation6 + $0x84] sm:$0xff]
    %v590 = vld [vmem:[#allocation6 + $0x8c] sm:$0xf]
    %v591 = vld [vmem:[#allocation6 + $0x90] sm:$0xff]
    %v592 = vld [vmem:[#allocation6 + $0x98] sm:$0xf]
    %v593 = vld [vmem:[#allocation6 + $0x9c] sm:$0xff]
    %v594 = vld [vmem:[#allocation6 + $0xa4] sm:$0xf]
    %v595 = vld [vmem:[#allocation6 + $0xa8] sm:$0xff]
    %v596 = vld [vmem:[#allocation6 + $0xb0] sm:$0xf]
    %v597 = vld [vmem:[#allocation6 + $0xb4] sm:$0xff]
    %v598 = vld [vmem:[#allocation6 + $0xbc] sm:$0xf]
    %v599 = vld [vmem:[#allocation6 + $0xc0] sm:$0xff]
    %v600 = vld [vmem:[#allocation6 + $0xc8] sm:$0xf]
    %v601 = vld [vmem:[#allocation6 + $0xcc] sm:$0xff]
    %v602 = vld [vmem:[#allocation6 + $0xd4] sm:$0xf]
    %v603 = vld [vmem:[#allocation6 + $0xd8] sm:$0xff]
    %v604 = vld [vmem:[#allocation6 + $0xe0] sm:$0xf]
    %v605 = vld [vmem:[#allocation6 + $0xe4] sm:$0xff]
    %v606 = vld [vmem:[#allocation6 + $0xec] sm:$0xf]
    %v607 = vld [vmem:[#allocation6 + $0xf0] sm:$0xff]
    %v608 = vld [vmem:[#allocation6 + $0xf8] sm:$0xf]
    %v609 = vld [vmem:[#allocation6 + $0xfc] sm:$0xff]
    %v610 = vld [vmem:[#allocation6 + $0x104] sm:$0xf]
    %v611 = vld [vmem:[#allocation6 + $0x108] sm:$0xff]
    %v612 = vld [vmem:[#allocation6 + $0x110] sm:$0xf]
    %v613 = vld [vmem:[#allocation6 + $0x114] sm:$0xff]
    %v614 = vld [vmem:[#allocation6 + $0x11c] sm:$0xf]
    %v615 = vld [vmem:[#allocation6 + $0x120] sm:$0xff]
    %v616 = vld [vmem:[#allocation6 + $0x128] sm:$0xf]
    %v617 = vld [vmem:[#allocation6 + $0x12c] sm:$0xff]
    %v618 = vld [vmem:[#allocation6 + $0x134] sm:$0xf]
    %v619 = vld [vmem:[#allocation6 + $0x138] sm:$0xff]
    %v620 = vld [vmem:[#allocation6 + $0x140] sm:$0xf]
    %v621 = vld [vmem:[#allocation6 + $0x144] sm:$0xff]
    %v622 = vld [vmem:[#allocation6 + $0x14c] sm:$0xf]
    %v623 = vld [vmem:[#allocation6 + $0x150] sm:$0xff]
    %v624 = vld [vmem:[#allocation6 + $0x158] sm:$0xf]
    %v625 = vld [vmem:[#allocation6 + $0x15c] sm:$0xff]
    %v626 = vld [vmem:[#allocation6 + $0x164] sm:$0xf]
    %v627 = vld [vmem:[#allocation6 + $0x168] sm:$0xff]
    %v628 = vld [vmem:[#allocation6 + $0x170] sm:$0xf]
    %v629 = vld [vmem:[#allocation6 + $0x174] sm:$0xff]
    %v630 = vld [vmem:[#allocation6 + $0x17c] sm:$0xf]
    %v631 = vld [vmem:[%s7] sm:$0x7]
    %v633 = vperm.slane %v631, 0
    %v634 = vperm.slane %v631, 1
    %v635 = vperm.slane %v631, 2
    %v703 = vunpack.c.l.b16 %v567
    %v704 = vunpack.c.h.b16 %v567
    %v705 = vunpack.c.l.b16 %v568
    %v706 = vunpack.c.l.b16 %v569
    %v707 = vunpack.c.h.b16 %v569
    %v708 = vunpack.c.l.b16 %v570
    %v709 = vunpack.c.l.b16 %v571
    %v710 = vunpack.c.h.b16 %v571
    %v711 = vunpack.c.l.b16 %v572
    %v712 = vunpack.c.l.b16 %v573
    %v713 = vunpack.c.h.b16 %v573
    %v714 = vunpack.c.l.b16 %v574
    %v715 = vunpack.c.l.b16 %v575
    %v716 = vunpack.c.h.b16 %v575
    %v717 = vunpack.c.l.b16 %v576
    %v718 = vunpack.c.l.b16 %v577
    %v719 = vunpack.c.h.b16 %v577
    %v720 = vunpack.c.l.b16 %v578
    %v721 = vunpack.c.l.b16 %v579
    %v722 = vunpack.c.h.b16 %v579
    %v723 = vunpack.c.l.b16 %v580
    %v724 = vunpack.c.l.b16 %v581
    %v725 = vunpack.c.h.b16 %v581
    %v726 = vunpack.c.l.b16 %v582
    %v727 = vunpack.c.l.b16 %v583
    %v728 = vunpack.c.h.b16 %v583
    %v729 = vunpack.c.l.b16 %v584
    %v730 = vunpack.c.l.b16 %v585
    %v731 = vunpack.c.h.b16 %v585
    %v732 = vunpack.c.l.b16 %v586
    %v733 = vunpack.c.l.b16 %v587
    %v734 = vunpack.c.h.b16 %v587
    %v735 = vunpack.c.l.b16 %v588
    %v736 = vunpack.c.l.b16 %v589
    %v737 = vunpack.c.h.b16 %v589
    %v738 = vunpack.c.l.b16 %v590
    %v739 = vunpack.c.l.b16 %v591
    %v740 = vunpack.c.h.b16 %v591
    %v741 = vunpack.c.l.b16 %v592
    %v742 = vunpack.c.l.b16 %v593
    %v743 = vunpack.c.h.b16 %v593
    %v744 = vunpack.c.l.b16 %v594
    %v745 = vunpack.c.l.b16 %v595
    %v746 = vunpack.c.h.b16 %v595
    %v747 = vunpack.c.l.b16 %v596
    %v748 = vunpack.c.l.b16 %v597
    %v749 = vunpack.c.h.b16 %v597
    %v750 = vunpack.c.l.b16 %v598
    %v751 = vunpack.c.l.b16 %v599
    %v752 = vunpack.c.h.b16 %v599
    %v753 = vunpack.c.l.b16 %v600
    %v754 = vunpack.c.l.b16 %v601
    %v755 = vunpack.c.h.b16 %v601
    %v756 = vunpack.c.l.b16 %v602
    %v757 = vunpack.c.l.b16 %v603
    %v758 = vunpack.c.h.b16 %v603
    %v759 = vunpack.c.l.b16 %v604
    %v760 = vunpack.c.l.b16 %v605
    %v761 = vunpack.c.h.b16 %v605
    %v762 = vunpack.c.l.b16 %v606
    %v763 = vunpack.c.l.b16 %v607
    %v764 = vunpack.c.h.b16 %v607
    %v765 = vunpack.c.l.b16 %v608
    %v766 = vunpack.c.l.b16 %v609
    %v767 = vunpack.c.h.b16 %v609
    %v768 = vunpack.c.l.b16 %v610
    %v769 = vunpack.c.l.b16 %v611
    %v770 = vunpack.c.h.b16 %v611
    %v771 = vunpack.c.l.b16 %v612
    %v772 = vunpack.c.l.b16 %v613
    %v773 = vunpack.c.h.b16 %v613
    %v774 = vunpack.c.l.b16 %v614
    %v775 = vunpack.c.l.b16 %v615
    %v776 = vunpack.c.h.b16 %v615
    %v777 = vunpack.c.l.b16 %v616
    %v778 = vunpack.c.l.b16 %v617
    %v779 = vunpack.c.h.b16 %v617
    %v780 = vunpack.c.l.b16 %v618
    %v781 = vunpack.c.l.b16 %v619
    %v782 = vunpack.c.h.b16 %v619
    %v783 = vunpack.c.l.b16 %v620
    %v784 = vunpack.c.l.b16 %v621
    %v785 = vunpack.c.h.b16 %v621
    %v786 = vunpack.c.l.b16 %v622
    %v787 = vunpack.c.l.b16 %v623
    %v788 = vunpack.c.h.b16 %v623
    %v789 = vunpack.c.l.b16 %v624
    %v790 = vunpack.c.l.b16 %v625
    %v791 = vunpack.c.h.b16 %v625
    %v792 = vunpack.c.l.b16 %v626
    %v793 = vunpack.c.l.b16 %v627
    %v794 = vunpack.c.h.b16 %v627
    %v795 = vunpack.c.l.b16 %v628
    %v796 = vunpack.c.l.b16 %v629
    %v797 = vunpack.c.h.b16 %v629
    %v798 = vunpack.c.l.b16 %v630
    %v799 = vpack.c.b16 %v706, %v703
    %v800 = vpack.c.b16 %v707, %v704
    %v801 = vpack.c.b16 %v708, %v705
    %v802 = vpack.c.b16 %v712, %v709
    %v803 = vpack.c.b16 %v713, %v710
    %v804 = vpack.c.b16 %v714, %v711
    %v805 = vpack.c.b16 %v718, %v715
    %v806 = vpack.c.b16 %v719, %v716
    %v807 = vpack.c.b16 %v720, %v717
    %v808 = vpack.c.b16 %v724, %v721
    %v809 = vpack.c.b16 %v725, %v722
    %v810 = vpack.c.b16 %v726, %v723
    %v811 = vpack.c.b16 %v730, %v727
    %v812 = vpack.c.b16 %v731, %v728
    %v813 = vpack.c.b16 %v732, %v729
    %v814 = vpack.c.b16 %v736, %v733
    %v815 = vpack.c.b16 %v737, %v734
    %v816 = vpack.c.b16 %v738, %v735
    %v817 = vpack.c.b16 %v742, %v739
    %v818 = vpack.c.b16 %v743, %v740
    %v819 = vpack.c.b16 %v744, %v741
    %v820 = vpack.c.b16 %v748, %v745
    %v821 = vpack.c.b16 %v749, %v746
    %v822 = vpack.c.b16 %v750, %v747
    %v823 = vpack.c.b16 %v754, %v751
    %v824 = vpack.c.b16 %v755, %v752
    %v825 = vpack.c.b16 %v756, %v753
    %v826 = vpack.c.b16 %v760, %v757
    %v827 = vpack.c.b16 %v761, %v758
    %v828 = vpack.c.b16 %v762, %v759
    %v829 = vpack.c.b16 %v766, %v763
    %v830 = vpack.c.b16 %v767, %v764
    %v831 = vpack.c.b16 %v768, %v765
    %v832 = vpack.c.b16 %v772, %v769
    %v833 = vpack.c.b16 %v773, %v770
    %v834 = vpack.c.b16 %v774, %v771
    %v835 = vpack.c.b16 %v778, %v775
    %v836 = vpack.c.b16 %v779, %v776
    %v837 = vpack.c.b16 %v780, %v777
    %v838 = vpack.c.b16 %v784, %v781
    %v839 = vpack.c.b16 %v785, %v782
    %v840 = vpack.c.b16 %v786, %v783
    %v841 = vpack.c.b16 %v790, %v787
    %v842 = vpack.c.b16 %v791, %v788
    %v843 = vpack.c.b16 %v792, %v789
    %v844 = vpack.c.b16 %v796, %v793
    %v845 = vpack.c.b16 %v797, %v794
    %v846 = vpack.c.b16 %v798, %v795
    %895 = vmatpush.bf16.msra.mxu0 %v820
    %896 = vmatpush.bf16.msra.mxu0 %v817
    %897 = vmatpush.bf16.msra.mxu0 %v814
    %898 = vmatpush.bf16.msra.mxu0 %v811
    %899 = vmatpush.bf16.msra.mxu0 %v808
    %900 = vmatpush.bf16.msra.mxu0 %v805
    %901 = vmatpush.bf16.msra.mxu0 %v802
    %902 = vmatpush.bf16.msra.mxu0 %v799
    %903 = vmatmul.bf16.gmra.mxu0 %v565
    %v904 = vpop.f32.mrf.mxu0
    %v905 = vadd.f32 %v633, %v904
    %v906 = vpop.f32.mrf.mxu0
    %907 = vdwg.mxu0
    %908 = vmatpush.bf16.msra.mxu0 %v844
    %909 = vmatpush.bf16.msra.mxu0 %v841
    %910 = vmatpush.bf16.msra.mxu0 %v838
    %911 = vmatpush.bf16.msra.mxu0 %v835
    %912 = vmatpush.bf16.msra.mxu0 %v832
    %913 = vmatpush.bf16.msra.mxu0 %v829
    %914 = vmatpush.bf16.msra.mxu0 %v826
    %915 = vmatpush.bf16.msra.mxu0 %v823
    %916 = vmatmul.bf16.gmra.mxu0 %v566
    %v917 = vpop.f32.mrf.mxu0
    %v918 = vadd.f32 %v905, %v917
    %v919 = vpop.f32.mrf.mxu0
    %920 = vdwg.mxu0
    %921 = vmatpush.bf16.msra.mxu0 %v821
    %922 = vmatpush.bf16.msra.mxu0 %v818
    %923 = vmatpush.bf16.msra.mxu0 %v815
    %924 = vmatpush.bf16.msra.mxu0 %v812
    %925 = vmatpush.bf16.msra.mxu0 %v809
    %926 = vmatpush.bf16.msra.mxu0 %v806
    %927 = vmatpush.bf16.msra.mxu0 %v803
    %928 = vmatpush.bf16.msra.mxu0 %v800
    %929 = vmatmul.bf16.gmra.mxu0 %v565
    %v930 = vpop.f32.mrf.mxu0
    %v931 = vadd.f32 %v634, %v930
    %v932 = vpop.f32.mrf.mxu0
    %933 = vdwg.mxu0
    %934 = vmatpush.bf16.msra.mxu0 %v845
    %935 = vmatpush.bf16.msra.mxu0 %v842
    %936 = vmatpush.bf16.msra.mxu0 %v839
    %937 = vmatpush.bf16.msra.mxu0 %v836
    %938 = vmatpush.bf16.msra.mxu0 %v833
    %939 = vmatpush.bf16.msra.mxu0 %v830
    %940 = vmatpush.bf16.msra.mxu0 %v827
    %941 = vmatpush.bf16.msra.mxu0 %v824
    %942 = vmatmul.bf16.gmra.mxu0 %v566
    %v943 = vpop.f32.mrf.mxu0
    %v944 = vadd.f32 %v931, %v943
    %v945 = vpop.f32.mrf.mxu0
    %946 = vdwg.mxu0
    %947 = vmatpush.bf16.msra.mxu0 %v822
    %948 = vmatpush.bf16.msra.mxu0 %v819
    %949 = vmatpush.bf16.msra.mxu0 %v816
    %950 = vmatpush.bf16.msra.mxu0 %v813
    %951 = vmatpush.bf16.msra.mxu0 %v810
    %952 = vmatpush.bf16.msra.mxu0 %v807
    %953 = vmatpush.bf16.msra.mxu0 %v804
    %954 = vmatpush.bf16.msra.mxu0 %v801
    %955 = vmatmul.bf16.gmra.mxu0 %v565
    %v956 = vpop.f32.mrf.mxu0
    %v957 = vadd.f32 %v635, %v956
    %v958 = vpop.f32.mrf.mxu0
    %959 = vdwg.mxu0
    %960 = vmatpush.bf16.msra.mxu0 %v846
    %961 = vmatpush.bf16.msra.mxu0 %v843
    %962 = vmatpush.bf16.msra.mxu0 %v840
    %963 = vmatpush.bf16.msra.mxu0 %v837
    %964 = vmatpush.bf16.msra.mxu0 %v834
    %965 = vmatpush.bf16.msra.mxu0 %v831
    %966 = vmatpush.bf16.msra.mxu0 %v828
    %967 = vmatpush.bf16.msra.mxu0 %v825
    %968 = vmatmul.bf16.gmra.mxu0 %v566
    %v969 = vpop.f32.mrf.mxu0
    %v970 = vadd.f32 %v957, %v969
    %v971 = vpop.f32.mrf.mxu0
    %972 = vdwg.mxu0
    %v973 = vadd.f32 %v918, %v406
    %v974 = vxor.u32 %v973, 2147483648
    %v975 = vmul.f32 %v974, 1.442695
    %v976 = vpow.pop %v975
    %v977 = vadd.f32 %v976, 1.0
    %v978 = vrcp.pop %v977
    %v979 = vmul.f32 %v977, %v978
    %v980 = vsub.f32 1.0, %v979
    %v981 = vmul.f32 %v978, %v980
    %v982 = vadd.f32 %v978, %v981
    %vm983 = vweird.f32 %v977
    %vm984 = vweird.f32 %v978
    %vm985 = vmor %vm983, %vm984
    %v986 = vsel %vm985, %v978, %v982
    %v987 = vand.u32 2147483647, %v977
    %vm988 = vcmp.eq.f32.partialorder %v987, 8.507059e+37
    %v989 = vand.u32 %v977, 2147483648
    %v990 = vor.u32 1.1754944e-38, %v989
    %v991 = vsel %vm988, %v990, %v986
    %v992 = vmul.f32 1.0, %v991
    %v993 = vadd.f32 %v944, %v419
    %v994 = vxor.u32 %v993, 2147483648
    %v995 = vmul.f32 %v994, 1.442695
    %v996 = vpow.pop %v995
    %v997 = vadd.f32 %v996, 1.0
    %v998 = vrcp.pop %v997
    %v999 = vmul.f32 %v997, %v998
    %v1000 = vsub.f32 1.0, %v999
    %v1001 = vmul.f32 %v998, %v1000
    %v1002 = vadd.f32 %v998, %v1001
    %vm1003 = vweird.f32 %v997
    %vm1004 = vweird.f32 %v998
    %vm1005 = vmor %vm1003, %vm1004
    %v1006 = vsel %vm1005, %v998, %v1002
    %v1007 = vand.u32 2147483647, %v997
    %vm1008 = vcmp.eq.f32.partialorder %v1007, 8.507059e+37
    %v1009 = vand.u32 %v997, 2147483648
    %v1010 = vor.u32 1.1754944e-38, %v1009
    %v1011 = vsel %vm1008, %v1010, %v1006
    %v1012 = vmul.f32 1.0, %v1011
    %v1013 = vmul.f32 %v992, %v432
    %v1014 = vadd.f32 %v970, %v1013
    %v1015 = vtanh.pop %v1014
    %v1016 = vsub.f32 1.0, %v1012
    %v1017 = vmul.f32 %v1016, %v1015
    %v1018 = vmul.f32 %v1012, %v77
    %v1019 = vadd.f32 %v1017, %v1018
    %v1020 = vpack.c.bf16 %v1019, %v1019
    %v1022 = vsel %vm85, %v1020, 0
    %1024 = vmatpush.bf16.msra.mxu0 0
    %1025 = vmatpush.bf16.msra.mxu0 0
    %1026 = vmatpush.bf16.msra.mxu0 0
    %1027 = vmatpush.bf16.msra.mxu0 0
    %1028 = vmatpush.bf16.msra.mxu0 0
    %1029 = vmatpush.bf16.msra.mxu0 0
    %1030 = vmatpush.bf16.msra.mxu0 0
    %1031 = vmatpush.bf16.msra.mxu0 %v1022
    %1032 = vmatmul.bf16.gmra.mxu0 %v83
    %v1033 = vpop.f32.mrf.mxu0
    %v1034 = vadd.f32 0.0, %v1033
    %v1035 = vpop.f32.mrf.mxu0
    %1036 = vdwg.mxu0
    %s1037 = scalar_lea.vmem [#allocation4], 320
    %v1038 = vld [vmem:[%s1037] sm:$0xff]
    %v1039 = vld [vmem:[%s1037 + $0x8] sm:$0xff]
    %v1040 = vld [vmem:[%s1037 + $0x10] sm:$0xf]
    %v1041 = vld [vmem:[%s1037 + $0x14] sm:$0xff]
    %v1042 = vld [vmem:[%s1037 + $0x1c] sm:$0xff]
    %v1043 = vld [vmem:[%s1037 + $0x24] sm:$0xf]
    %v1044 = vld [vmem:[%s1037 + $0x28] sm:$0xff]
    %v1045 = vld [vmem:[%s1037 + $0x30] sm:$0xff]
    %v1046 = vld [vmem:[%s1037 + $0x38] sm:$0xf]
    %v1047 = vld [vmem:[%s1037 + $0x3c] sm:$0xff]
    %v1048 = vld [vmem:[%s1037 + $0x44] sm:$0xff]
    %v1049 = vld [vmem:[%s1037 + $0x4c] sm:$0xf]
    %v1050 = vld [vmem:[%s1037 + $0x50] sm:$0xff]
    %v1051 = vld [vmem:[%s1037 + $0x58] sm:$0xff]
    %v1052 = vld [vmem:[%s1037 + $0x60] sm:$0xf]
    %v1053 = vld [vmem:[%s1037 + $0x64] sm:$0xff]
    %v1054 = vld [vmem:[%s1037 + $0x6c] sm:$0xff]
    %v1055 = vld [vmem:[%s1037 + $0x74] sm:$0xf]
    %v1056 = vld [vmem:[%s1037 + $0x78] sm:$0xff]
    %v1057 = vld [vmem:[%s1037 + $0x80] sm:$0xff]
    %v1058 = vld [vmem:[%s1037 + $0x88] sm:$0xf]
    %v1059 = vld [vmem:[%s1037 + $0x8c] sm:$0xff]
    %v1060 = vld [vmem:[%s1037 + $0x94] sm:$0xff]
    %v1061 = vld [vmem:[%s1037 + $0x9c] sm:$0xf]
    %v1062 = vld [vmem:[%s1037 + $0xa0] sm:$0xff]
    %v1063 = vld [vmem:[%s1037 + $0xa8] sm:$0xff]
    %v1064 = vld [vmem:[%s1037 + $0xb0] sm:$0xf]
    %v1065 = vld [vmem:[%s1037 + $0xb4] sm:$0xff]
    %v1066 = vld [vmem:[%s1037 + $0xbc] sm:$0xff]
    %v1067 = vld [vmem:[%s1037 + $0xc4] sm:$0xf]
    %v1068 = vld [vmem:[%s1037 + $0xc8] sm:$0xff]
    %v1069 = vld [vmem:[%s1037 + $0xd0] sm:$0xff]
    %v1070 = vld [vmem:[%s1037 + $0xd8] sm:$0xf]
    %v1071 = vld [vmem:[%s1037 + $0xdc] sm:$0xff]
    %v1072 = vld [vmem:[%s1037 + $0xe4] sm:$0xff]
    %v1073 = vld [vmem:[%s1037 + $0xec] sm:$0xf]
    %v1074 = vld [vmem:[%s1037 + $0xf0] sm:$0xff]
    %v1075 = vld [vmem:[%s1037 + $0xf8] sm:$0xff]
    %v1076 = vld [vmem:[%s1037 + $0x100] sm:$0xf]
    %v1077 = vld [vmem:[%s1037 + $0x104] sm:$0xff]
    %v1078 = vld [vmem:[%s1037 + $0x10c] sm:$0xff]
    %v1079 = vld [vmem:[%s1037 + $0x114] sm:$0xf]
    %v1080 = vld [vmem:[%s1037 + $0x118] sm:$0xff]
    %v1081 = vld [vmem:[%s1037 + $0x120] sm:$0xff]
    %v1082 = vld [vmem:[%s1037 + $0x128] sm:$0xf]
    %v1083 = vld [vmem:[%s1037 + $0x12c] sm:$0xff]
    %v1084 = vld [vmem:[%s1037 + $0x134] sm:$0xff]
    %v1085 = vld [vmem:[%s1037 + $0x13c] sm:$0xf]
    %s1086 = scalar_lea.vmem %s5, 5
    %v1087 = vld [vmem:[%s1086] sm:$0x1f]
    %v1089 = vperm.slane %v1087, 0
    %v1090 = vperm.slane %v1087, 1
    %v1091 = vperm.slane %v1087, 2
    %v1092 = vperm.slane %v1087, 3
    %v1093 = vperm.slane %v1087, 4
    %v1147 = vunpack.c.l.b16 %v1038
    %v1148 = vunpack.c.h.b16 %v1038
    %v1149 = vunpack.c.l.b16 %v1039
    %v1150 = vunpack.c.h.b16 %v1039
    %v1151 = vunpack.c.l.b16 %v1040
    %v1152 = vunpack.c.l.b16 %v1041
    %v1153 = vunpack.c.h.b16 %v1041
    %v1154 = vunpack.c.l.b16 %v1042
    %v1155 = vunpack.c.h.b16 %v1042
    %v1156 = vunpack.c.l.b16 %v1043
    %v1157 = vunpack.c.l.b16 %v1044
    %v1158 = vunpack.c.h.b16 %v1044
    %v1159 = vunpack.c.l.b16 %v1045
    %v1160 = vunpack.c.h.b16 %v1045
    %v1161 = vunpack.c.l.b16 %v1046
    %v1162 = vunpack.c.l.b16 %v1047
    %v1163 = vunpack.c.h.b16 %v1047
    %v1164 = vunpack.c.l.b16 %v1048
    %v1165 = vunpack.c.h.b16 %v1048
    %v1166 = vunpack.c.l.b16 %v1049
    %v1167 = vunpack.c.l.b16 %v1050
    %v1168 = vunpack.c.h.b16 %v1050
    %v1169 = vunpack.c.l.b16 %v1051
    %v1170 = vunpack.c.h.b16 %v1051
    %v1171 = vunpack.c.l.b16 %v1052
    %v1172 = vunpack.c.l.b16 %v1053
    %v1173 = vunpack.c.h.b16 %v1053
    %v1174 = vunpack.c.l.b16 %v1054
    %v1175 = vunpack.c.h.b16 %v1054
    %v1176 = vunpack.c.l.b16 %v1055
    %v1177 = vunpack.c.l.b16 %v1056
    %v1178 = vunpack.c.h.b16 %v1056
    %v1179 = vunpack.c.l.b16 %v1057
    %v1180 = vunpack.c.h.b16 %v1057
    %v1181 = vunpack.c.l.b16 %v1058
    %v1182 = vunpack.c.l.b16 %v1059
    %v1183 = vunpack.c.h.b16 %v1059
    %v1184 = vunpack.c.l.b16 %v1060
    %v1185 = vunpack.c.h.b16 %v1060
    %v1186 = vunpack.c.l.b16 %v1061
    %v1187 = vunpack.c.l.b16 %v1062
    %v1188 = vunpack.c.h.b16 %v1062
    %v1189 = vunpack.c.l.b16 %v1063
    %v1190 = vunpack.c.h.b16 %v1063
    %v1191 = vunpack.c.l.b16 %v1064
    %v1192 = vunpack.c.l.b16 %v1065
    %v1193 = vunpack.c.h.b16 %v1065
    %v1194 = vunpack.c.l.b16 %v1066
    %v1195 = vunpack.c.h.b16 %v1066
    %v1196 = vunpack.c.l.b16 %v1067
    %v1197 = vunpack.c.l.b16 %v1068
    %v1198 = vunpack.c.h.b16 %v1068
    %v1199 = vunpack.c.l.b16 %v1069
    %v1200 = vunpack.c.h.b16 %v1069
    %v1201 = vunpack.c.l.b16 %v1070
    %v1202 = vunpack.c.l.b16 %v1071
    %v1203 = vunpack.c.h.b16 %v1071
    %v1204 = vunpack.c.l.b16 %v1072
    %v1205 = vunpack.c.h.b16 %v1072
    %v1206 = vunpack.c.l.b16 %v1073
    %v1207 = vunpack.c.l.b16 %v1074
    %v1208 = vunpack.c.h.b16 %v1074
    %v1209 = vunpack.c.l.b16 %v1075
    %v1210 = vunpack.c.h.b16 %v1075
    %v1211 = vunpack.c.l.b16 %v1076
    %v1212 = vunpack.c.l.b16 %v1077
    %v1213 = vunpack.c.h.b16 %v1077
    %v1214 = vunpack.c.l.b16 %v1078
    %v1215 = vunpack.c.h.b16 %v1078
    %v1216 = vunpack.c.l.b16 %v1079
    %v1217 = vunpack.c.l.b16 %v1080
    %v1218 = vunpack.c.h.b16 %v1080
    %v1219 = vunpack.c.l.b16 %v1081
    %v1220 = vunpack.c.h.b16 %v1081
    %v1221 = vunpack.c.l.b16 %v1082
    %v1222 = vunpack.c.l.b16 %v1083
    %v1223 = vunpack.c.h.b16 %v1083
    %v1224 = vunpack.c.l.b16 %v1084
    %v1225 = vunpack.c.h.b16 %v1084
    %v1226 = vunpack.c.l.b16 %v1085
    %v1227 = vpack.c.b16 %v1152, %v1147
    %v1228 = vpack.c.b16 %v1153, %v1148
    %v1229 = vpack.c.b16 %v1154, %v1149
    %v1230 = vpack.c.b16 %v1155, %v1150
    %v1231 = vpack.c.b16 %v1156, %v1151
    %v1232 = vpack.c.b16 %v1162, %v1157
    %v1233 = vpack.c.b16 %v1163, %v1158
    %v1234 = vpack.c.b16 %v1164, %v1159
    %v1235 = vpack.c.b16 %v1165, %v1160
    %v1236 = vpack.c.b16 %v1166, %v1161
    %v1237 = vpack.c.b16 %v1172, %v1167
    %v1238 = vpack.c.b16 %v1173, %v1168
    %v1239 = vpack.c.b16 %v1174, %v1169
    %v1240 = vpack.c.b16 %v1175, %v1170
    %v1241 = vpack.c.b16 %v1176, %v1171
    %v1242 = vpack.c.b16 %v1182, %v1177
    %v1243 = vpack.c.b16 %v1183, %v1178
    %v1244 = vpack.c.b16 %v1184, %v1179
    %v1245 = vpack.c.b16 %v1185, %v1180
    %v1246 = vpack.c.b16 %v1186, %v1181
    %v1247 = vpack.c.b16 %v1192, %v1187
    %v1248 = vpack.c.b16 %v1193, %v1188
    %v1249 = vpack.c.b16 %v1194, %v1189
    %v1250 = vpack.c.b16 %v1195, %v1190
    %v1251 = vpack.c.b16 %v1196, %v1191
    %v1252 = vpack.c.b16 %v1202, %v1197
    %v1253 = vpack.c.b16 %v1203, %v1198
    %v1254 = vpack.c.b16 %v1204, %v1199
    %v1255 = vpack.c.b16 %v1205, %v1200
    %v1256 = vpack.c.b16 %v1206, %v1201
    %v1257 = vpack.c.b16 %v1212, %v1207
    %v1258 = vpack.c.b16 %v1213, %v1208
    %v1259 = vpack.c.b16 %v1214, %v1209
    %v1260 = vpack.c.b16 %v1215, %v1210
    %v1261 = vpack.c.b16 %v1216, %v1211
    %v1262 = vpack.c.b16 %v1222, %v1217
    %v1263 = vpack.c.b16 %v1223, %v1218
    %v1264 = vpack.c.b16 %v1224, %v1219
    %v1265 = vpack.c.b16 %v1225, %v1220
    %v1266 = vpack.c.b16 %v1226, %v1221
    %1307 = vmatpush.bf16.msra.mxu0 %v1262
    %1308 = vmatpush.bf16.msra.mxu0 %v1257
    %1309 = vmatpush.bf16.msra.mxu0 %v1252
    %1310 = vmatpush.bf16.msra.mxu0 %v1247
    %1311 = vmatpush.bf16.msra.mxu0 %v1242
    %1312 = vmatpush.bf16.msra.mxu0 %v1237
    %1313 = vmatpush.bf16.msra.mxu0 %v1232
    %1314 = vmatpush.bf16.msra.mxu0 %v1227
    %1315 = vmatmul.bf16.gmra.mxu0 %v1020
    %v1316 = vpop.f32.mrf.mxu0
    %v1317 = vadd.f32 %v1089, %v1316
    %v1318 = vpop.f32.mrf.mxu0
    %1319 = vdwg.mxu0
    %1320 = vmatpush.bf16.msra.mxu0 %v1263
    %1321 = vmatpush.bf16.msra.mxu0 %v1258
    %1322 = vmatpush.bf16.msra.mxu0 %v1253
    %1323 = vmatpush.bf16.msra.mxu0 %v1248
    %1324 = vmatpush.bf16.msra.mxu0 %v1243
    %1325 = vmatpush.bf16.msra.mxu0 %v1238
    %1326 = vmatpush.bf16.msra.mxu0 %v1233
    %1327 = vmatpush.bf16.msra.mxu0 %v1228
    %1328 = vmatmul.bf16.gmra.mxu0 %v1020
    %v1329 = vpop.f32.mrf.mxu0
    %v1330 = vadd.f32 %v1090, %v1329
    %v1331 = vpop.f32.mrf.mxu0
    %1332 = vdwg.mxu0
    %1333 = vmatpush.bf16.msra.mxu0 %v1264
    %1334 = vmatpush.bf16.msra.mxu0 %v1259
    %1335 = vmatpush.bf16.msra.mxu0 %v1254
    %1336 = vmatpush.bf16.msra.mxu0 %v1249
    %1337 = vmatpush.bf16.msra.mxu0 %v1244
    %1338 = vmatpush.bf16.msra.mxu0 %v1239
    %1339 = vmatpush.bf16.msra.mxu0 %v1234
    %1340 = vmatpush.bf16.msra.mxu0 %v1229
    %1341 = vmatmul.bf16.gmra.mxu0 %v1020
    %v1342 = vpop.f32.mrf.mxu0
    %v1343 = vadd.f32 %v1091, %v1342
    %v1344 = vpop.f32.mrf.mxu0
    %1345 = vdwg.mxu0
    %1346 = vmatpush.bf16.msra.mxu0 %v1265
    %1347 = vmatpush.bf16.msra.mxu0 %v1260
    %1348 = vmatpush.bf16.msra.mxu0 %v1255
    %1349 = vmatpush.bf16.msra.mxu0 %v1250
    %1350 = vmatpush.bf16.msra.mxu0 %v1245
    %1351 = vmatpush.bf16.msra.mxu0 %v1240
    %1352 = vmatpush.bf16.msra.mxu0 %v1235
    %1353 = vmatpush.bf16.msra.mxu0 %v1230
    %1354 = vmatmul.bf16.gmra.mxu0 %v1020
    %v1355 = vpop.f32.mrf.mxu0
    %v1356 = vadd.f32 %v1092, %v1355
    %v1357 = vpop.f32.mrf.mxu0
    %1358 = vdwg.mxu0
    %1359 = vmatpush.bf16.msra.mxu0 %v1266
    %1360 = vmatpush.bf16.msra.mxu0 %v1261
    %1361 = vmatpush.bf16.msra.mxu0 %v1256
    %1362 = vmatpush.bf16.msra.mxu0 %v1251
    %1363 = vmatpush.bf16.msra.mxu0 %v1246
    %1364 = vmatpush.bf16.msra.mxu0 %v1241
    %1365 = vmatpush.bf16.msra.mxu0 %v1236
    %1366 = vmatpush.bf16.msra.mxu0 %v1231
    %1367 = vmatmul.bf16.gmra.mxu0 %v1020
    %v1368 = vpop.f32.mrf.mxu0
    %v1369 = vadd.f32 %v1093, %v1368
    %v1370 = vpop.f32.mrf.mxu0
    %1371 = vdwg.mxu0
    %v1372 = vpack.c.bf16 %v1034, %v1034
    %s1373 = scalar_lea.vmem [#allocation2], 128
    %v1374 = vld [vmem:[%s1373] sm:$0xff]
    %v1375 = vld [vmem:[%s1373 + $0x8] sm:$0xff]
    %v1376 = vld [vmem:[%s1373 + $0x10] sm:$0xff]
    %v1377 = vld [vmem:[%s1373 + $0x18] sm:$0xff]
    %v1378 = vld [vmem:[%s1373 + $0x20] sm:$0xff]
    %v1379 = vld [vmem:[%s1373 + $0x28] sm:$0xff]
    %v1380 = vld [vmem:[%s1373 + $0x30] sm:$0xff]
    %v1381 = vld [vmem:[%s1373 + $0x38] sm:$0xff]
    %v1382 = vld [vmem:[%s1373 + $0x40] sm:$0xff]
    %v1383 = vld [vmem:[%s1373 + $0x48] sm:$0xff]
    %v1384 = vld [vmem:[%s1373 + $0x50] sm:$0xff]
    %v1385 = vld [vmem:[%s1373 + $0x58] sm:$0xff]
    %v1386 = vld [vmem:[%s1373 + $0x60] sm:$0xff]
    %v1387 = vld [vmem:[%s1373 + $0x68] sm:$0xff]
    %v1388 = vld [vmem:[%s1373 + $0x70] sm:$0xff]
    %v1389 = vld [vmem:[%s1373 + $0x78] sm:$0xff]
    %v1390 = vmul.f32 %v455, %v1317
    %v1391 = vmul.f32 %v455, %v1330
    %v1408 = vunpack.c.l.b16 %v1374
    %v1409 = vunpack.c.h.b16 %v1374
    %v1410 = vunpack.c.l.b16 %v1375
    %v1411 = vunpack.c.h.b16 %v1375
    %v1412 = vunpack.c.l.b16 %v1376
    %v1413 = vunpack.c.h.b16 %v1376
    %v1414 = vunpack.c.l.b16 %v1377
    %v1415 = vunpack.c.h.b16 %v1377
    %v1416 = vunpack.c.l.b16 %v1378
    %v1417 = vunpack.c.h.b16 %v1378
    %v1418 = vunpack.c.l.b16 %v1379
    %v1419 = vunpack.c.h.b16 %v1379
    %v1420 = vunpack.c.l.b16 %v1380
    %v1421 = vunpack.c.h.b16 %v1380
    %v1422 = vunpack.c.l.b16 %v1381
    %v1423 = vunpack.c.h.b16 %v1381
    %v1424 = vunpack.c.l.b16 %v1382
    %v1425 = vunpack.c.h.b16 %v1382
    %v1426 = vunpack.c.l.b16 %v1383
    %v1427 = vunpack.c.h.b16 %v1383
    %v1428 = vunpack.c.l.b16 %v1384
    %v1429 = vunpack.c.h.b16 %v1384
    %v1430 = vunpack.c.l.b16 %v1385
    %v1431 = vunpack.c.h.b16 %v1385
    %v1432 = vunpack.c.l.b16 %v1386
    %v1433 = vunpack.c.h.b16 %v1386
    %v1434 = vunpack.c.l.b16 %v1387
    %v1435 = vunpack.c.h.b16 %v1387
    %v1436 = vunpack.c.l.b16 %v1388
    %v1437 = vunpack.c.h.b16 %v1388
    %v1438 = vunpack.c.l.b16 %v1389
    %v1439 = vunpack.c.h.b16 %v1389
    %v1440 = vpack.c.b16 %v1410, %v1408
    %v1441 = vpack.c.b16 %v1411, %v1409
    %v1442 = vpack.c.b16 %v1414, %v1412
    %v1443 = vpack.c.b16 %v1415, %v1413
    %v1444 = vpack.c.b16 %v1418, %v1416
    %v1445 = vpack.c.b16 %v1419, %v1417
    %v1446 = vpack.c.b16 %v1422, %v1420
    %v1447 = vpack.c.b16 %v1423, %v1421
    %v1448 = vpack.c.b16 %v1426, %v1424
    %v1449 = vpack.c.b16 %v1427, %v1425
    %v1450 = vpack.c.b16 %v1430, %v1428
    %v1451 = vpack.c.b16 %v1431, %v1429
    %v1452 = vpack.c.b16 %v1434, %v1432
    %v1453 = vpack.c.b16 %v1435, %v1433
    %v1454 = vpack.c.b16 %v1438, %v1436
    %v1455 = vpack.c.b16 %v1439, %v1437
    %1472 = vmatpush.bf16.msra.mxu0 %v1454
    %1473 = vmatpush.bf16.msra.mxu0 %v1452
    %1474 = vmatpush.bf16.msra.mxu0 %v1450
    %1475 = vmatpush.bf16.msra.mxu0 %v1448
    %1476 = vmatpush.bf16.msra.mxu0 %v1446
    %1477 = vmatpush.bf16.msra.mxu0 %v1444
    %1478 = vmatpush.bf16.msra.mxu0 %v1442
    %1479 = vmatpush.bf16.msra.mxu0 %v1440
    %1480 = vmatmul.bf16.gmra.mxu0 %v1372
    %v1481 = vpop.f32.mrf.mxu0
    %v1482 = vadd.f32 %v1390, %v1481
    %v1483 = vpop.f32.mrf.mxu0
    %1484 = vdwg.mxu0
    %1485 = vmatpush.bf16.msra.mxu0 %v1455
    %1486 = vmatpush.bf16.msra.mxu0 %v1453
    %1487 = vmatpush.bf16.msra.mxu0 %v1451
    %1488 = vmatpush.bf16.msra.mxu0 %v1449
    %1489 = vmatpush.bf16.msra.mxu0 %v1447
    %1490 = vmatpush.bf16.msra.mxu0 %v1445
    %1491 = vmatpush.bf16.msra.mxu0 %v1443
    %1492 = vmatpush.bf16.msra.mxu0 %v1441
    %1493 = vmatmul.bf16.gmra.mxu0 %v1372
    %v1494 = vpop.f32.mrf.mxu0
    %v1495 = vadd.f32 %v1391, %v1494
    %v1496 = vpop.f32.mrf.mxu0
    %1497 = vdwg.mxu0
    %v1498 = vpack.c.bf16 %v1482, %v1482
    %v1499 = vpack.c.bf16 %v1495, %v1495
    %s1500 = scalar_lea.vmem [#allocation6], 384
    %v1501 = vld [vmem:[%s1500] sm:$0xff]
    %v1502 = vld [vmem:[%s1500 + $0x8] sm:$0xf]
    %v1503 = vld [vmem:[%s1500 + $0xc] sm:$0xff]
    %v1504 = vld [vmem:[%s1500 + $0x14] sm:$0xf]
    %v1505 = vld [vmem:[%s1500 + $0x18] sm:$0xff]
    %v1506 = vld [vmem:[%s1500 + $0x20] sm:$0xf]
    %v1507 = vld [vmem:[%s1500 + $0x24] sm:$0xff]
    %v1508 = vld [vmem:[%s1500 + $0x2c] sm:$0xf]
    %v1509 = vld [vmem:[%s1500 + $0x30] sm:$0xff]
    %v1510 = vld [vmem:[%s1500 + $0x38] sm:$0xf]
    %v1511 = vld [vmem:[%s1500 + $0x3c] sm:$0xff]
    %v1512 = vld [vmem:[%s1500 + $0x44] sm:$0xf]
    %v1513 = vld [vmem:[%s1500 + $0x48] sm:$0xff]
    %v1514 = vld [vmem:[%s1500 + $0x50] sm:$0xf]
    %v1515 = vld [vmem:[%s1500 + $0x54] sm:$0xff]
    %v1516 = vld [vmem:[%s1500 + $0x5c] sm:$0xf]
    %v1517 = vld [vmem:[%s1500 + $0x60] sm:$0xff]
    %v1518 = vld [vmem:[%s1500 + $0x68] sm:$0xf]
    %v1519 = vld [vmem:[%s1500 + $0x6c] sm:$0xff]
    %v1520 = vld [vmem:[%s1500 + $0x74] sm:$0xf]
    %v1521 = vld [vmem:[%s1500 + $0x78] sm:$0xff]
    %v1522 = vld [vmem:[%s1500 + $0x80] sm:$0xf]
    %v1523 = vld [vmem:[%s1500 + $0x84] sm:$0xff]
    %v1524 = vld [vmem:[%s1500 + $0x8c] sm:$0xf]
    %v1525 = vld [vmem:[%s1500 + $0x90] sm:$0xff]
    %v1526 = vld [vmem:[%s1500 + $0x98] sm:$0xf]
    %v1527 = vld [vmem:[%s1500 + $0x9c] sm:$0xff]
    %v1528 = vld [vmem:[%s1500 + $0xa4] sm:$0xf]
    %v1529 = vld [vmem:[%s1500 + $0xa8] sm:$0xff]
    %v1530 = vld [vmem:[%s1500 + $0xb0] sm:$0xf]
    %v1531 = vld [vmem:[%s1500 + $0xb4] sm:$0xff]
    %v1532 = vld [vmem:[%s1500 + $0xbc] sm:$0xf]
    %v1533 = vld [vmem:[%s1500 + $0xc0] sm:$0xff]
    %v1534 = vld [vmem:[%s1500 + $0xc8] sm:$0xf]
    %v1535 = vld [vmem:[%s1500 + $0xcc] sm:$0xff]
    %v1536 = vld [vmem:[%s1500 + $0xd4] sm:$0xf]
    %v1537 = vld [vmem:[%s1500 + $0xd8] sm:$0xff]
    %v1538 = vld [vmem:[%s1500 + $0xe0] sm:$0xf]
    %v1539 = vld [vmem:[%s1500 + $0xe4] sm:$0xff]
    %v1540 = vld [vmem:[%s1500 + $0xec] sm:$0xf]
    %v1541 = vld [vmem:[%s1500 + $0xf0] sm:$0xff]
    %v1542 = vld [vmem:[%s1500 + $0xf8] sm:$0xf]
    %v1543 = vld [vmem:[%s1500 + $0xfc] sm:$0xff]
    %v1544 = vld [vmem:[%s1500 + $0x104] sm:$0xf]
    %v1545 = vld [vmem:[%s1500 + $0x108] sm:$0xff]
    %v1546 = vld [vmem:[%s1500 + $0x110] sm:$0xf]
    %v1547 = vld [vmem:[%s1500 + $0x114] sm:$0xff]
    %v1548 = vld [vmem:[%s1500 + $0x11c] sm:$0xf]
    %v1549 = vld [vmem:[%s1500 + $0x120] sm:$0xff]
    %v1550 = vld [vmem:[%s1500 + $0x128] sm:$0xf]
    %v1551 = vld [vmem:[%s1500 + $0x12c] sm:$0xff]
    %v1552 = vld [vmem:[%s1500 + $0x134] sm:$0xf]
    %v1553 = vld [vmem:[%s1500 + $0x138] sm:$0xff]
    %v1554 = vld [vmem:[%s1500 + $0x140] sm:$0xf]
    %v1555 = vld [vmem:[%s1500 + $0x144] sm:$0xff]
    %v1556 = vld [vmem:[%s1500 + $0x14c] sm:$0xf]
    %v1557 = vld [vmem:[%s1500 + $0x150] sm:$0xff]
    %v1558 = vld [vmem:[%s1500 + $0x158] sm:$0xf]
    %v1559 = vld [vmem:[%s1500 + $0x15c] sm:$0xff]
    %v1560 = vld [vmem:[%s1500 + $0x164] sm:$0xf]
    %v1561 = vld [vmem:[%s1500 + $0x168] sm:$0xff]
    %v1562 = vld [vmem:[%s1500 + $0x170] sm:$0xf]
    %v1563 = vld [vmem:[%s1500 + $0x174] sm:$0xff]
    %v1564 = vld [vmem:[%s1500 + $0x17c] sm:$0xf]
    %s1565 = scalar_lea.vmem %s7, 3
    %v1566 = vld [vmem:[%s1565] sm:$0x7]
    %v1568 = vperm.slane %v1566, 0
    %v1569 = vperm.slane %v1566, 1
    %v1570 = vperm.slane %v1566, 2
    %v1638 = vunpack.c.l.b16 %v1501
    %v1639 = vunpack.c.h.b16 %v1501
    %v1640 = vunpack.c.l.b16 %v1502
    %v1641 = vunpack.c.l.b16 %v1503
    %v1642 = vunpack.c.h.b16 %v1503
    %v1643 = vunpack.c.l.b16 %v1504
    %v1644 = vunpack.c.l.b16 %v1505
    %v1645 = vunpack.c.h.b16 %v1505
    %v1646 = vunpack.c.l.b16 %v1506
    %v1647 = vunpack.c.l.b16 %v1507
    %v1648 = vunpack.c.h.b16 %v1507
    %v1649 = vunpack.c.l.b16 %v1508
    %v1650 = vunpack.c.l.b16 %v1509
    %v1651 = vunpack.c.h.b16 %v1509
    %v1652 = vunpack.c.l.b16 %v1510
    %v1653 = vunpack.c.l.b16 %v1511
    %v1654 = vunpack.c.h.b16 %v1511
    %v1655 = vunpack.c.l.b16 %v1512
    %v1656 = vunpack.c.l.b16 %v1513
    %v1657 = vunpack.c.h.b16 %v1513
    %v1658 = vunpack.c.l.b16 %v1514
    %v1659 = vunpack.c.l.b16 %v1515
    %v1660 = vunpack.c.h.b16 %v1515
    %v1661 = vunpack.c.l.b16 %v1516
    %v1662 = vunpack.c.l.b16 %v1517
    %v1663 = vunpack.c.h.b16 %v1517
    %v1664 = vunpack.c.l.b16 %v1518
    %v1665 = vunpack.c.l.b16 %v1519
    %v1666 = vunpack.c.h.b16 %v1519
    %v1667 = vunpack.c.l.b16 %v1520
    %v1668 = vunpack.c.l.b16 %v1521
    %v1669 = vunpack.c.h.b16 %v1521
    %v1670 = vunpack.c.l.b16 %v1522
    %v1671 = vunpack.c.l.b16 %v1523
    %v1672 = vunpack.c.h.b16 %v1523
    %v1673 = vunpack.c.l.b16 %v1524
    %v1674 = vunpack.c.l.b16 %v1525
    %v1675 = vunpack.c.h.b16 %v1525
    %v1676 = vunpack.c.l.b16 %v1526
    %v1677 = vunpack.c.l.b16 %v1527
    %v1678 = vunpack.c.h.b16 %v1527
    %v1679 = vunpack.c.l.b16 %v1528
    %v1680 = vunpack.c.l.b16 %v1529
    %v1681 = vunpack.c.h.b16 %v1529
    %v1682 = vunpack.c.l.b16 %v1530
    %v1683 = vunpack.c.l.b16 %v1531
    %v1684 = vunpack.c.h.b16 %v1531
    %v1685 = vunpack.c.l.b16 %v1532
    %v1686 = vunpack.c.l.b16 %v1533
    %v1687 = vunpack.c.h.b16 %v1533
    %v1688 = vunpack.c.l.b16 %v1534
    %v1689 = vunpack.c.l.b16 %v1535
    %v1690 = vunpack.c.h.b16 %v1535
    %v1691 = vunpack.c.l.b16 %v1536
    %v1692 = vunpack.c.l.b16 %v1537
    %v1693 = vunpack.c.h.b16 %v1537
    %v1694 = vunpack.c.l.b16 %v1538
    %v1695 = vunpack.c.l.b16 %v1539
    %v1696 = vunpack.c.h.b16 %v1539
    %v1697 = vunpack.c.l.b16 %v1540
    %v1698 = vunpack.c.l.b16 %v1541
    %v1699 = vunpack.c.h.b16 %v1541
    %v1700 = vunpack.c.l.b16 %v1542
    %v1701 = vunpack.c.l.b16 %v1543
    %v1702 = vunpack.c.h.b16 %v1543
    %v1703 = vunpack.c.l.b16 %v1544
    %v1704 = vunpack.c.l.b16 %v1545
    %v1705 = vunpack.c.h.b16 %v1545
    %v1706 = vunpack.c.l.b16 %v1546
    %v1707 = vunpack.c.l.b16 %v1547
    %v1708 = vunpack.c.h.b16 %v1547
    %v1709 = vunpack.c.l.b16 %v1548
    %v1710 = vunpack.c.l.b16 %v1549
    %v1711 = vunpack.c.h.b16 %v1549
    %v1712 = vunpack.c.l.b16 %v1550
    %v1713 = vunpack.c.l.b16 %v1551
    %v1714 = vunpack.c.h.b16 %v1551
    %v1715 = vunpack.c.l.b16 %v1552
    %v1716 = vunpack.c.l.b16 %v1553
    %v1717 = vunpack.c.h.b16 %v1553
    %v1718 = vunpack.c.l.b16 %v1554
    %v1719 = vunpack.c.l.b16 %v1555
    %v1720 = vunpack.c.h.b16 %v1555
    %v1721 = vunpack.c.l.b16 %v1556
    %v1722 = vunpack.c.l.b16 %v1557
    %v1723 = vunpack.c.h.b16 %v1557
    %v1724 = vunpack.c.l.b16 %v1558
    %v1725 = vunpack.c.l.b16 %v1559
    %v1726 = vunpack.c.h.b16 %v1559
    %v1727 = vunpack.c.l.b16 %v1560
    %v1728 = vunpack.c.l.b16 %v1561
    %v1729 = vunpack.c.h.b16 %v1561
    %v1730 = vunpack.c.l.b16 %v1562
    %v1731 = vunpack.c.l.b16 %v1563
    %v1732 = vunpack.c.h.b16 %v1563
    %v1733 = vunpack.c.l.b16 %v1564
    %v1734 = vpack.c.b16 %v1641, %v1638
    %v1735 = vpack.c.b16 %v1642, %v1639
    %v1736 = vpack.c.b16 %v1643, %v1640
    %v1737 = vpack.c.b16 %v1647, %v1644
    %v1738 = vpack.c.b16 %v1648, %v1645
    %v1739 = vpack.c.b16 %v1649, %v1646
    %v1740 = vpack.c.b16 %v1653, %v1650
    %v1741 = vpack.c.b16 %v1654, %v1651
    %v1742 = vpack.c.b16 %v1655, %v1652
    %v1743 = vpack.c.b16 %v1659, %v1656
    %v1744 = vpack.c.b16 %v1660, %v1657
    %v1745 = vpack.c.b16 %v1661, %v1658
    %v1746 = vpack.c.b16 %v1665, %v1662
    %v1747 = vpack.c.b16 %v1666, %v1663
    %v1748 = vpack.c.b16 %v1667, %v1664
    %v1749 = vpack.c.b16 %v1671, %v1668
    %v1750 = vpack.c.b16 %v1672, %v1669
    %v1751 = vpack.c.b16 %v1673, %v1670
    %v1752 = vpack.c.b16 %v1677, %v1674
    %v1753 = vpack.c.b16 %v1678, %v1675
    %v1754 = vpack.c.b16 %v1679, %v1676
    %v1755 = vpack.c.b16 %v1683, %v1680
    %v1756 = vpack.c.b16 %v1684, %v1681
    %v1757 = vpack.c.b16 %v1685, %v1682
    %v1758 = vpack.c.b16 %v1689, %v1686
    %v1759 = vpack.c.b16 %v1690, %v1687
    %v1760 = vpack.c.b16 %v1691, %v1688
    %v1761 = vpack.c.b16 %v1695, %v1692
    %v1762 = vpack.c.b16 %v1696, %v1693
    %v1763 = vpack.c.b16 %v1697, %v1694
    %v1764 = vpack.c.b16 %v1701, %v1698
    %v1765 = vpack.c.b16 %v1702, %v1699
    %v1766 = vpack.c.b16 %v1703, %v1700
    %v1767 = vpack.c.b16 %v1707, %v1704
    %v1768 = vpack.c.b16 %v1708, %v1705
    %v1769 = vpack.c.b16 %v1709, %v1706
    %v1770 = vpack.c.b16 %v1713, %v1710
    %v1771 = vpack.c.b16 %v1714, %v1711
    %v1772 = vpack.c.b16 %v1715, %v1712
    %v1773 = vpack.c.b16 %v1719, %v1716
    %v1774 = vpack.c.b16 %v1720, %v1717
    %v1775 = vpack.c.b16 %v1721, %v1718
    %v1776 = vpack.c.b16 %v1725, %v1722
    %v1777 = vpack.c.b16 %v1726, %v1723
    %v1778 = vpack.c.b16 %v1727, %v1724
    %v1779 = vpack.c.b16 %v1731, %v1728
    %v1780 = vpack.c.b16 %v1732, %v1729
    %v1781 = vpack.c.b16 %v1733, %v1730
    %1830 = vmatpush.bf16.msra.mxu0 %v1755
    %1831 = vmatpush.bf16.msra.mxu0 %v1752
    %1832 = vmatpush.bf16.msra.mxu0 %v1749
    %1833 = vmatpush.bf16.msra.mxu0 %v1746
    %1834 = vmatpush.bf16.msra.mxu0 %v1743
    %1835 = vmatpush.bf16.msra.mxu0 %v1740
    %1836 = vmatpush.bf16.msra.mxu0 %v1737
    %1837 = vmatpush.bf16.msra.mxu0 %v1734
    %1838 = vmatmul.bf16.gmra.mxu0 %v1498
    %v1839 = vpop.f32.mrf.mxu0
    %v1840 = vadd.f32 %v1568, %v1839
    %v1841 = vpop.f32.mrf.mxu0
    %1842 = vdwg.mxu0
    %1843 = vmatpush.bf16.msra.mxu0 %v1779
    %1844 = vmatpush.bf16.msra.mxu0 %v1776
    %1845 = vmatpush.bf16.msra.mxu0 %v1773
    %1846 = vmatpush.bf16.msra.mxu0 %v1770
    %1847 = vmatpush.bf16.msra.mxu0 %v1767
    %1848 = vmatpush.bf16.msra.mxu0 %v1764
    %1849 = vmatpush.bf16.msra.mxu0 %v1761
    %1850 = vmatpush.bf16.msra.mxu0 %v1758
    %1851 = vmatmul.bf16.gmra.mxu0 %v1499
    %v1852 = vpop.f32.mrf.mxu0
    %v1853 = vadd.f32 %v1840, %v1852
    %v1854 = vpop.f32.mrf.mxu0
    %1855 = vdwg.mxu0
    %1856 = vmatpush.bf16.msra.mxu0 %v1756
    %1857 = vmatpush.bf16.msra.mxu0 %v1753
    %1858 = vmatpush.bf16.msra.mxu0 %v1750
    %1859 = vmatpush.bf16.msra.mxu0 %v1747
    %1860 = vmatpush.bf16.msra.mxu0 %v1744
    %1861 = vmatpush.bf16.msra.mxu0 %v1741
    %1862 = vmatpush.bf16.msra.mxu0 %v1738
    %1863 = vmatpush.bf16.msra.mxu0 %v1735
    %1864 = vmatmul.bf16.gmra.mxu0 %v1498
    %v1865 = vpop.f32.mrf.mxu0
    %v1866 = vadd.f32 %v1569, %v1865
    %v1867 = vpop.f32.mrf.mxu0
    %1868 = vdwg.mxu0
    %1869 = vmatpush.bf16.msra.mxu0 %v1780
    %1870 = vmatpush.bf16.msra.mxu0 %v1777
    %1871 = vmatpush.bf16.msra.mxu0 %v1774
    %1872 = vmatpush.bf16.msra.mxu0 %v1771
    %1873 = vmatpush.bf16.msra.mxu0 %v1768
    %1874 = vmatpush.bf16.msra.mxu0 %v1765
    %1875 = vmatpush.bf16.msra.mxu0 %v1762
    %1876 = vmatpush.bf16.msra.mxu0 %v1759
    %1877 = vmatmul.bf16.gmra.mxu0 %v1499
    %v1878 = vpop.f32.mrf.mxu0
    %v1879 = vadd.f32 %v1866, %v1878
    %v1880 = vpop.f32.mrf.mxu0
    %1881 = vdwg.mxu0
    %1882 = vmatpush.bf16.msra.mxu0 %v1757
    %1883 = vmatpush.bf16.msra.mxu0 %v1754
    %1884 = vmatpush.bf16.msra.mxu0 %v1751
    %1885 = vmatpush.bf16.msra.mxu0 %v1748
    %1886 = vmatpush.bf16.msra.mxu0 %v1745
    %1887 = vmatpush.bf16.msra.mxu0 %v1742
    %1888 = vmatpush.bf16.msra.mxu0 %v1739
    %1889 = vmatpush.bf16.msra.mxu0 %v1736
    %1890 = vmatmul.bf16.gmra.mxu0 %v1498
    %v1891 = vpop.f32.mrf.mxu0
    %v1892 = vadd.f32 %v1570, %v1891
    %v1893 = vpop.f32.mrf.mxu0
    %1894 = vdwg.mxu0
    %1895 = vmatpush.bf16.msra.mxu0 %v1781
    %1896 = vmatpush.bf16.msra.mxu0 %v1778
    %1897 = vmatpush.bf16.msra.mxu0 %v1775
    %1898 = vmatpush.bf16.msra.mxu0 %v1772
    %1899 = vmatpush.bf16.msra.mxu0 %v1769
    %1900 = vmatpush.bf16.msra.mxu0 %v1766
    %1901 = vmatpush.bf16.msra.mxu0 %v1763
    %1902 = vmatpush.bf16.msra.mxu0 %v1760
    %1903 = vmatmul.bf16.gmra.mxu0 %v1499
    %v1904 = vpop.f32.mrf.mxu0
    %v1905 = vadd.f32 %v1892, %v1904
    %v1906 = vpop.f32.mrf.mxu0
    %1907 = vdwg.mxu0
    %v1908 = vadd.f32 %v1853, %v1343
    %v1909 = vxor.u32 %v1908, 2147483648
    %v1910 = vmul.f32 %v1909, 1.442695
    %v1911 = vpow.pop %v1910
    %v1912 = vadd.f32 %v1911, 1.0
    %v1913 = vrcp.pop %v1912
    %v1914 = vmul.f32 %v1912, %v1913
    %v1915 = vsub.f32 1.0, %v1914
    %v1916 = vmul.f32 %v1913, %v1915
    %v1917 = vadd.f32 %v1913, %v1916
    %vm1918 = vweird.f32 %v1912
    %vm1919 = vweird.f32 %v1913
    %vm1920 = vmor %vm1918, %vm1919
    %v1921 = vsel %vm1920, %v1913, %v1917
    %v1922 = vand.u32 2147483647, %v1912
    %vm1923 = vcmp.eq.f32.partialorder %v1922, 8.507059e+37
    %v1924 = vand.u32 %v1912, 2147483648
    %v1925 = vor.u32 1.1754944e-38, %v1924
    %v1926 = vsel %vm1923, %v1925, %v1921
    %v1927 = vmul.f32 1.0, %v1926
    %v1928 = vadd.f32 %v1879, %v1356
    %v1929 = vxor.u32 %v1928, 2147483648
    %v1930 = vmul.f32 %v1929, 1.442695
    %v1931 = vpow.pop %v1930
    %v1932 = vadd.f32 %v1931, 1.0
    %v1933 = vrcp.pop %v1932
    %v1934 = vmul.f32 %v1932, %v1933
    %v1935 = vsub.f32 1.0, %v1934
    %v1936 = vmul.f32 %v1933, %v1935
    %v1937 = vadd.f32 %v1933, %v1936
    %vm1938 = vweird.f32 %v1932
    %vm1939 = vweird.f32 %v1933
    %vm1940 = vmor %vm1938, %vm1939
    %v1941 = vsel %vm1940, %v1933, %v1937
    %v1942 = vand.u32 2147483647, %v1932
    %vm1943 = vcmp.eq.f32.partialorder %v1942, 8.507059e+37
    %v1944 = vand.u32 %v1932, 2147483648
    %v1945 = vor.u32 1.1754944e-38, %v1944
    %v1946 = vsel %vm1943, %v1945, %v1941
    %v1947 = vmul.f32 1.0, %v1946
    %v1948 = vmul.f32 %v1927, %v1369
    %v1949 = vadd.f32 %v1905, %v1948
    %v1950 = vtanh.pop %v1949
    %v1951 = vsub.f32 1.0, %v1947
    %v1952 = vmul.f32 %v1951, %v1950
    %v1953 = vmul.f32 %v1947, %v1019
    %v1954 = vadd.f32 %v1952, %v1953
    %1955 = vst [vmem:[%s8] sm:$0xff] %v1954
    %s1956 = scalar_lea.vmem %s1, 4
    %v1957 = vld [vmem:[%s1956] sm:$0xf]
    %s1958 = scalar_lea.vmem %s2, 8
    %v1959 = vld [vmem:[%s1958] sm:$0xff]
    %v1961 = vsel %vm81, %v1957, 0
    %1963 = vmatpush.bf16.msra.mxu0 0
    %1964 = vmatpush.bf16.msra.mxu0 0
    %1965 = vmatpush.bf16.msra.mxu0 0
    %1966 = vmatpush.bf16.msra.mxu0 0
    %1967 = vmatpush.bf16.msra.mxu0 0
    %1968 = vmatpush.bf16.msra.mxu0 0
    %1969 = vmatpush.bf16.msra.mxu0 0
    %1970 = vmatpush.bf16.msra.mxu0 %v87
    %1971 = vmatmul.bf16.gmra.mxu0 %v1961
    %v1972 = vpop.f32.mrf.mxu0
    %v1973 = vadd.f32 0.0, %v1972
    %v1974 = vpop.f32.mrf.mxu0
    %1975 = vdwg.mxu0
    %s1976 = scalar_lea.vmem [#allocation4], 640
    %v1977 = vld [vmem:[%s1976] sm:$0xff]
    %v1978 = vld [vmem:[%s1976 + $0x8] sm:$0xff]
    %v1979 = vld [vmem:[%s1976 + $0x10] sm:$0xf]
    %v1980 = vld [vmem:[%s1976 + $0x14] sm:$0xff]
    %v1981 = vld [vmem:[%s1976 + $0x1c] sm:$0xff]
    %v1982 = vld [vmem:[%s1976 + $0x24] sm:$0xf]
    %v1983 = vld [vmem:[%s1976 + $0x28] sm:$0xff]
    %v1984 = vld [vmem:[%s1976 + $0x30] sm:$0xff]
    %v1985 = vld [vmem:[%s1976 + $0x38] sm:$0xf]
    %v1986 = vld [vmem:[%s1976 + $0x3c] sm:$0xff]
    %v1987 = vld [vmem:[%s1976 + $0x44] sm:$0xff]
    %v1988 = vld [vmem:[%s1976 + $0x4c] sm:$0xf]
    %v1989 = vld [vmem:[%s1976 + $0x50] sm:$0xff]
    %v1990 = vld [vmem:[%s1976 + $0x58] sm:$0xff]
    %v1991 = vld [vmem:[%s1976 + $0x60] sm:$0xf]
    %v1992 = vld [vmem:[%s1976 + $0x64] sm:$0xff]
    %v1993 = vld [vmem:[%s1976 + $0x6c] sm:$0xff]
    %v1994 = vld [vmem:[%s1976 + $0x74] sm:$0xf]
    %v1995 = vld [vmem:[%s1976 + $0x78] sm:$0xff]
    %v1996 = vld [vmem:[%s1976 + $0x80] sm:$0xff]
    %v1997 = vld [vmem:[%s1976 + $0x88] sm:$0xf]
    %v1998 = vld [vmem:[%s1976 + $0x8c] sm:$0xff]
    %v1999 = vld [vmem:[%s1976 + $0x94] sm:$0xff]
    %v2000 = vld [vmem:[%s1976 + $0x9c] sm:$0xf]
    %v2001 = vld [vmem:[%s1976 + $0xa0] sm:$0xff]
    %v2002 = vld [vmem:[%s1976 + $0xa8] sm:$0xff]
    %v2003 = vld [vmem:[%s1976 + $0xb0] sm:$0xf]
    %v2004 = vld [vmem:[%s1976 + $0xb4] sm:$0xff]
    %v2005 = vld [vmem:[%s1976 + $0xbc] sm:$0xff]
    %v2006 = vld [vmem:[%s1976 + $0xc4] sm:$0xf]
    %v2007 = vld [vmem:[%s1976 + $0xc8] sm:$0xff]
    %v2008 = vld [vmem:[%s1976 + $0xd0] sm:$0xff]
    %v2009 = vld [vmem:[%s1976 + $0xd8] sm:$0xf]
    %v2010 = vld [vmem:[%s1976 + $0xdc] sm:$0xff]
    %v2011 = vld [vmem:[%s1976 + $0xe4] sm:$0xff]
    %v2012 = vld [vmem:[%s1976 + $0xec] sm:$0xf]
    %v2013 = vld [vmem:[%s1976 + $0xf0] sm:$0xff]
    %v2014 = vld [vmem:[%s1976 + $0xf8] sm:$0xff]
    %v2015 = vld [vmem:[%s1976 + $0x100] sm:$0xf]
    %v2016 = vld [vmem:[%s1976 + $0x104] sm:$0xff]
    %v2017 = vld [vmem:[%s1976 + $0x10c] sm:$0xff]
    %v2018 = vld [vmem:[%s1976 + $0x114] sm:$0xf]
    %v2019 = vld [vmem:[%s1976 + $0x118] sm:$0xff]
    %v2020 = vld [vmem:[%s1976 + $0x120] sm:$0xff]
    %v2021 = vld [vmem:[%s1976 + $0x128] sm:$0xf]
    %v2022 = vld [vmem:[%s1976 + $0x12c] sm:$0xff]
    %v2023 = vld [vmem:[%s1976 + $0x134] sm:$0xff]
    %v2024 = vld [vmem:[%s1976 + $0x13c] sm:$0xf]
    %s2025 = scalar_lea.vmem %s5, 10
    %v2026 = vld [vmem:[%s2025] sm:$0x1f]
    %v2028 = vperm.slane %v2026, 0
    %v2029 = vperm.slane %v2026, 1
    %v2030 = vperm.slane %v2026, 2
    %v2031 = vperm.slane %v2026, 3
    %v2032 = vperm.slane %v2026, 4
    %v2086 = vunpack.c.l.b16 %v1977
    %v2087 = vunpack.c.h.b16 %v1977
    %v2088 = vunpack.c.l.b16 %v1978
    %v2089 = vunpack.c.h.b16 %v1978
    %v2090 = vunpack.c.l.b16 %v1979
    %v2091 = vunpack.c.l.b16 %v1980
    %v2092 = vunpack.c.h.b16 %v1980
    %v2093 = vunpack.c.l.b16 %v1981
    %v2094 = vunpack.c.h.b16 %v1981
    %v2095 = vunpack.c.l.b16 %v1982
    %v2096 = vunpack.c.l.b16 %v1983
    %v2097 = vunpack.c.h.b16 %v1983
    %v2098 = vunpack.c.l.b16 %v1984
    %v2099 = vunpack.c.h.b16 %v1984
    %v2100 = vunpack.c.l.b16 %v1985
    %v2101 = vunpack.c.l.b16 %v1986
    %v2102 = vunpack.c.h.b16 %v1986
    %v2103 = vunpack.c.l.b16 %v1987
    %v2104 = vunpack.c.h.b16 %v1987
    %v2105 = vunpack.c.l.b16 %v1988
    %v2106 = vunpack.c.l.b16 %v1989
    %v2107 = vunpack.c.h.b16 %v1989
    %v2108 = vunpack.c.l.b16 %v1990
    %v2109 = vunpack.c.h.b16 %v1990
    %v2110 = vunpack.c.l.b16 %v1991
    %v2111 = vunpack.c.l.b16 %v1992
    %v2112 = vunpack.c.h.b16 %v1992
    %v2113 = vunpack.c.l.b16 %v1993
    %v2114 = vunpack.c.h.b16 %v1993
    %v2115 = vunpack.c.l.b16 %v1994
    %v2116 = vunpack.c.l.b16 %v1995
    %v2117 = vunpack.c.h.b16 %v1995
    %v2118 = vunpack.c.l.b16 %v1996
    %v2119 = vunpack.c.h.b16 %v1996
    %v2120 = vunpack.c.l.b16 %v1997
    %v2121 = vunpack.c.l.b16 %v1998
    %v2122 = vunpack.c.h.b16 %v1998
    %v2123 = vunpack.c.l.b16 %v1999
    %v2124 = vunpack.c.h.b16 %v1999
    %v2125 = vunpack.c.l.b16 %v2000
    %v2126 = vunpack.c.l.b16 %v2001
    %v2127 = vunpack.c.h.b16 %v2001
    %v2128 = vunpack.c.l.b16 %v2002
    %v2129 = vunpack.c.h.b16 %v2002
    %v2130 = vunpack.c.l.b16 %v2003
    %v2131 = vunpack.c.l.b16 %v2004
    %v2132 = vunpack.c.h.b16 %v2004
    %v2133 = vunpack.c.l.b16 %v2005
    %v2134 = vunpack.c.h.b16 %v2005
    %v2135 = vunpack.c.l.b16 %v2006
    %v2136 = vunpack.c.l.b16 %v2007
    %v2137 = vunpack.c.h.b16 %v2007
    %v2138 = vunpack.c.l.b16 %v2008
    %v2139 = vunpack.c.h.b16 %v2008
    %v2140 = vunpack.c.l.b16 %v2009
    %v2141 = vunpack.c.l.b16 %v2010
    %v2142 = vunpack.c.h.b16 %v2010
    %v2143 = vunpack.c.l.b16 %v2011
    %v2144 = vunpack.c.h.b16 %v2011
    %v2145 = vunpack.c.l.b16 %v2012
    %v2146 = vunpack.c.l.b16 %v2013
    %v2147 = vunpack.c.h.b16 %v2013
    %v2148 = vunpack.c.l.b16 %v2014
    %v2149 = vunpack.c.h.b16 %v2014
    %v2150 = vunpack.c.l.b16 %v2015
    %v2151 = vunpack.c.l.b16 %v2016
    %v2152 = vunpack.c.h.b16 %v2016
    %v2153 = vunpack.c.l.b16 %v2017
    %v2154 = vunpack.c.h.b16 %v2017
    %v2155 = vunpack.c.l.b16 %v2018
    %v2156 = vunpack.c.l.b16 %v2019
    %v2157 = vunpack.c.h.b16 %v2019
    %v2158 = vunpack.c.l.b16 %v2020
    %v2159 = vunpack.c.h.b16 %v2020
    %v2160 = vunpack.c.l.b16 %v2021
    %v2161 = vunpack.c.l.b16 %v2022
    %v2162 = vunpack.c.h.b16 %v2022
    %v2163 = vunpack.c.l.b16 %v2023
    %v2164 = vunpack.c.h.b16 %v2023
    %v2165 = vunpack.c.l.b16 %v2024
    %v2166 = vpack.c.b16 %v2091, %v2086
    %v2167 = vpack.c.b16 %v2092, %v2087
    %v2168 = vpack.c.b16 %v2093, %v2088
    %v2169 = vpack.c.b16 %v2094, %v2089
    %v2170 = vpack.c.b16 %v2095, %v2090
    %v2171 = vpack.c.b16 %v2101, %v2096
    %v2172 = vpack.c.b16 %v2102, %v2097
    %v2173 = vpack.c.b16 %v2103, %v2098
    %v2174 = vpack.c.b16 %v2104, %v2099
    %v2175 = vpack.c.b16 %v2105, %v2100
    %v2176 = vpack.c.b16 %v2111, %v2106
    %v2177 = vpack.c.b16 %v2112, %v2107
    %v2178 = vpack.c.b16 %v2113, %v2108
    %v2179 = vpack.c.b16 %v2114, %v2109
    %v2180 = vpack.c.b16 %v2115, %v2110
    %v2181 = vpack.c.b16 %v2121, %v2116
    %v2182 = vpack.c.b16 %v2122, %v2117
    %v2183 = vpack.c.b16 %v2123, %v2118
    %v2184 = vpack.c.b16 %v2124, %v2119
    %v2185 = vpack.c.b16 %v2125, %v2120
    %v2186 = vpack.c.b16 %v2131, %v2126
    %v2187 = vpack.c.b16 %v2132, %v2127
    %v2188 = vpack.c.b16 %v2133, %v2128
    %v2189 = vpack.c.b16 %v2134, %v2129
    %v2190 = vpack.c.b16 %v2135, %v2130
    %v2191 = vpack.c.b16 %v2141, %v2136
    %v2192 = vpack.c.b16 %v2142, %v2137
    %v2193 = vpack.c.b16 %v2143, %v2138
    %v2194 = vpack.c.b16 %v2144, %v2139
    %v2195 = vpack.c.b16 %v2145, %v2140
    %v2196 = vpack.c.b16 %v2151, %v2146
    %v2197 = vpack.c.b16 %v2152, %v2147
    %v2198 = vpack.c.b16 %v2153, %v2148
    %v2199 = vpack.c.b16 %v2154, %v2149
    %v2200 = vpack.c.b16 %v2155, %v2150
    %v2201 = vpack.c.b16 %v2161, %v2156
    %v2202 = vpack.c.b16 %v2162, %v2157
    %v2203 = vpack.c.b16 %v2163, %v2158
    %v2204 = vpack.c.b16 %v2164, %v2159
    %v2205 = vpack.c.b16 %v2165, %v2160
    %2246 = vmatpush.bf16.msra.mxu0 %v2201
    %2247 = vmatpush.bf16.msra.mxu0 %v2196
    %2248 = vmatpush.bf16.msra.mxu0 %v2191
    %2249 = vmatpush.bf16.msra.mxu0 %v2186
    %2250 = vmatpush.bf16.msra.mxu0 %v2181
    %2251 = vmatpush.bf16.msra.mxu0 %v2176
    %2252 = vmatpush.bf16.msra.mxu0 %v2171
    %2253 = vmatpush.bf16.msra.mxu0 %v2166
    %2254 = vmatmul.bf16.gmra.mxu0 %v80
    %v2255 = vpop.f32.mrf.mxu0
    %v2256 = vadd.f32 %v2028, %v2255
    %v2257 = vpop.f32.mrf.mxu0
    %2258 = vdwg.mxu0
    %2259 = vmatpush.bf16.msra.mxu0 %v2202
    %2260 = vmatpush.bf16.msra.mxu0 %v2197
    %2261 = vmatpush.bf16.msra.mxu0 %v2192
    %2262 = vmatpush.bf16.msra.mxu0 %v2187
    %2263 = vmatpush.bf16.msra.mxu0 %v2182
    %2264 = vmatpush.bf16.msra.mxu0 %v2177
    %2265 = vmatpush.bf16.msra.mxu0 %v2172
    %2266 = vmatpush.bf16.msra.mxu0 %v2167
    %2267 = vmatmul.bf16.gmra.mxu0 %v80
    %v2268 = vpop.f32.mrf.mxu0
    %v2269 = vadd.f32 %v2029, %v2268
    %v2270 = vpop.f32.mrf.mxu0
    %2271 = vdwg.mxu0
    %2272 = vmatpush.bf16.msra.mxu0 %v2203
    %2273 = vmatpush.bf16.msra.mxu0 %v2198
    %2274 = vmatpush.bf16.msra.mxu0 %v2193
    %2275 = vmatpush.bf16.msra.mxu0 %v2188
    %2276 = vmatpush.bf16.msra.mxu0 %v2183
    %2277 = vmatpush.bf16.msra.mxu0 %v2178
    %2278 = vmatpush.bf16.msra.mxu0 %v2173
    %2279 = vmatpush.bf16.msra.mxu0 %v2168
    %2280 = vmatmul.bf16.gmra.mxu0 %v80
    %v2281 = vpop.f32.mrf.mxu0
    %v2282 = vadd.f32 %v2030, %v2281
    %v2283 = vpop.f32.mrf.mxu0
    %2284 = vdwg.mxu0
    %2285 = vmatpush.bf16.msra.mxu0 %v2204
    %2286 = vmatpush.bf16.msra.mxu0 %v2199
    %2287 = vmatpush.bf16.msra.mxu0 %v2194
    %2288 = vmatpush.bf16.msra.mxu0 %v2189
    %2289 = vmatpush.bf16.msra.mxu0 %v2184
    %2290 = vmatpush.bf16.msra.mxu0 %v2179
    %2291 = vmatpush.bf16.msra.mxu0 %v2174
    %2292 = vmatpush.bf16.msra.mxu0 %v2169
    %2293 = vmatmul.bf16.gmra.mxu0 %v80
    %v2294 = vpop.f32.mrf.mxu0
    %v2295 = vadd.f32 %v2031, %v2294
    %v2296 = vpop.f32.mrf.mxu0
    %2297 = vdwg.mxu0
    %2298 = vmatpush.bf16.msra.mxu0 %v2205
    %2299 = vmatpush.bf16.msra.mxu0 %v2200
    %2300 = vmatpush.bf16.msra.mxu0 %v2195
    %2301 = vmatpush.bf16.msra.mxu0 %v2190
    %2302 = vmatpush.bf16.msra.mxu0 %v2185
    %2303 = vmatpush.bf16.msra.mxu0 %v2180
    %2304 = vmatpush.bf16.msra.mxu0 %v2175
    %2305 = vmatpush.bf16.msra.mxu0 %v2170
    %2306 = vmatmul.bf16.gmra.mxu0 %v80
    %v2307 = vpop.f32.mrf.mxu0
    %v2308 = vadd.f32 %v2032, %v2307
    %v2309 = vpop.f32.mrf.mxu0
    %2310 = vdwg.mxu0
    %v2311 = vpack.c.bf16 %v1973, %v1973
    %s2312 = scalar_lea.vmem [#allocation2], 256
    %v2313 = vld [vmem:[%s2312] sm:$0xff]
    %v2314 = vld [vmem:[%s2312 + $0x8] sm:$0xff]
    %v2315 = vld [vmem:[%s2312 + $0x10] sm:$0xff]
    %v2316 = vld [vmem:[%s2312 + $0x18] sm:$0xff]
    %v2317 = vld [vmem:[%s2312 + $0x20] sm:$0xff]
    %v2318 = vld [vmem:[%s2312 + $0x28] sm:$0xff]
    %v2319 = vld [vmem:[%s2312 + $0x30] sm:$0xff]
    %v2320 = vld [vmem:[%s2312 + $0x38] sm:$0xff]
    %v2321 = vld [vmem:[%s2312 + $0x40] sm:$0xff]
    %v2322 = vld [vmem:[%s2312 + $0x48] sm:$0xff]
    %v2323 = vld [vmem:[%s2312 + $0x50] sm:$0xff]
    %v2324 = vld [vmem:[%s2312 + $0x58] sm:$0xff]
    %v2325 = vld [vmem:[%s2312 + $0x60] sm:$0xff]
    %v2326 = vld [vmem:[%s2312 + $0x68] sm:$0xff]
    %v2327 = vld [vmem:[%s2312 + $0x70] sm:$0xff]
    %v2328 = vld [vmem:[%s2312 + $0x78] sm:$0xff]
    %2330 = vset.pattern.permute.xlu0 0
    %2331 = vperm.xlu0 %2330, %v1959
    %v2332 = vpop.permute.xlu0 %2331
    %v2334 = vmul.f32 %v2332, %v2256
    %v2335 = vmul.f32 %v2332, %v2269
    %v2352 = vunpack.c.l.b16 %v2313
    %v2353 = vunpack.c.h.b16 %v2313
    %v2354 = vunpack.c.l.b16 %v2314
    %v2355 = vunpack.c.h.b16 %v2314
    %v2356 = vunpack.c.l.b16 %v2315
    %v2357 = vunpack.c.h.b16 %v2315
    %v2358 = vunpack.c.l.b16 %v2316
    %v2359 = vunpack.c.h.b16 %v2316
    %v2360 = vunpack.c.l.b16 %v2317
    %v2361 = vunpack.c.h.b16 %v2317
    %v2362 = vunpack.c.l.b16 %v2318
    %v2363 = vunpack.c.h.b16 %v2318
    %v2364 = vunpack.c.l.b16 %v2319
    %v2365 = vunpack.c.h.b16 %v2319
    %v2366 = vunpack.c.l.b16 %v2320
    %v2367 = vunpack.c.h.b16 %v2320
    %v2368 = vunpack.c.l.b16 %v2321
    %v2369 = vunpack.c.h.b16 %v2321
    %v2370 = vunpack.c.l.b16 %v2322
    %v2371 = vunpack.c.h.b16 %v2322
    %v2372 = vunpack.c.l.b16 %v2323
    %v2373 = vunpack.c.h.b16 %v2323
    %v2374 = vunpack.c.l.b16 %v2324
    %v2375 = vunpack.c.h.b16 %v2324
    %v2376 = vunpack.c.l.b16 %v2325
    %v2377 = vunpack.c.h.b16 %v2325
    %v2378 = vunpack.c.l.b16 %v2326
    %v2379 = vunpack.c.h.b16 %v2326
    %v2380 = vunpack.c.l.b16 %v2327
    %v2381 = vunpack.c.h.b16 %v2327
    %v2382 = vunpack.c.l.b16 %v2328
    %v2383 = vunpack.c.h.b16 %v2328
    %v2384 = vpack.c.b16 %v2354, %v2352
    %v2385 = vpack.c.b16 %v2355, %v2353
    %v2386 = vpack.c.b16 %v2358, %v2356
    %v2387 = vpack.c.b16 %v2359, %v2357
    %v2388 = vpack.c.b16 %v2362, %v2360
    %v2389 = vpack.c.b16 %v2363, %v2361
    %v2390 = vpack.c.b16 %v2366, %v2364
    %v2391 = vpack.c.b16 %v2367, %v2365
    %v2392 = vpack.c.b16 %v2370, %v2368
    %v2393 = vpack.c.b16 %v2371, %v2369
    %v2394 = vpack.c.b16 %v2374, %v2372
    %v2395 = vpack.c.b16 %v2375, %v2373
    %v2396 = vpack.c.b16 %v2378, %v2376
    %v2397 = vpack.c.b16 %v2379, %v2377
    %v2398 = vpack.c.b16 %v2382, %v2380
    %v2399 = vpack.c.b16 %v2383, %v2381
    %2416 = vmatpush.bf16.msra.mxu0 %v2398
    %2417 = vmatpush.bf16.msra.mxu0 %v2396
    %2418 = vmatpush.bf16.msra.mxu0 %v2394
    %2419 = vmatpush.bf16.msra.mxu0 %v2392
    %2420 = vmatpush.bf16.msra.mxu0 %v2390
    %2421 = vmatpush.bf16.msra.mxu0 %v2388
    %2422 = vmatpush.bf16.msra.mxu0 %v2386
    %2423 = vmatpush.bf16.msra.mxu0 %v2384
    %2424 = vmatmul.bf16.gmra.mxu0 %v2311
    %v2425 = vpop.f32.mrf.mxu0
    %v2426 = vadd.f32 %v2334, %v2425
    %v2427 = vpop.f32.mrf.mxu0
    %2428 = vdwg.mxu0
    %2429 = vmatpush.bf16.msra.mxu0 %v2399
    %2430 = vmatpush.bf16.msra.mxu0 %v2397
    %2431 = vmatpush.bf16.msra.mxu0 %v2395
    %2432 = vmatpush.bf16.msra.mxu0 %v2393
    %2433 = vmatpush.bf16.msra.mxu0 %v2391
    %2434 = vmatpush.bf16.msra.mxu0 %v2389
    %2435 = vmatpush.bf16.msra.mxu0 %v2387
    %2436 = vmatpush.bf16.msra.mxu0 %v2385
    %2437 = vmatmul.bf16.gmra.mxu0 %v2311
    %v2438 = vpop.f32.mrf.mxu0
    %v2439 = vadd.f32 %v2335, %v2438
    %v2440 = vpop.f32.mrf.mxu0
    %2441 = vdwg.mxu0
    %v2442 = vpack.c.bf16 %v2426, %v2426
    %v2443 = vpack.c.bf16 %v2439, %v2439
    %s2444 = scalar_lea.vmem [#allocation6], 768
    %v2445 = vld [vmem:[%s2444] sm:$0xff]
    %v2446 = vld [vmem:[%s2444 + $0x8] sm:$0xf]
    %v2447 = vld [vmem:[%s2444 + $0xc] sm:$0xff]
    %v2448 = vld [vmem:[%s2444 + $0x14] sm:$0xf]
    %v2449 = vld [vmem:[%s2444 + $0x18] sm:$0xff]
    %v2450 = vld [vmem:[%s2444 + $0x20] sm:$0xf]
    %v2451 = vld [vmem:[%s2444 + $0x24] sm:$0xff]
    %v2452 = vld [vmem:[%s2444 + $0x2c] sm:$0xf]
    %v2453 = vld [vmem:[%s2444 + $0x30] sm:$0xff]
    %v2454 = vld [vmem:[%s2444 + $0x38] sm:$0xf]
    %v2455 = vld [vmem:[%s2444 + $0x3c] sm:$0xff]
    %v2456 = vld [vmem:[%s2444 + $0x44] sm:$0xf]
    %v2457 = vld [vmem:[%s2444 + $0x48] sm:$0xff]
    %v2458 = vld [vmem:[%s2444 + $0x50] sm:$0xf]
    %v2459 = vld [vmem:[%s2444 + $0x54] sm:$0xff]
    %v2460 = vld [vmem:[%s2444 + $0x5c] sm:$0xf]
    %v2461 = vld [vmem:[%s2444 + $0x60] sm:$0xff]
    %v2462 = vld [vmem:[%s2444 + $0x68] sm:$0xf]
    %v2463 = vld [vmem:[%s2444 + $0x6c] sm:$0xff]
    %v2464 = vld [vmem:[%s2444 + $0x74] sm:$0xf]
    %v2465 = vld [vmem:[%s2444 + $0x78] sm:$0xff]
    %v2466 = vld [vmem:[%s2444 + $0x80] sm:$0xf]
    %v2467 = vld [vmem:[%s2444 + $0x84] sm:$0xff]
    %v2468 = vld [vmem:[%s2444 + $0x8c] sm:$0xf]
    %v2469 = vld [vmem:[%s2444 + $0x90] sm:$0xff]
    %v2470 = vld [vmem:[%s2444 + $0x98] sm:$0xf]
    %v2471 = vld [vmem:[%s2444 + $0x9c] sm:$0xff]
    %v2472 = vld [vmem:[%s2444 + $0xa4] sm:$0xf]
    %v2473 = vld [vmem:[%s2444 + $0xa8] sm:$0xff]
    %v2474 = vld [vmem:[%s2444 + $0xb0] sm:$0xf]
    %v2475 = vld [vmem:[%s2444 + $0xb4] sm:$0xff]
    %v2476 = vld [vmem:[%s2444 + $0xbc] sm:$0xf]
    %v2477 = vld [vmem:[%s2444 + $0xc0] sm:$0xff]
    %v2478 = vld [vmem:[%s2444 + $0xc8] sm:$0xf]
    %v2479 = vld [vmem:[%s2444 + $0xcc] sm:$0xff]
    %v2480 = vld [vmem:[%s2444 + $0xd4] sm:$0xf]
    %v2481 = vld [vmem:[%s2444 + $0xd8] sm:$0xff]
    %v2482 = vld [vmem:[%s2444 + $0xe0] sm:$0xf]
    %v2483 = vld [vmem:[%s2444 + $0xe4] sm:$0xff]
    %v2484 = vld [vmem:[%s2444 + $0xec] sm:$0xf]
    %v2485 = vld [vmem:[%s2444 + $0xf0] sm:$0xff]
    %v2486 = vld [vmem:[%s2444 + $0xf8] sm:$0xf]
    %v2487 = vld [vmem:[%s2444 + $0xfc] sm:$0xff]
    %v2488 = vld [vmem:[%s2444 + $0x104] sm:$0xf]
    %v2489 = vld [vmem:[%s2444 + $0x108] sm:$0xff]
    %v2490 = vld [vmem:[%s2444 + $0x110] sm:$0xf]
    %v2491 = vld [vmem:[%s2444 + $0x114] sm:$0xff]
    %v2492 = vld [vmem:[%s2444 + $0x11c] sm:$0xf]
    %v2493 = vld [vmem:[%s2444 + $0x120] sm:$0xff]
    %v2494 = vld [vmem:[%s2444 + $0x128] sm:$0xf]
    %v2495 = vld [vmem:[%s2444 + $0x12c] sm:$0xff]
    %v2496 = vld [vmem:[%s2444 + $0x134] sm:$0xf]
    %v2497 = vld [vmem:[%s2444 + $0x138] sm:$0xff]
    %v2498 = vld [vmem:[%s2444 + $0x140] sm:$0xf]
    %v2499 = vld [vmem:[%s2444 + $0x144] sm:$0xff]
    %v2500 = vld [vmem:[%s2444 + $0x14c] sm:$0xf]
    %v2501 = vld [vmem:[%s2444 + $0x150] sm:$0xff]
    %v2502 = vld [vmem:[%s2444 + $0x158] sm:$0xf]
    %v2503 = vld [vmem:[%s2444 + $0x15c] sm:$0xff]
    %v2504 = vld [vmem:[%s2444 + $0x164] sm:$0xf]
    %v2505 = vld [vmem:[%s2444 + $0x168] sm:$0xff]
    %v2506 = vld [vmem:[%s2444 + $0x170] sm:$0xf]
    %v2507 = vld [vmem:[%s2444 + $0x174] sm:$0xff]
    %v2508 = vld [vmem:[%s2444 + $0x17c] sm:$0xf]
    %s2509 = scalar_lea.vmem %s7, 6
    %v2510 = vld [vmem:[%s2509] sm:$0x7]
    %v2512 = vperm.slane %v2510, 0
    %v2513 = vperm.slane %v2510, 1
    %v2514 = vperm.slane %v2510, 2
    %v2582 = vunpack.c.l.b16 %v2445
    %v2583 = vunpack.c.h.b16 %v2445
    %v2584 = vunpack.c.l.b16 %v2446
    %v2585 = vunpack.c.l.b16 %v2447
    %v2586 = vunpack.c.h.b16 %v2447
    %v2587 = vunpack.c.l.b16 %v2448
    %v2588 = vunpack.c.l.b16 %v2449
    %v2589 = vunpack.c.h.b16 %v2449
    %v2590 = vunpack.c.l.b16 %v2450
    %v2591 = vunpack.c.l.b16 %v2451
    %v2592 = vunpack.c.h.b16 %v2451
    %v2593 = vunpack.c.l.b16 %v2452
    %v2594 = vunpack.c.l.b16 %v2453
    %v2595 = vunpack.c.h.b16 %v2453
    %v2596 = vunpack.c.l.b16 %v2454
    %v2597 = vunpack.c.l.b16 %v2455
    %v2598 = vunpack.c.h.b16 %v2455
    %v2599 = vunpack.c.l.b16 %v2456
    %v2600 = vunpack.c.l.b16 %v2457
    %v2601 = vunpack.c.h.b16 %v2457
    %v2602 = vunpack.c.l.b16 %v2458
    %v2603 = vunpack.c.l.b16 %v2459
    %v2604 = vunpack.c.h.b16 %v2459
    %v2605 = vunpack.c.l.b16 %v2460
    %v2606 = vunpack.c.l.b16 %v2461
    %v2607 = vunpack.c.h.b16 %v2461
    %v2608 = vunpack.c.l.b16 %v2462
    %v2609 = vunpack.c.l.b16 %v2463
    %v2610 = vunpack.c.h.b16 %v2463
    %v2611 = vunpack.c.l.b16 %v2464
    %v2612 = vunpack.c.l.b16 %v2465
    %v2613 = vunpack.c.h.b16 %v2465
    %v2614 = vunpack.c.l.b16 %v2466
    %v2615 = vunpack.c.l.b16 %v2467
    %v2616 = vunpack.c.h.b16 %v2467
    %v2617 = vunpack.c.l.b16 %v2468
    %v2618 = vunpack.c.l.b16 %v2469
    %v2619 = vunpack.c.h.b16 %v2469
    %v2620 = vunpack.c.l.b16 %v2470
    %v2621 = vunpack.c.l.b16 %v2471
    %v2622 = vunpack.c.h.b16 %v2471
    %v2623 = vunpack.c.l.b16 %v2472
    %v2624 = vunpack.c.l.b16 %v2473
    %v2625 = vunpack.c.h.b16 %v2473
    %v2626 = vunpack.c.l.b16 %v2474
    %v2627 = vunpack.c.l.b16 %v2475
    %v2628 = vunpack.c.h.b16 %v2475
    %v2629 = vunpack.c.l.b16 %v2476
    %v2630 = vunpack.c.l.b16 %v2477
    %v2631 = vunpack.c.h.b16 %v2477
    %v2632 = vunpack.c.l.b16 %v2478
    %v2633 = vunpack.c.l.b16 %v2479
    %v2634 = vunpack.c.h.b16 %v2479
    %v2635 = vunpack.c.l.b16 %v2480
    %v2636 = vunpack.c.l.b16 %v2481
    %v2637 = vunpack.c.h.b16 %v2481
    %v2638 = vunpack.c.l.b16 %v2482
    %v2639 = vunpack.c.l.b16 %v2483
    %v2640 = vunpack.c.h.b16 %v2483
    %v2641 = vunpack.c.l.b16 %v2484
    %v2642 = vunpack.c.l.b16 %v2485
    %v2643 = vunpack.c.h.b16 %v2485
    %v2644 = vunpack.c.l.b16 %v2486
    %v2645 = vunpack.c.l.b16 %v2487
    %v2646 = vunpack.c.h.b16 %v2487
    %v2647 = vunpack.c.l.b16 %v2488
    %v2648 = vunpack.c.l.b16 %v2489
    %v2649 = vunpack.c.h.b16 %v2489
    %v2650 = vunpack.c.l.b16 %v2490
    %v2651 = vunpack.c.l.b16 %v2491
    %v2652 = vunpack.c.h.b16 %v2491
    %v2653 = vunpack.c.l.b16 %v2492
    %v2654 = vunpack.c.l.b16 %v2493
    %v2655 = vunpack.c.h.b16 %v2493
    %v2656 = vunpack.c.l.b16 %v2494
    %v2657 = vunpack.c.l.b16 %v2495
    %v2658 = vunpack.c.h.b16 %v2495
    %v2659 = vunpack.c.l.b16 %v2496
    %v2660 = vunpack.c.l.b16 %v2497
    %v2661 = vunpack.c.h.b16 %v2497
    %v2662 = vunpack.c.l.b16 %v2498
    %v2663 = vunpack.c.l.b16 %v2499
    %v2664 = vunpack.c.h.b16 %v2499
    %v2665 = vunpack.c.l.b16 %v2500
    %v2666 = vunpack.c.l.b16 %v2501
    %v2667 = vunpack.c.h.b16 %v2501
    %v2668 = vunpack.c.l.b16 %v2502
    %v2669 = vunpack.c.l.b16 %v2503
    %v2670 = vunpack.c.h.b16 %v2503
    %v2671 = vunpack.c.l.b16 %v2504
    %v2672 = vunpack.c.l.b16 %v2505
    %v2673 = vunpack.c.h.b16 %v2505
    %v2674 = vunpack.c.l.b16 %v2506
    %v2675 = vunpack.c.l.b16 %v2507
    %v2676 = vunpack.c.h.b16 %v2507
    %v2677 = vunpack.c.l.b16 %v2508
    %v2678 = vpack.c.b16 %v2585, %v2582
    %v2679 = vpack.c.b16 %v2586, %v2583
    %v2680 = vpack.c.b16 %v2587, %v2584
    %v2681 = vpack.c.b16 %v2591, %v2588
    %v2682 = vpack.c.b16 %v2592, %v2589
    %v2683 = vpack.c.b16 %v2593, %v2590
    %v2684 = vpack.c.b16 %v2597, %v2594
    %v2685 = vpack.c.b16 %v2598, %v2595
    %v2686 = vpack.c.b16 %v2599, %v2596
    %v2687 = vpack.c.b16 %v2603, %v2600
    %v2688 = vpack.c.b16 %v2604, %v2601
    %v2689 = vpack.c.b16 %v2605, %v2602
    %v2690 = vpack.c.b16 %v2609, %v2606
    %v2691 = vpack.c.b16 %v2610, %v2607
    %v2692 = vpack.c.b16 %v2611, %v2608
    %v2693 = vpack.c.b16 %v2615, %v2612
    %v2694 = vpack.c.b16 %v2616, %v2613
    %v2695 = vpack.c.b16 %v2617, %v2614
    %v2696 = vpack.c.b16 %v2621, %v2618
    %v2697 = vpack.c.b16 %v2622, %v2619
    %v2698 = vpack.c.b16 %v2623, %v2620
    %v2699 = vpack.c.b16 %v2627, %v2624
    %v2700 = vpack.c.b16 %v2628, %v2625
    %v2701 = vpack.c.b16 %v2629, %v2626
    %v2702 = vpack.c.b16 %v2633, %v2630
    %v2703 = vpack.c.b16 %v2634, %v2631
    %v2704 = vpack.c.b16 %v2635, %v2632
    %v2705 = vpack.c.b16 %v2639, %v2636
    %v2706 = vpack.c.b16 %v2640, %v2637
    %v2707 = vpack.c.b16 %v2641, %v2638
    %v2708 = vpack.c.b16 %v2645, %v2642
    %v2709 = vpack.c.b16 %v2646, %v2643
    %v2710 = vpack.c.b16 %v2647, %v2644
    %v2711 = vpack.c.b16 %v2651, %v2648
    %v2712 = vpack.c.b16 %v2652, %v2649
    %v2713 = vpack.c.b16 %v2653, %v2650
    %v2714 = vpack.c.b16 %v2657, %v2654
    %v2715 = vpack.c.b16 %v2658, %v2655
    %v2716 = vpack.c.b16 %v2659, %v2656
    %v2717 = vpack.c.b16 %v2663, %v2660
    %v2718 = vpack.c.b16 %v2664, %v2661
    %v2719 = vpack.c.b16 %v2665, %v2662
    %v2720 = vpack.c.b16 %v2669, %v2666
    %v2721 = vpack.c.b16 %v2670, %v2667
    %v2722 = vpack.c.b16 %v2671, %v2668
    %v2723 = vpack.c.b16 %v2675, %v2672
    %v2724 = vpack.c.b16 %v2676, %v2673
    %v2725 = vpack.c.b16 %v2677, %v2674
    %2774 = vmatpush.bf16.msra.mxu0 %v2699
    %2775 = vmatpush.bf16.msra.mxu0 %v2696
    %2776 = vmatpush.bf16.msra.mxu0 %v2693
    %2777 = vmatpush.bf16.msra.mxu0 %v2690
    %2778 = vmatpush.bf16.msra.mxu0 %v2687
    %2779 = vmatpush.bf16.msra.mxu0 %v2684
    %2780 = vmatpush.bf16.msra.mxu0 %v2681
    %2781 = vmatpush.bf16.msra.mxu0 %v2678
    %2782 = vmatmul.bf16.gmra.mxu0 %v2442
    %v2783 = vpop.f32.mrf.mxu0
    %v2784 = vadd.f32 %v2512, %v2783
    %v2785 = vpop.f32.mrf.mxu0
    %2786 = vdwg.mxu0
    %2787 = vmatpush.bf16.msra.mxu0 %v2723
    %2788 = vmatpush.bf16.msra.mxu0 %v2720
    %2789 = vmatpush.bf16.msra.mxu0 %v2717
    %2790 = vmatpush.bf16.msra.mxu0 %v2714
    %2791 = vmatpush.bf16.msra.mxu0 %v2711
    %2792 = vmatpush.bf16.msra.mxu0 %v2708
    %2793 = vmatpush.bf16.msra.mxu0 %v2705
    %2794 = vmatpush.bf16.msra.mxu0 %v2702
    %2795 = vmatmul.bf16.gmra.mxu0 %v2443
    %v2796 = vpop.f32.mrf.mxu0
    %v2797 = vadd.f32 %v2784, %v2796
    %v2798 = vpop.f32.mrf.mxu0
    %2799 = vdwg.mxu0
    %2800 = vmatpush.bf16.msra.mxu0 %v2700
    %2801 = vmatpush.bf16.msra.mxu0 %v2697
    %2802 = vmatpush.bf16.msra.mxu0 %v2694
    %2803 = vmatpush.bf16.msra.mxu0 %v2691
    %2804 = vmatpush.bf16.msra.mxu0 %v2688
    %2805 = vmatpush.bf16.msra.mxu0 %v2685
    %2806 = vmatpush.bf16.msra.mxu0 %v2682
    %2807 = vmatpush.bf16.msra.mxu0 %v2679
    %2808 = vmatmul.bf16.gmra.mxu0 %v2442
    %v2809 = vpop.f32.mrf.mxu0
    %v2810 = vadd.f32 %v2513, %v2809
    %v2811 = vpop.f32.mrf.mxu0
    %2812 = vdwg.mxu0
    %2813 = vmatpush.bf16.msra.mxu0 %v2724
    %2814 = vmatpush.bf16.msra.mxu0 %v2721
    %2815 = vmatpush.bf16.msra.mxu0 %v2718
    %2816 = vmatpush.bf16.msra.mxu0 %v2715
    %2817 = vmatpush.bf16.msra.mxu0 %v2712
    %2818 = vmatpush.bf16.msra.mxu0 %v2709
    %2819 = vmatpush.bf16.msra.mxu0 %v2706
    %2820 = vmatpush.bf16.msra.mxu0 %v2703
    %2821 = vmatmul.bf16.gmra.mxu0 %v2443
    %v2822 = vpop.f32.mrf.mxu0
    %v2823 = vadd.f32 %v2810, %v2822
    %v2824 = vpop.f32.mrf.mxu0
    %2825 = vdwg.mxu0
    %2826 = vmatpush.bf16.msra.mxu0 %v2701
    %2827 = vmatpush.bf16.msra.mxu0 %v2698
    %2828 = vmatpush.bf16.msra.mxu0 %v2695
    %2829 = vmatpush.bf16.msra.mxu0 %v2692
    %2830 = vmatpush.bf16.msra.mxu0 %v2689
    %2831 = vmatpush.bf16.msra.mxu0 %v2686
    %2832 = vmatpush.bf16.msra.mxu0 %v2683
    %2833 = vmatpush.bf16.msra.mxu0 %v2680
    %2834 = vmatmul.bf16.gmra.mxu0 %v2442
    %v2835 = vpop.f32.mrf.mxu0
    %v2836 = vadd.f32 %v2514, %v2835
    %v2837 = vpop.f32.mrf.mxu0
    %2838 = vdwg.mxu0
    %2839 = vmatpush.bf16.msra.mxu0 %v2725
    %2840 = vmatpush.bf16.msra.mxu0 %v2722
    %2841 = vmatpush.bf16.msra.mxu0 %v2719
    %2842 = vmatpush.bf16.msra.mxu0 %v2716
    %2843 = vmatpush.bf16.msra.mxu0 %v2713
    %2844 = vmatpush.bf16.msra.mxu0 %v2710
    %2845 = vmatpush.bf16.msra.mxu0 %v2707
    %2846 = vmatpush.bf16.msra.mxu0 %v2704
    %2847 = vmatmul.bf16.gmra.mxu0 %v2443
    %v2848 = vpop.f32.mrf.mxu0
    %v2849 = vadd.f32 %v2836, %v2848
    %v2850 = vpop.f32.mrf.mxu0
    %2851 = vdwg.mxu0
    %v2852 = vadd.f32 %v2797, %v2282
    %v2853 = vxor.u32 %v2852, 2147483648
    %v2854 = vmul.f32 %v2853, 1.442695
    %v2855 = vpow.pop %v2854
    %v2856 = vadd.f32 %v2855, 1.0
    %v2857 = vrcp.pop %v2856
    %v2858 = vmul.f32 %v2856, %v2857
    %v2859 = vsub.f32 1.0, %v2858
    %v2860 = vmul.f32 %v2857, %v2859
    %v2861 = vadd.f32 %v2857, %v2860
    %vm2862 = vweird.f32 %v2856
    %vm2863 = vweird.f32 %v2857
    %vm2864 = vmor %vm2862, %vm2863
    %v2865 = vsel %vm2864, %v2857, %v2861
    %v2866 = vand.u32 2147483647, %v2856
    %vm2867 = vcmp.eq.f32.partialorder %v2866, 8.507059e+37
    %v2868 = vand.u32 %v2856, 2147483648
    %v2869 = vor.u32 1.1754944e-38, %v2868
    %v2870 = vsel %vm2867, %v2869, %v2865
    %v2871 = vmul.f32 1.0, %v2870
    %v2872 = vadd.f32 %v2823, %v2295
    %v2873 = vxor.u32 %v2872, 2147483648
    %v2874 = vmul.f32 %v2873, 1.442695
    %v2875 = vpow.pop %v2874
    %v2876 = vadd.f32 %v2875, 1.0
    %v2877 = vrcp.pop %v2876
    %v2878 = vmul.f32 %v2876, %v2877
    %v2879 = vsub.f32 1.0, %v2878
    %v2880 = vmul.f32 %v2877, %v2879
    %v2881 = vadd.f32 %v2877, %v2880
    %vm2882 = vweird.f32 %v2876
    %vm2883 = vweird.f32 %v2877
    %vm2884 = vmor %vm2882, %vm2883
    %v2885 = vsel %vm2884, %v2877, %v2881
    %v2886 = vand.u32 2147483647, %v2876
    %vm2887 = vcmp.eq.f32.partialorder %v2886, 8.507059e+37
    %v2888 = vand.u32 %v2876, 2147483648
    %v2889 = vor.u32 1.1754944e-38, %v2888
    %v2890 = vsel %vm2887, %v2889, %v2885
    %v2891 = vmul.f32 1.0, %v2890
    %v2892 = vmul.f32 %v2871, %v2308
    %v2893 = vadd.f32 %v2849, %v2892
    %v2894 = vtanh.pop %v2893
    %v2895 = vsub.f32 1.0, %v2891
    %v2896 = vmul.f32 %v2895, %v2894
    %v2897 = vmul.f32 %v2891, %v77
    %v2898 = vadd.f32 %v2896, %v2897
    %v2899 = vpack.c.bf16 %v2898, %v2898
    %v2901 = vsel %vm85, %v2899, 0
    %2903 = vmatpush.bf16.msra.mxu0 0
    %2904 = vmatpush.bf16.msra.mxu0 0
    %2905 = vmatpush.bf16.msra.mxu0 0
    %2906 = vmatpush.bf16.msra.mxu0 0
    %2907 = vmatpush.bf16.msra.mxu0 0
    %2908 = vmatpush.bf16.msra.mxu0 0
    %2909 = vmatpush.bf16.msra.mxu0 0
    %2910 = vmatpush.bf16.msra.mxu0 %v2901
    %2911 = vmatmul.bf16.gmra.mxu0 %v1961
    %v2912 = vpop.f32.mrf.mxu0
    %v2913 = vadd.f32 0.0, %v2912
    %v2914 = vpop.f32.mrf.mxu0
    %2915 = vdwg.mxu0
    %s2916 = scalar_lea.vmem [#allocation4], 960
    %v2917 = vld [vmem:[%s2916] sm:$0xff]
    %v2918 = vld [vmem:[%s2916 + $0x8] sm:$0xff]
    %v2919 = vld [vmem:[%s2916 + $0x10] sm:$0xf]
    %v2920 = vld [vmem:[%s2916 + $0x14] sm:$0xff]
    %v2921 = vld [vmem:[%s2916 + $0x1c] sm:$0xff]
    %v2922 = vld [vmem:[%s2916 + $0x24] sm:$0xf]
    %v2923 = vld [vmem:[%s2916 + $0x28] sm:$0xff]
    %v2924 = vld [vmem:[%s2916 + $0x30] sm:$0xff]
    %v2925 = vld [vmem:[%s2916 + $0x38] sm:$0xf]
    %v2926 = vld [vmem:[%s2916 + $0x3c] sm:$0xff]
    %v2927 = vld [vmem:[%s2916 + $0x44] sm:$0xff]
    %v2928 = vld [vmem:[%s2916 + $0x4c] sm:$0xf]
    %v2929 = vld [vmem:[%s2916 + $0x50] sm:$0xff]
    %v2930 = vld [vmem:[%s2916 + $0x58] sm:$0xff]
    %v2931 = vld [vmem:[%s2916 + $0x60] sm:$0xf]
    %v2932 = vld [vmem:[%s2916 + $0x64] sm:$0xff]
    %v2933 = vld [vmem:[%s2916 + $0x6c] sm:$0xff]
    %v2934 = vld [vmem:[%s2916 + $0x74] sm:$0xf]
    %v2935 = vld [vmem:[%s2916 + $0x78] sm:$0xff]
    %v2936 = vld [vmem:[%s2916 + $0x80] sm:$0xff]
    %v2937 = vld [vmem:[%s2916 + $0x88] sm:$0xf]
    %v2938 = vld [vmem:[%s2916 + $0x8c] sm:$0xff]
    %v2939 = vld [vmem:[%s2916 + $0x94] sm:$0xff]
    %v2940 = vld [vmem:[%s2916 + $0x9c] sm:$0xf]
    %v2941 = vld [vmem:[%s2916 + $0xa0] sm:$0xff]
    %v2942 = vld [vmem:[%s2916 + $0xa8] sm:$0xff]
    %v2943 = vld [vmem:[%s2916 + $0xb0] sm:$0xf]
    %v2944 = vld [vmem:[%s2916 + $0xb4] sm:$0xff]
    %v2945 = vld [vmem:[%s2916 + $0xbc] sm:$0xff]
    %v2946 = vld [vmem:[%s2916 + $0xc4] sm:$0xf]
    %v2947 = vld [vmem:[%s2916 + $0xc8] sm:$0xff]
    %v2948 = vld [vmem:[%s2916 + $0xd0] sm:$0xff]
    %v2949 = vld [vmem:[%s2916 + $0xd8] sm:$0xf]
    %v2950 = vld [vmem:[%s2916 + $0xdc] sm:$0xff]
    %v2951 = vld [vmem:[%s2916 + $0xe4] sm:$0xff]
    %v2952 = vld [vmem:[%s2916 + $0xec] sm:$0xf]
    %v2953 = vld [vmem:[%s2916 + $0xf0] sm:$0xff]
    %v2954 = vld [vmem:[%s2916 + $0xf8] sm:$0xff]
    %v2955 = vld [vmem:[%s2916 + $0x100] sm:$0xf]
    %v2956 = vld [vmem:[%s2916 + $0x104] sm:$0xff]
    %v2957 = vld [vmem:[%s2916 + $0x10c] sm:$0xff]
    %v2958 = vld [vmem:[%s2916 + $0x114] sm:$0xf]
    %v2959 = vld [vmem:[%s2916 + $0x118] sm:$0xff]
    %v2960 = vld [vmem:[%s2916 + $0x120] sm:$0xff]
    %v2961 = vld [vmem:[%s2916 + $0x128] sm:$0xf]
    %v2962 = vld [vmem:[%s2916 + $0x12c] sm:$0xff]
    %v2963 = vld [vmem:[%s2916 + $0x134] sm:$0xff]
    %v2964 = vld [vmem:[%s2916 + $0x13c] sm:$0xf]
    %s2965 = scalar_lea.vmem %s5, 15
    %v2966 = vld [vmem:[%s2965] sm:$0x1f]
    %v2968 = vperm.slane %v2966, 0
    %v2969 = vperm.slane %v2966, 1
    %v2970 = vperm.slane %v2966, 2
    %v2971 = vperm.slane %v2966, 3
    %v2972 = vperm.slane %v2966, 4
    %v3026 = vunpack.c.l.b16 %v2917
    %v3027 = vunpack.c.h.b16 %v2917
    %v3028 = vunpack.c.l.b16 %v2918
    %v3029 = vunpack.c.h.b16 %v2918
    %v3030 = vunpack.c.l.b16 %v2919
    %v3031 = vunpack.c.l.b16 %v2920
    %v3032 = vunpack.c.h.b16 %v2920
    %v3033 = vunpack.c.l.b16 %v2921
    %v3034 = vunpack.c.h.b16 %v2921
    %v3035 = vunpack.c.l.b16 %v2922
    %v3036 = vunpack.c.l.b16 %v2923
    %v3037 = vunpack.c.h.b16 %v2923
    %v3038 = vunpack.c.l.b16 %v2924
    %v3039 = vunpack.c.h.b16 %v2924
    %v3040 = vunpack.c.l.b16 %v2925
    %v3041 = vunpack.c.l.b16 %v2926
    %v3042 = vunpack.c.h.b16 %v2926
    %v3043 = vunpack.c.l.b16 %v2927
    %v3044 = vunpack.c.h.b16 %v2927
    %v3045 = vunpack.c.l.b16 %v2928
    %v3046 = vunpack.c.l.b16 %v2929
    %v3047 = vunpack.c.h.b16 %v2929
    %v3048 = vunpack.c.l.b16 %v2930
    %v3049 = vunpack.c.h.b16 %v2930
    %v3050 = vunpack.c.l.b16 %v2931
    %v3051 = vunpack.c.l.b16 %v2932
    %v3052 = vunpack.c.h.b16 %v2932
    %v3053 = vunpack.c.l.b16 %v2933
    %v3054 = vunpack.c.h.b16 %v2933
    %v3055 = vunpack.c.l.b16 %v2934
    %v3056 = vunpack.c.l.b16 %v2935
    %v3057 = vunpack.c.h.b16 %v2935
    %v3058 = vunpack.c.l.b16 %v2936
    %v3059 = vunpack.c.h.b16 %v2936
    %v3060 = vunpack.c.l.b16 %v2937
    %v3061 = vunpack.c.l.b16 %v2938
    %v3062 = vunpack.c.h.b16 %v2938
    %v3063 = vunpack.c.l.b16 %v2939
    %v3064 = vunpack.c.h.b16 %v2939
    %v3065 = vunpack.c.l.b16 %v2940
    %v3066 = vunpack.c.l.b16 %v2941
    %v3067 = vunpack.c.h.b16 %v2941
    %v3068 = vunpack.c.l.b16 %v2942
    %v3069 = vunpack.c.h.b16 %v2942
    %v3070 = vunpack.c.l.b16 %v2943
    %v3071 = vunpack.c.l.b16 %v2944
    %v3072 = vunpack.c.h.b16 %v2944
    %v3073 = vunpack.c.l.b16 %v2945
    %v3074 = vunpack.c.h.b16 %v2945
    %v3075 = vunpack.c.l.b16 %v2946
    %v3076 = vunpack.c.l.b16 %v2947
    %v3077 = vunpack.c.h.b16 %v2947
    %v3078 = vunpack.c.l.b16 %v2948
    %v3079 = vunpack.c.h.b16 %v2948
    %v3080 = vunpack.c.l.b16 %v2949
    %v3081 = vunpack.c.l.b16 %v2950
    %v3082 = vunpack.c.h.b16 %v2950
    %v3083 = vunpack.c.l.b16 %v2951
    %v3084 = vunpack.c.h.b16 %v2951
    %v3085 = vunpack.c.l.b16 %v2952
    %v3086 = vunpack.c.l.b16 %v2953
    %v3087 = vunpack.c.h.b16 %v2953
    %v3088 = vunpack.c.l.b16 %v2954
    %v3089 = vunpack.c.h.b16 %v2954
    %v3090 = vunpack.c.l.b16 %v2955
    %v3091 = vunpack.c.l.b16 %v2956
    %v3092 = vunpack.c.h.b16 %v2956
    %v3093 = vunpack.c.l.b16 %v2957
    %v3094 = vunpack.c.h.b16 %v2957
    %v3095 = vunpack.c.l.b16 %v2958
    %v3096 = vunpack.c.l.b16 %v2959
    %v3097 = vunpack.c.h.b16 %v2959
    %v3098 = vunpack.c.l.b16 %v2960
    %v3099 = vunpack.c.h.b16 %v2960
    %v3100 = vunpack.c.l.b16 %v2961
    %v3101 = vunpack.c.l.b16 %v2962
    %v3102 = vunpack.c.h.b16 %v2962
    %v3103 = vunpack.c.l.b16 %v2963
    %v3104 = vunpack.c.h.b16 %v2963
    %v3105 = vunpack.c.l.b16 %v2964
    %v3106 = vpack.c.b16 %v3031, %v3026
    %v3107 = vpack.c.b16 %v3032, %v3027
    %v3108 = vpack.c.b16 %v3033, %v3028
    %v3109 = vpack.c.b16 %v3034, %v3029
    %v3110 = vpack.c.b16 %v3035, %v3030
    %v3111 = vpack.c.b16 %v3041, %v3036
    %v3112 = vpack.c.b16 %v3042, %v3037
    %v3113 = vpack.c.b16 %v3043, %v3038
    %v3114 = vpack.c.b16 %v3044, %v3039
    %v3115 = vpack.c.b16 %v3045, %v3040
    %v3116 = vpack.c.b16 %v3051, %v3046
    %v3117 = vpack.c.b16 %v3052, %v3047
    %v3118 = vpack.c.b16 %v3053, %v3048
    %v3119 = vpack.c.b16 %v3054, %v3049
    %v3120 = vpack.c.b16 %v3055, %v3050
    %v3121 = vpack.c.b16 %v3061, %v3056
    %v3122 = vpack.c.b16 %v3062, %v3057
    %v3123 = vpack.c.b16 %v3063, %v3058
    %v3124 = vpack.c.b16 %v3064, %v3059
    %v3125 = vpack.c.b16 %v3065, %v3060
    %v3126 = vpack.c.b16 %v3071, %v3066
    %v3127 = vpack.c.b16 %v3072, %v3067
    %v3128 = vpack.c.b16 %v3073, %v3068
    %v3129 = vpack.c.b16 %v3074, %v3069
    %v3130 = vpack.c.b16 %v3075, %v3070
    %v3131 = vpack.c.b16 %v3081, %v3076
    %v3132 = vpack.c.b16 %v3082, %v3077
    %v3133 = vpack.c.b16 %v3083, %v3078
    %v3134 = vpack.c.b16 %v3084, %v3079
    %v3135 = vpack.c.b16 %v3085, %v3080
    %v3136 = vpack.c.b16 %v3091, %v3086
    %v3137 = vpack.c.b16 %v3092, %v3087
    %v3138 = vpack.c.b16 %v3093, %v3088
    %v3139 = vpack.c.b16 %v3094, %v3089
    %v3140 = vpack.c.b16 %v3095, %v3090
    %v3141 = vpack.c.b16 %v3101, %v3096
    %v3142 = vpack.c.b16 %v3102, %v3097
    %v3143 = vpack.c.b16 %v3103, %v3098
    %v3144 = vpack.c.b16 %v3104, %v3099
    %v3145 = vpack.c.b16 %v3105, %v3100
    %3186 = vmatpush.bf16.msra.mxu0 %v3141
    %3187 = vmatpush.bf16.msra.mxu0 %v3136
    %3188 = vmatpush.bf16.msra.mxu0 %v3131
    %3189 = vmatpush.bf16.msra.mxu0 %v3126
    %3190 = vmatpush.bf16.msra.mxu0 %v3121
    %3191 = vmatpush.bf16.msra.mxu0 %v3116
    %3192 = vmatpush.bf16.msra.mxu0 %v3111
    %3193 = vmatpush.bf16.msra.mxu0 %v3106
    %3194 = vmatmul.bf16.gmra.mxu0 %v2899
    %v3195 = vpop.f32.mrf.mxu0
    %v3196 = vadd.f32 %v2968, %v3195
    %v3197 = vpop.f32.mrf.mxu0
    %3198 = vdwg.mxu0
    %3199 = vmatpush.bf16.msra.mxu0 %v3142
    %3200 = vmatpush.bf16.msra.mxu0 %v3137
    %3201 = vmatpush.bf16.msra.mxu0 %v3132
    %3202 = vmatpush.bf16.msra.mxu0 %v3127
    %3203 = vmatpush.bf16.msra.mxu0 %v3122
    %3204 = vmatpush.bf16.msra.mxu0 %v3117
    %3205 = vmatpush.bf16.msra.mxu0 %v3112
    %3206 = vmatpush.bf16.msra.mxu0 %v3107
    %3207 = vmatmul.bf16.gmra.mxu0 %v2899
    %v3208 = vpop.f32.mrf.mxu0
    %v3209 = vadd.f32 %v2969, %v3208
    %v3210 = vpop.f32.mrf.mxu0
    %3211 = vdwg.mxu0
    %3212 = vmatpush.bf16.msra.mxu0 %v3143
    %3213 = vmatpush.bf16.msra.mxu0 %v3138
    %3214 = vmatpush.bf16.msra.mxu0 %v3133
    %3215 = vmatpush.bf16.msra.mxu0 %v3128
    %3216 = vmatpush.bf16.msra.mxu0 %v3123
    %3217 = vmatpush.bf16.msra.mxu0 %v3118
    %3218 = vmatpush.bf16.msra.mxu0 %v3113
    %3219 = vmatpush.bf16.msra.mxu0 %v3108
    %3220 = vmatmul.bf16.gmra.mxu0 %v2899
    %v3221 = vpop.f32.mrf.mxu0
    %v3222 = vadd.f32 %v2970, %v3221
    %v3223 = vpop.f32.mrf.mxu0
    %3224 = vdwg.mxu0
    %3225 = vmatpush.bf16.msra.mxu0 %v3144
    %3226 = vmatpush.bf16.msra.mxu0 %v3139
    %3227 = vmatpush.bf16.msra.mxu0 %v3134
    %3228 = vmatpush.bf16.msra.mxu0 %v3129
    %3229 = vmatpush.bf16.msra.mxu0 %v3124
    %3230 = vmatpush.bf16.msra.mxu0 %v3119
    %3231 = vmatpush.bf16.msra.mxu0 %v3114
    %3232 = vmatpush.bf16.msra.mxu0 %v3109
    %3233 = vmatmul.bf16.gmra.mxu0 %v2899
    %v3234 = vpop.f32.mrf.mxu0
    %v3235 = vadd.f32 %v2971, %v3234
    %v3236 = vpop.f32.mrf.mxu0
    %3237 = vdwg.mxu0
    %3238 = vmatpush.bf16.msra.mxu0 %v3145
    %3239 = vmatpush.bf16.msra.mxu0 %v3140
    %3240 = vmatpush.bf16.msra.mxu0 %v3135
    %3241 = vmatpush.bf16.msra.mxu0 %v3130
    %3242 = vmatpush.bf16.msra.mxu0 %v3125
    %3243 = vmatpush.bf16.msra.mxu0 %v3120
    %3244 = vmatpush.bf16.msra.mxu0 %v3115
    %3245 = vmatpush.bf16.msra.mxu0 %v3110
    %3246 = vmatmul.bf16.gmra.mxu0 %v2899
    %v3247 = vpop.f32.mrf.mxu0
    %v3248 = vadd.f32 %v2972, %v3247
    %v3249 = vpop.f32.mrf.mxu0
    %3250 = vdwg.mxu0
    %v3251 = vpack.c.bf16 %v2913, %v2913
    %s3252 = scalar_lea.vmem [#allocation2], 384
    %v3253 = vld [vmem:[%s3252] sm:$0xff]
    %v3254 = vld [vmem:[%s3252 + $0x8] sm:$0xff]
    %v3255 = vld [vmem:[%s3252 + $0x10] sm:$0xff]
    %v3256 = vld [vmem:[%s3252 + $0x18] sm:$0xff]
    %v3257 = vld [vmem:[%s3252 + $0x20] sm:$0xff]
    %v3258 = vld [vmem:[%s3252 + $0x28] sm:$0xff]
    %v3259 = vld [vmem:[%s3252 + $0x30] sm:$0xff]
    %v3260 = vld [vmem:[%s3252 + $0x38] sm:$0xff]
    %v3261 = vld [vmem:[%s3252 + $0x40] sm:$0xff]
    %v3262 = vld [vmem:[%s3252 + $0x48] sm:$0xff]
    %v3263 = vld [vmem:[%s3252 + $0x50] sm:$0xff]
    %v3264 = vld [vmem:[%s3252 + $0x58] sm:$0xff]
    %v3265 = vld [vmem:[%s3252 + $0x60] sm:$0xff]
    %v3266 = vld [vmem:[%s3252 + $0x68] sm:$0xff]
    %v3267 = vld [vmem:[%s3252 + $0x70] sm:$0xff]
    %v3268 = vld [vmem:[%s3252 + $0x78] sm:$0xff]
    %v3269 = vmul.f32 %v2332, %v3196
    %v3270 = vmul.f32 %v2332, %v3209
    %v3287 = vunpack.c.l.b16 %v3253
    %v3288 = vunpack.c.h.b16 %v3253
    %v3289 = vunpack.c.l.b16 %v3254
    %v3290 = vunpack.c.h.b16 %v3254
    %v3291 = vunpack.c.l.b16 %v3255
    %v3292 = vunpack.c.h.b16 %v3255
    %v3293 = vunpack.c.l.b16 %v3256
    %v3294 = vunpack.c.h.b16 %v3256
    %v3295 = vunpack.c.l.b16 %v3257
    %v3296 = vunpack.c.h.b16 %v3257
    %v3297 = vunpack.c.l.b16 %v3258
    %v3298 = vunpack.c.h.b16 %v3258
    %v3299 = vunpack.c.l.b16 %v3259
    %v3300 = vunpack.c.h.b16 %v3259
    %v3301 = vunpack.c.l.b16 %v3260
    %v3302 = vunpack.c.h.b16 %v3260
    %v3303 = vunpack.c.l.b16 %v3261
    %v3304 = vunpack.c.h.b16 %v3261
    %v3305 = vunpack.c.l.b16 %v3262
    %v3306 = vunpack.c.h.b16 %v3262
    %v3307 = vunpack.c.l.b16 %v3263
    %v3308 = vunpack.c.h.b16 %v3263
    %v3309 = vunpack.c.l.b16 %v3264
    %v3310 = vunpack.c.h.b16 %v3264
    %v3311 = vunpack.c.l.b16 %v3265
    %v3312 = vunpack.c.h.b16 %v3265
    %v3313 = vunpack.c.l.b16 %v3266
    %v3314 = vunpack.c.h.b16 %v3266
    %v3315 = vunpack.c.l.b16 %v3267
    %v3316 = vunpack.c.h.b16 %v3267
    %v3317 = vunpack.c.l.b16 %v3268
    %v3318 = vunpack.c.h.b16 %v3268
    %v3319 = vpack.c.b16 %v3289, %v3287
    %v3320 = vpack.c.b16 %v3290, %v3288
    %v3321 = vpack.c.b16 %v3293, %v3291
    %v3322 = vpack.c.b16 %v3294, %v3292
    %v3323 = vpack.c.b16 %v3297, %v3295
    %v3324 = vpack.c.b16 %v3298, %v3296
    %v3325 = vpack.c.b16 %v3301, %v3299
    %v3326 = vpack.c.b16 %v3302, %v3300
    %v3327 = vpack.c.b16 %v3305, %v3303
    %v3328 = vpack.c.b16 %v3306, %v3304
    %v3329 = vpack.c.b16 %v3309, %v3307
    %v3330 = vpack.c.b16 %v3310, %v3308
    %v3331 = vpack.c.b16 %v3313, %v3311
    %v3332 = vpack.c.b16 %v3314, %v3312
    %v3333 = vpack.c.b16 %v3317, %v3315
    %v3334 = vpack.c.b16 %v3318, %v3316
    %3351 = vmatpush.bf16.msra.mxu0 %v3333
    %3352 = vmatpush.bf16.msra.mxu0 %v3331
    %3353 = vmatpush.bf16.msra.mxu0 %v3329
    %3354 = vmatpush.bf16.msra.mxu0 %v3327
    %3355 = vmatpush.bf16.msra.mxu0 %v3325
    %3356 = vmatpush.bf16.msra.mxu0 %v3323
    %3357 = vmatpush.bf16.msra.mxu0 %v3321
    %3358 = vmatpush.bf16.msra.mxu0 %v3319
    %3359 = vmatmul.bf16.gmra.mxu0 %v3251
    %v3360 = vpop.f32.mrf.mxu0
    %v3361 = vadd.f32 %v3269, %v3360
    %v3362 = vpop.f32.mrf.mxu0
    %3363 = vdwg.mxu0
    %3364 = vmatpush.bf16.msra.mxu0 %v3334
    %3365 = vmatpush.bf16.msra.mxu0 %v3332
    %3366 = vmatpush.bf16.msra.mxu0 %v3330
    %3367 = vmatpush.bf16.msra.mxu0 %v3328
    %3368 = vmatpush.bf16.msra.mxu0 %v3326
    %3369 = vmatpush.bf16.msra.mxu0 %v3324
    %3370 = vmatpush.bf16.msra.mxu0 %v3322
    %3371 = vmatpush.bf16.msra.mxu0 %v3320
    %3372 = vmatmul.bf16.gmra.mxu0 %v3251
    %v3373 = vpop.f32.mrf.mxu0
    %v3374 = vadd.f32 %v3270, %v3373
    %v3375 = vpop.f32.mrf.mxu0
    %3376 = vdwg.mxu0
    %v3377 = vpack.c.bf16 %v3361, %v3361
    %v3378 = vpack.c.bf16 %v3374, %v3374
    %s3379 = scalar_lea.vmem [#allocation6], 1152
    %v3380 = vld [vmem:[%s3379] sm:$0xff]
    %v3381 = vld [vmem:[%s3379 + $0x8] sm:$0xf]
    %v3382 = vld [vmem:[%s3379 + $0xc] sm:$0xff]
    %v3383 = vld [vmem:[%s3379 + $0x14] sm:$0xf]
    %v3384 = vld [vmem:[%s3379 + $0x18] sm:$0xff]
    %v3385 = vld [vmem:[%s3379 + $0x20] sm:$0xf]
    %v3386 = vld [vmem:[%s3379 + $0x24] sm:$0xff]
    %v3387 = vld [vmem:[%s3379 + $0x2c] sm:$0xf]
    %v3388 = vld [vmem:[%s3379 + $0x30] sm:$0xff]
    %v3389 = vld [vmem:[%s3379 + $0x38] sm:$0xf]
    %v3390 = vld [vmem:[%s3379 + $0x3c] sm:$0xff]
    %v3391 = vld [vmem:[%s3379 + $0x44] sm:$0xf]
    %v3392 = vld [vmem:[%s3379 + $0x48] sm:$0xff]
    %v3393 = vld [vmem:[%s3379 + $0x50] sm:$0xf]
    %v3394 = vld [vmem:[%s3379 + $0x54] sm:$0xff]
    %v3395 = vld [vmem:[%s3379 + $0x5c] sm:$0xf]
    %v3396 = vld [vmem:[%s3379 + $0x60] sm:$0xff]
    %v3397 = vld [vmem:[%s3379 + $0x68] sm:$0xf]
    %v3398 = vld [vmem:[%s3379 + $0x6c] sm:$0xff]
    %v3399 = vld [vmem:[%s3379 + $0x74] sm:$0xf]
    %v3400 = vld [vmem:[%s3379 + $0x78] sm:$0xff]
    %v3401 = vld [vmem:[%s3379 + $0x80] sm:$0xf]
    %v3402 = vld [vmem:[%s3379 + $0x84] sm:$0xff]
    %v3403 = vld [vmem:[%s3379 + $0x8c] sm:$0xf]
    %v3404 = vld [vmem:[%s3379 + $0x90] sm:$0xff]
    %v3405 = vld [vmem:[%s3379 + $0x98] sm:$0xf]
    %v3406 = vld [vmem:[%s3379 + $0x9c] sm:$0xff]
    %v3407 = vld [vmem:[%s3379 + $0xa4] sm:$0xf]
    %v3408 = vld [vmem:[%s3379 + $0xa8] sm:$0xff]
    %v3409 = vld [vmem:[%s3379 + $0xb0] sm:$0xf]
    %v3410 = vld [vmem:[%s3379 + $0xb4] sm:$0xff]
    %v3411 = vld [vmem:[%s3379 + $0xbc] sm:$0xf]
    %v3412 = vld [vmem:[%s3379 + $0xc0] sm:$0xff]
    %v3413 = vld [vmem:[%s3379 + $0xc8] sm:$0xf]
    %v3414 = vld [vmem:[%s3379 + $0xcc] sm:$0xff]
    %v3415 = vld [vmem:[%s3379 + $0xd4] sm:$0xf]
    %v3416 = vld [vmem:[%s3379 + $0xd8] sm:$0xff]
    %v3417 = vld [vmem:[%s3379 + $0xe0] sm:$0xf]
    %v3418 = vld [vmem:[%s3379 + $0xe4] sm:$0xff]
    %v3419 = vld [vmem:[%s3379 + $0xec] sm:$0xf]
    %v3420 = vld [vmem:[%s3379 + $0xf0] sm:$0xff]
    %v3421 = vld [vmem:[%s3379 + $0xf8] sm:$0xf]
    %v3422 = vld [vmem:[%s3379 + $0xfc] sm:$0xff]
    %v3423 = vld [vmem:[%s3379 + $0x104] sm:$0xf]
    %v3424 = vld [vmem:[%s3379 + $0x108] sm:$0xff]
    %v3425 = vld [vmem:[%s3379 + $0x110] sm:$0xf]
    %v3426 = vld [vmem:[%s3379 + $0x114] sm:$0xff]
    %v3427 = vld [vmem:[%s3379 + $0x11c] sm:$0xf]
    %v3428 = vld [vmem:[%s3379 + $0x120] sm:$0xff]
    %v3429 = vld [vmem:[%s3379 + $0x128] sm:$0xf]
    %v3430 = vld [vmem:[%s3379 + $0x12c] sm:$0xff]
    %v3431 = vld [vmem:[%s3379 + $0x134] sm:$0xf]
    %v3432 = vld [vmem:[%s3379 + $0x138] sm:$0xff]
    %v3433 = vld [vmem:[%s3379 + $0x140] sm:$0xf]
    %v3434 = vld [vmem:[%s3379 + $0x144] sm:$0xff]
    %v3435 = vld [vmem:[%s3379 + $0x14c] sm:$0xf]
    %v3436 = vld [vmem:[%s3379 + $0x150] sm:$0xff]
    %v3437 = vld [vmem:[%s3379 + $0x158] sm:$0xf]
    %v3438 = vld [vmem:[%s3379 + $0x15c] sm:$0xff]
    %v3439 = vld [vmem:[%s3379 + $0x164] sm:$0xf]
    %v3440 = vld [vmem:[%s3379 + $0x168] sm:$0xff]
    %v3441 = vld [vmem:[%s3379 + $0x170] sm:$0xf]
    %v3442 = vld [vmem:[%s3379 + $0x174] sm:$0xff]
    %v3443 = vld [vmem:[%s3379 + $0x17c] sm:$0xf]
    %s3444 = scalar_lea.vmem %s7, 9
    %v3445 = vld [vmem:[%s3444] sm:$0x7]
    %v3447 = vperm.slane %v3445, 0
    %v3448 = vperm.slane %v3445, 1
    %v3449 = vperm.slane %v3445, 2
    %v3517 = vunpack.c.l.b16 %v3380
    %v3518 = vunpack.c.h.b16 %v3380
    %v3519 = vunpack.c.l.b16 %v3381
    %v3520 = vunpack.c.l.b16 %v3382
    %v3521 = vunpack.c.h.b16 %v3382
    %v3522 = vunpack.c.l.b16 %v3383
    %v3523 = vunpack.c.l.b16 %v3384
    %v3524 = vunpack.c.h.b16 %v3384
    %v3525 = vunpack.c.l.b16 %v3385
    %v3526 = vunpack.c.l.b16 %v3386
    %v3527 = vunpack.c.h.b16 %v3386
    %v3528 = vunpack.c.l.b16 %v3387
    %v3529 = vunpack.c.l.b16 %v3388
    %v3530 = vunpack.c.h.b16 %v3388
    %v3531 = vunpack.c.l.b16 %v3389
    %v3532 = vunpack.c.l.b16 %v3390
    %v3533 = vunpack.c.h.b16 %v3390
    %v3534 = vunpack.c.l.b16 %v3391
    %v3535 = vunpack.c.l.b16 %v3392
    %v3536 = vunpack.c.h.b16 %v3392
    %v3537 = vunpack.c.l.b16 %v3393
    %v3538 = vunpack.c.l.b16 %v3394
    %v3539 = vunpack.c.h.b16 %v3394
    %v3540 = vunpack.c.l.b16 %v3395
    %v3541 = vunpack.c.l.b16 %v3396
    %v3542 = vunpack.c.h.b16 %v3396
    %v3543 = vunpack.c.l.b16 %v3397
    %v3544 = vunpack.c.l.b16 %v3398
    %v3545 = vunpack.c.h.b16 %v3398
    %v3546 = vunpack.c.l.b16 %v3399
    %v3547 = vunpack.c.l.b16 %v3400
    %v3548 = vunpack.c.h.b16 %v3400
    %v3549 = vunpack.c.l.b16 %v3401
    %v3550 = vunpack.c.l.b16 %v3402
    %v3551 = vunpack.c.h.b16 %v3402
    %v3552 = vunpack.c.l.b16 %v3403
    %v3553 = vunpack.c.l.b16 %v3404
    %v3554 = vunpack.c.h.b16 %v3404
    %v3555 = vunpack.c.l.b16 %v3405
    %v3556 = vunpack.c.l.b16 %v3406
    %v3557 = vunpack.c.h.b16 %v3406
    %v3558 = vunpack.c.l.b16 %v3407
    %v3559 = vunpack.c.l.b16 %v3408
    %v3560 = vunpack.c.h.b16 %v3408
    %v3561 = vunpack.c.l.b16 %v3409
    %v3562 = vunpack.c.l.b16 %v3410
    %v3563 = vunpack.c.h.b16 %v3410
    %v3564 = vunpack.c.l.b16 %v3411
    %v3565 = vunpack.c.l.b16 %v3412
    %v3566 = vunpack.c.h.b16 %v3412
    %v3567 = vunpack.c.l.b16 %v3413
    %v3568 = vunpack.c.l.b16 %v3414
    %v3569 = vunpack.c.h.b16 %v3414
    %v3570 = vunpack.c.l.b16 %v3415
    %v3571 = vunpack.c.l.b16 %v3416
    %v3572 = vunpack.c.h.b16 %v3416
    %v3573 = vunpack.c.l.b16 %v3417
    %v3574 = vunpack.c.l.b16 %v3418
    %v3575 = vunpack.c.h.b16 %v3418
    %v3576 = vunpack.c.l.b16 %v3419
    %v3577 = vunpack.c.l.b16 %v3420
    %v3578 = vunpack.c.h.b16 %v3420
    %v3579 = vunpack.c.l.b16 %v3421
    %v3580 = vunpack.c.l.b16 %v3422
    %v3581 = vunpack.c.h.b16 %v3422
    %v3582 = vunpack.c.l.b16 %v3423
    %v3583 = vunpack.c.l.b16 %v3424
    %v3584 = vunpack.c.h.b16 %v3424
    %v3585 = vunpack.c.l.b16 %v3425
    %v3586 = vunpack.c.l.b16 %v3426
    %v3587 = vunpack.c.h.b16 %v3426
    %v3588 = vunpack.c.l.b16 %v3427
    %v3589 = vunpack.c.l.b16 %v3428
    %v3590 = vunpack.c.h.b16 %v3428
    %v3591 = vunpack.c.l.b16 %v3429
    %v3592 = vunpack.c.l.b16 %v3430
    %v3593 = vunpack.c.h.b16 %v3430
    %v3594 = vunpack.c.l.b16 %v3431
    %v3595 = vunpack.c.l.b16 %v3432
    %v3596 = vunpack.c.h.b16 %v3432
    %v3597 = vunpack.c.l.b16 %v3433
    %v3598 = vunpack.c.l.b16 %v3434
    %v3599 = vunpack.c.h.b16 %v3434
    %v3600 = vunpack.c.l.b16 %v3435
    %v3601 = vunpack.c.l.b16 %v3436
    %v3602 = vunpack.c.h.b16 %v3436
    %v3603 = vunpack.c.l.b16 %v3437
    %v3604 = vunpack.c.l.b16 %v3438
    %v3605 = vunpack.c.h.b16 %v3438
    %v3606 = vunpack.c.l.b16 %v3439
    %v3607 = vunpack.c.l.b16 %v3440
    %v3608 = vunpack.c.h.b16 %v3440
    %v3609 = vunpack.c.l.b16 %v3441
    %v3610 = vunpack.c.l.b16 %v3442
    %v3611 = vunpack.c.h.b16 %v3442
    %v3612 = vunpack.c.l.b16 %v3443
    %v3613 = vpack.c.b16 %v3520, %v3517
    %v3614 = vpack.c.b16 %v3521, %v3518
    %v3615 = vpack.c.b16 %v3522, %v3519
    %v3616 = vpack.c.b16 %v3526, %v3523
    %v3617 = vpack.c.b16 %v3527, %v3524
    %v3618 = vpack.c.b16 %v3528, %v3525
    %v3619 = vpack.c.b16 %v3532, %v3529
    %v3620 = vpack.c.b16 %v3533, %v3530
    %v3621 = vpack.c.b16 %v3534, %v3531
    %v3622 = vpack.c.b16 %v3538, %v3535
    %v3623 = vpack.c.b16 %v3539, %v3536
    %v3624 = vpack.c.b16 %v3540, %v3537
    %v3625 = vpack.c.b16 %v3544, %v3541
    %v3626 = vpack.c.b16 %v3545, %v3542
    %v3627 = vpack.c.b16 %v3546, %v3543
    %v3628 = vpack.c.b16 %v3550, %v3547
    %v3629 = vpack.c.b16 %v3551, %v3548
    %v3630 = vpack.c.b16 %v3552, %v3549
    %v3631 = vpack.c.b16 %v3556, %v3553
    %v3632 = vpack.c.b16 %v3557, %v3554
    %v3633 = vpack.c.b16 %v3558, %v3555
    %v3634 = vpack.c.b16 %v3562, %v3559
    %v3635 = vpack.c.b16 %v3563, %v3560
    %v3636 = vpack.c.b16 %v3564, %v3561
    %v3637 = vpack.c.b16 %v3568, %v3565
    %v3638 = vpack.c.b16 %v3569, %v3566
    %v3639 = vpack.c.b16 %v3570, %v3567
    %v3640 = vpack.c.b16 %v3574, %v3571
    %v3641 = vpack.c.b16 %v3575, %v3572
    %v3642 = vpack.c.b16 %v3576, %v3573
    %v3643 = vpack.c.b16 %v3580, %v3577
    %v3644 = vpack.c.b16 %v3581, %v3578
    %v3645 = vpack.c.b16 %v3582, %v3579
    %v3646 = vpack.c.b16 %v3586, %v3583
    %v3647 = vpack.c.b16 %v3587, %v3584
    %v3648 = vpack.c.b16 %v3588, %v3585
    %v3649 = vpack.c.b16 %v3592, %v3589
    %v3650 = vpack.c.b16 %v3593, %v3590
    %v3651 = vpack.c.b16 %v3594, %v3591
    %v3652 = vpack.c.b16 %v3598, %v3595
    %v3653 = vpack.c.b16 %v3599, %v3596
    %v3654 = vpack.c.b16 %v3600, %v3597
    %v3655 = vpack.c.b16 %v3604, %v3601
    %v3656 = vpack.c.b16 %v3605, %v3602
    %v3657 = vpack.c.b16 %v3606, %v3603
    %v3658 = vpack.c.b16 %v3610, %v3607
    %v3659 = vpack.c.b16 %v3611, %v3608
    %v3660 = vpack.c.b16 %v3612, %v3609
    %3709 = vmatpush.bf16.msra.mxu0 %v3634
    %3710 = vmatpush.bf16.msra.mxu0 %v3631
    %3711 = vmatpush.bf16.msra.mxu0 %v3628
    %3712 = vmatpush.bf16.msra.mxu0 %v3625
    %3713 = vmatpush.bf16.msra.mxu0 %v3622
    %3714 = vmatpush.bf16.msra.mxu0 %v3619
    %3715 = vmatpush.bf16.msra.mxu0 %v3616
    %3716 = vmatpush.bf16.msra.mxu0 %v3613
    %3717 = vmatmul.bf16.gmra.mxu0 %v3377
    %v3718 = vpop.f32.mrf.mxu0
    %v3719 = vadd.f32 %v3447, %v3718
    %v3720 = vpop.f32.mrf.mxu0
    %3721 = vdwg.mxu0
    %3722 = vmatpush.bf16.msra.mxu0 %v3658
    %3723 = vmatpush.bf16.msra.mxu0 %v3655
    %3724 = vmatpush.bf16.msra.mxu0 %v3652
    %3725 = vmatpush.bf16.msra.mxu0 %v3649
    %3726 = vmatpush.bf16.msra.mxu0 %v3646
    %3727 = vmatpush.bf16.msra.mxu0 %v3643
    %3728 = vmatpush.bf16.msra.mxu0 %v3640
    %3729 = vmatpush.bf16.msra.mxu0 %v3637
    %3730 = vmatmul.bf16.gmra.mxu0 %v3378
    %v3731 = vpop.f32.mrf.mxu0
    %v3732 = vadd.f32 %v3719, %v3731
    %v3733 = vpop.f32.mrf.mxu0
    %3734 = vdwg.mxu0
    %3735 = vmatpush.bf16.msra.mxu0 %v3635
    %3736 = vmatpush.bf16.msra.mxu0 %v3632
    %3737 = vmatpush.bf16.msra.mxu0 %v3629
    %3738 = vmatpush.bf16.msra.mxu0 %v3626
    %3739 = vmatpush.bf16.msra.mxu0 %v3623
    %3740 = vmatpush.bf16.msra.mxu0 %v3620
    %3741 = vmatpush.bf16.msra.mxu0 %v3617
    %3742 = vmatpush.bf16.msra.mxu0 %v3614
    %3743 = vmatmul.bf16.gmra.mxu0 %v3377
    %v3744 = vpop.f32.mrf.mxu0
    %v3745 = vadd.f32 %v3448, %v3744
    %v3746 = vpop.f32.mrf.mxu0
    %3747 = vdwg.mxu0
    %3748 = vmatpush.bf16.msra.mxu0 %v3659
    %3749 = vmatpush.bf16.msra.mxu0 %v3656
    %3750 = vmatpush.bf16.msra.mxu0 %v3653
    %3751 = vmatpush.bf16.msra.mxu0 %v3650
    %3752 = vmatpush.bf16.msra.mxu0 %v3647
    %3753 = vmatpush.bf16.msra.mxu0 %v3644
    %3754 = vmatpush.bf16.msra.mxu0 %v3641
    %3755 = vmatpush.bf16.msra.mxu0 %v3638
    %3756 = vmatmul.bf16.gmra.mxu0 %v3378
    %v3757 = vpop.f32.mrf.mxu0
    %v3758 = vadd.f32 %v3745, %v3757
    %v3759 = vpop.f32.mrf.mxu0
    %3760 = vdwg.mxu0
    %3761 = vmatpush.bf16.msra.mxu0 %v3636
    %3762 = vmatpush.bf16.msra.mxu0 %v3633
    %3763 = vmatpush.bf16.msra.mxu0 %v3630
    %3764 = vmatpush.bf16.msra.mxu0 %v3627
    %3765 = vmatpush.bf16.msra.mxu0 %v3624
    %3766 = vmatpush.bf16.msra.mxu0 %v3621
    %3767 = vmatpush.bf16.msra.mxu0 %v3618
    %3768 = vmatpush.bf16.msra.mxu0 %v3615
    %3769 = vmatmul.bf16.gmra.mxu0 %v3377
    %v3770 = vpop.f32.mrf.mxu0
    %v3771 = vadd.f32 %v3449, %v3770
    %v3772 = vpop.f32.mrf.mxu0
    %3773 = vdwg.mxu0
    %3774 = vmatpush.bf16.msra.mxu0 %v3660
    %3775 = vmatpush.bf16.msra.mxu0 %v3657
    %3776 = vmatpush.bf16.msra.mxu0 %v3654
    %3777 = vmatpush.bf16.msra.mxu0 %v3651
    %3778 = vmatpush.bf16.msra.mxu0 %v3648
    %3779 = vmatpush.bf16.msra.mxu0 %v3645
    %3780 = vmatpush.bf16.msra.mxu0 %v3642
    %3781 = vmatpush.bf16.msra.mxu0 %v3639
    %3782 = vmatmul.bf16.gmra.mxu0 %v3378
    %v3783 = vpop.f32.mrf.mxu0
    %v3784 = vadd.f32 %v3771, %v3783
    %v3785 = vpop.f32.mrf.mxu0
    %3786 = vdwg.mxu0
    %v3787 = vadd.f32 %v3732, %v3222
    %v3788 = vxor.u32 %v3787, 2147483648
    %v3789 = vmul.f32 %v3788, 1.442695
    %v3790 = vpow.pop %v3789
    %v3791 = vadd.f32 %v3790, 1.0
    %v3792 = vrcp.pop %v3791
    %v3793 = vmul.f32 %v3791, %v3792
    %v3794 = vsub.f32 1.0, %v3793
    %v3795 = vmul.f32 %v3792, %v3794
    %v3796 = vadd.f32 %v3792, %v3795
    %vm3797 = vweird.f32 %v3791
    %vm3798 = vweird.f32 %v3792
    %vm3799 = vmor %vm3797, %vm3798
    %v3800 = vsel %vm3799, %v3792, %v3796
    %v3801 = vand.u32 2147483647, %v3791
    %vm3802 = vcmp.eq.f32.partialorder %v3801, 8.507059e+37
    %v3803 = vand.u32 %v3791, 2147483648
    %v3804 = vor.u32 1.1754944e-38, %v3803
    %v3805 = vsel %vm3802, %v3804, %v3800
    %v3806 = vmul.f32 1.0, %v3805
    %v3807 = vadd.f32 %v3758, %v3235
    %v3808 = vxor.u32 %v3807, 2147483648
    %v3809 = vmul.f32 %v3808, 1.442695
    %v3810 = vpow.pop %v3809
    %v3811 = vadd.f32 %v3810, 1.0
    %v3812 = vrcp.pop %v3811
    %v3813 = vmul.f32 %v3811, %v3812
    %v3814 = vsub.f32 1.0, %v3813
    %v3815 = vmul.f32 %v3812, %v3814
    %v3816 = vadd.f32 %v3812, %v3815
    %vm3817 = vweird.f32 %v3811
    %vm3818 = vweird.f32 %v3812
    %vm3819 = vmor %vm3817, %vm3818
    %v3820 = vsel %vm3819, %v3812, %v3816
    %v3821 = vand.u32 2147483647, %v3811
    %vm3822 = vcmp.eq.f32.partialorder %v3821, 8.507059e+37
    %v3823 = vand.u32 %v3811, 2147483648
    %v3824 = vor.u32 1.1754944e-38, %v3823
    %v3825 = vsel %vm3822, %v3824, %v3820
    %v3826 = vmul.f32 1.0, %v3825
    %v3827 = vmul.f32 %v3806, %v3248
    %v3828 = vadd.f32 %v3784, %v3827
    %v3829 = vtanh.pop %v3828
    %v3830 = vsub.f32 1.0, %v3826
    %v3831 = vmul.f32 %v3830, %v3829
    %v3832 = vmul.f32 %v3826, %v2898
    %v3833 = vadd.f32 %v3831, %v3832
    %3834 = vst [vmem:[%s8 + $0x8] sm:$0xff] %v3833
    // Predicated region
    $region46: #{node_emb_forward_pallas.1} parent=1 // pred_check
      _
    $region47: #{node_emb_forward_pallas.1} parent=1 // pred_check_branch
      %3836 = sbr.rel (0) target = $region49
    $region48: #{node_emb_forward_pallas.1} parent=1 // pred_region
      _
    $region49: #{node_emb_forward_pallas.1} parent=1 // pred_fallthru
      _
    // Predicated region
    $region50: #{node_emb_forward_pallas.1} parent=1 // pred_check
      _
    $region51: #{node_emb_forward_pallas.1} parent=1 // pred_check_branch
      %3838 = sbr.rel (0) target = $region53
    $region52: #{node_emb_forward_pallas.1} parent=1 // pred_region
      _
    $region53: #{node_emb_forward_pallas.1} parent=1 // pred_fallthru
      _
    %3839 = vsyncpa [#allocation3], 1
    %3840 = vsyncpa [#allocation5], 1

</llo_original>
